<compile_context>
chip_gen: v7x
topology: tpu7x:2x2x1
jax: 0.10.0
libtpu: 0.0.40
codegen_flags: <defaults>
</compile_context>

<pallas_src>
import math

import jax
import jax.numpy as jnp
from jax import lax
from jax.experimental import pallas as pl
from jax.experimental.pallas import tpu as pltpu

# ----------------------------- config (scaled-down ViT-L/32) -----------------
IMG = 64          # input spatial size
PATCH = 32        # patch size (same as vit_l_32)
C_IN = 3          # RGB
HIDDEN = 128      # hidden_dim            (1024 in ViT-L)
HEADS = 4         # attention heads       (16 in ViT-L)
HEAD_DIM = HIDDEN // HEADS
MLP = 256         # MLP dim               (4096 in ViT-L)
LAYERS = 2        # encoder layers        (24 in ViT-L)
HEAD1, HEAD2, HEAD_OUT = 256, 128, 40     # custom heads (1000, 512, 40 in module)
OUT_PAD = 128     # lane-dense padded head-output width
OUT_ROWS = 8      # sublane-dense padded head-output rows
LN_EPS = 1e-6     # torchvision ViT uses LayerNorm(eps=1e-6)
LEAKY_SLOPE = 0.01

HP = IMG // PATCH
N_PATCH = HP * HP
SEQ = N_PATCH + 1
CPP = C_IN * PATCH * PATCH

_SQRT1_2 = 1.0 / math.sqrt(2.0)


# ----------------------------- in-kernel helpers ------------------------------
def _ln(x, g, b):
    """LayerNorm over the last axis, f32 (biased variance, eps=1e-6)."""
    mu = jnp.mean(x, axis=-1, keepdims=True)
    var = jnp.mean((x - mu) ** 2, axis=-1, keepdims=True)
    return (x - mu) * lax.rsqrt(var + LN_EPS) * g + b


def _erf(x):
    """erf via Abramowitz–Stegun 7.1.26 (|abs err| <= 1.5e-7; only exp/div/poly,
    so it lowers on all Mosaic targets)."""
    a1, a2, a3, a4, a5 = 0.254829592, -0.284496736, 1.421413741, -1.453152027, 1.061405429
    p = 0.3275911
    ax = jnp.abs(x)
    t = 1.0 / (1.0 + p * ax)
    poly = t * (a1 + t * (a2 + t * (a3 + t * (a4 + t * a5))))
    y = 1.0 - poly * jnp.exp(-ax * ax)
    return jnp.where(x >= 0, y, -y)


def _gelu(x):
    # exact (erf) GELU, matching torch.nn.GELU()
    return 0.5 * x * (1.0 + _erf(x * _SQRT1_2))


def _leaky(x):
    return jnp.where(x >= 0, x, LEAKY_SLOPE * x)


# ----------------------------- the fused forward kernel -----------------------
def _vit_kernel(patches_ref, conv_w_ref, emb_ref,
                ln1g_ref, ln1b_ref, wqkv_ref, bqkv_ref, wo_ref, bo_ref,
                ln2g_ref, ln2b_ref, w1_ref, b1_ref, w2_ref, b2_ref,
                lng_ref, lnb_ref, h1w_ref, h1b_ref, h2w_ref, h2b_ref, h3w_ref,
                out_ref, x_scr):
    """grid = (B, LAYERS); one batch element's whole encoder runs with its
    residual stream resident in the VMEM scratch `x_scr`."""
    layer = pl.program_id(1)
    scale = 1.0 / math.sqrt(HEAD_DIM)

    # ---- layer 0 only: patch embedding (+ class token + pos) into VMEM ---------
    @pl.when(layer == 0)
    def _():
        patches = patches_ref[0].astype(jnp.bfloat16)          # [SEQ, C*P*P]; row 0 = zeros
        x_scr[...] = (jnp.dot(patches, conv_w_ref[...],
                              preferred_element_type=jnp.float32)
                      + emb_ref[...])                          # row 0: cls+pos0; rows i: conv+b+pos

    x = x_scr[...]                                             # [SEQ, D] f32

    # ---- attention block: pre-LN -> head-batched QKV/attn -> out-proj -> residual
    y = _ln(x, ln1g_ref[0], ln1b_ref[0]).astype(jnp.bfloat16)  # [SEQ, D]
    yb = jnp.broadcast_to(y, (HEADS, SEQ, HIDDEN))             # [H, SEQ, D]
    qkv = jnp.einsum("hsd,hde->hse", yb, wqkv_ref[0],
                     preferred_element_type=jnp.float32) + bqkv_ref[0]   # [H, SEQ, 3*hd]
    q = (qkv[..., 0 * HEAD_DIM:1 * HEAD_DIM] * scale).astype(jnp.bfloat16)
    k = qkv[..., 1 * HEAD_DIM:2 * HEAD_DIM].astype(jnp.bfloat16)
    v = qkv[..., 2 * HEAD_DIM:3 * HEAD_DIM].astype(jnp.bfloat16)

    s = jnp.einsum("hqd,hkd->hqk", q, k,
                   preferred_element_type=jnp.float32)         # [H, SEQ, SEQ]
    s = s - jnp.max(s, axis=-1, keepdims=True)
    p = jnp.exp(s)
    p = p / jnp.sum(p, axis=-1, keepdims=True)                 # exact softmax (f32)

    o = jnp.einsum("hqk,hkd->hqd", p.astype(jnp.bfloat16), v,
                   preferred_element_type=jnp.float32)         # [H, SEQ, hd]
    proj = jnp.einsum("hsd,hde->hse", o.astype(jnp.bfloat16), wo_ref[0],
                      preferred_element_type=jnp.float32)      # [H, SEQ, D]
    x = x + jnp.sum(proj, axis=0) + bo_ref[0]                  # merge heads + residual

    # ---- MLP block: pre-LN -> Linear -> GELU -> Linear -> residual --------------
    z = _ln(x, ln2g_ref[0], ln2b_ref[0]).astype(jnp.bfloat16)
    h = jnp.dot(z, w1_ref[0], preferred_element_type=jnp.float32) + b1_ref[0]
    h = _gelu(h).astype(jnp.bfloat16)
    x = x + (jnp.dot(h, w2_ref[0], preferred_element_type=jnp.float32) + b2_ref[0])

    x_scr[...] = x

    # ---- last layer only: final LN (class token) + head MLP, lane-dense store ---
    @pl.when(layer == pl.num_programs(1) - 1)
    def _():
        cls = x[0:1, :]                                        # [1, D]
        zc = _ln(cls, lng_ref[...], lnb_ref[...]).astype(jnp.bfloat16)
        a = jnp.dot(zc, h1w_ref[...], preferred_element_type=jnp.float32) + h1b_ref[...]
        a = _leaky(a).astype(jnp.bfloat16)
        b = jnp.dot(a, h2w_ref[...], preferred_element_type=jnp.float32) + h2b_ref[...]
        b = _leaky(b).astype(jnp.bfloat16)
        res = jnp.dot(b, h3w_ref[...], preferred_element_type=jnp.float32)   # [1, OUT_PAD]
        out_ref[0] = jnp.broadcast_to(res, (OUT_ROWS, OUT_PAD))


# ----------------------------- wrapper -----------------------------------------
def vit_forward(params, x):
    """x: [B, C, H, W] float32 (NCHW, like PyTorch) -> [B, HEAD_OUT] float32."""
    B = x.shape[0]

    # conv_proj with kernel == stride == PATCH  <=>  patch flatten + one matmul.
    # TODO(synk): at real image sizes, fold this 6-D patch-extraction transpose
    #             into the kernel's DMA instead of materializing `patches` via XLA.
    patches = x.reshape(B, C_IN, HP, PATCH, HP, PATCH)
    patches = patches.transpose(0, 2, 4, 1, 3, 5).reshape(B, N_PATCH, CPP)
    # Prepend an all-zero "patch" so the same matmul also emits the class-token row.
    patches = jnp.concatenate(
        [jnp.zeros((B, 1, CPP), jnp.float32), patches], axis=1)            # [B, SEQ, CPP]

    # embed_bias[0] = cls + pos[0];  embed_bias[i>0] = conv_b + pos[i]
    embed_bias = params["pos"] + jnp.concatenate(
        [params["cls"], jnp.broadcast_to(params["conv_b"], (N_PATCH, HIDDEN))], axis=0)

    lspec3 = lambda shape: pl.BlockSpec(shape, lambda b, l: (l, 0, 0))       # per-layer
    lspec4 = lambda shape: pl.BlockSpec(shape, lambda b, l: (l, 0, 0, 0))    # per-layer
    cspec = lambda shape: pl.BlockSpec(shape, lambda b, l: (0, 0))           # constant

    out = pl.pallas_call(
        _vit_kernel,
        grid=(B, LAYERS),
        out_shape=jax.ShapeDtypeStruct((B, OUT_ROWS, OUT_PAD), jnp.float32),
        in_specs=[
            pl.BlockSpec((1, SEQ, CPP), lambda b, l: (b, 0, 0)),             # patches
            cspec((CPP, HIDDEN)),                                            # conv_w
            cspec((SEQ, HIDDEN)),                                            # embed bias
            lspec3((1, 1, HIDDEN)), lspec3((1, 1, HIDDEN)),                  # ln1 g, b
            lspec4((1, HEADS, HIDDEN, 3 * HEAD_DIM)),                        # wqkv (head-major)
            lspec4((1, HEADS, 1, 3 * HEAD_DIM)),                             # bqkv
            lspec4((1, HEADS, HEAD_DIM, HIDDEN)),                            # wo   (head-major)
            lspec3((1, 1, HIDDEN)),                                          # bo
            lspec3((1, 1, HIDDEN)), lspec3((1, 1, HIDDEN)),                  # ln2 g, b
            lspec3((1, HIDDEN, MLP)), lspec3((1, 1, MLP)),                   # w1, b1
            lspec3((1, MLP, HIDDEN)), lspec3((1, 1, HIDDEN)),                # w2, b2
            cspec((1, HIDDEN)), cspec((1, HIDDEN)),                          # final ln g, b
            cspec((HIDDEN, HEAD1)), cspec((1, HEAD1)),                       # head linear 1
            cspec((HEAD1, HEAD2)), cspec((1, HEAD2)),                        # head linear 2
            cspec((HEAD2, OUT_PAD)),                                         # head linear 3 (padded)
        ],
        out_specs=pl.BlockSpec((1, OUT_ROWS, OUT_PAD), lambda b, l: (b, 0, 0)),
        scratch_shapes=[pltpu.VMEM((SEQ, HIDDEN), jnp.float32)],             # residual stream
        compiler_params=pltpu.CompilerParams(
            dimension_semantics=("parallel", "arbitrary")),                  # megacore over B
    )(patches, params["conv_w"], embed_bias,
      params["ln1_g"], params["ln1_b"], params["wqkv"], params["bqkv"],
      params["wo"], params["bo"], params["ln2_g"], params["ln2_b"],
      params["w1"], params["b1"], params["w2"], params["b2"],
      params["ln_g"], params["ln_b"],
      params["h1_w"], params["h1_b"], params["h2_w"], params["h2_b"], params["h3_w"])

    return out[:, 0, :HEAD_OUT]


# ----------------------------- parameter init ----------------------------------
def init_params(key):
    keys = iter(jax.random.split(key, 12))

    def w(shape, scale=0.02):
        return scale * jax.random.normal(next(keys), shape, dtype=jnp.float32)

    def wb(shape, scale=0.02):                 # matmul weights stored in bf16
        return w(shape, scale).astype(jnp.bfloat16)

    zeros = lambda s: jnp.zeros(s, jnp.float32)
    ones = lambda s: jnp.ones(s, jnp.float32)

    # final head Linear(HEAD2 -> 40, bias=False), zero-padded to 128 output lanes
    # so the kernel's store is lane-dense; sliced back to 40 outside the kernel.
    h3 = w((HEAD2, HEAD_OUT))
    h3_pad = jnp.zeros((HEAD2, OUT_PAD), jnp.float32).at[:, :HEAD_OUT].set(h3)

    return {
        # patch embed (conv_proj expressed as a matmul) + class token + pos embed
        "conv_w": wb((CPP, HIDDEN)),
        "conv_b": zeros((1, HIDDEN)),
        "cls": w((1, HIDDEN)),
        "pos": w((SEQ, HIDDEN)),
        # encoder layers stacked along a leading LAYERS axis; attention weights are
        # head-major so the kernel's batched-head einsums need no transposes.
        "ln1_g": ones((LAYERS, 1, HIDDEN)), "ln1_b": zeros((LAYERS, 1, HIDDEN)),
        "wqkv": wb((LAYERS, HEADS, HIDDEN, 3 * HEAD_DIM)),
        "bqkv": zeros((LAYERS, HEADS, 1, 3 * HEAD_DIM)),
        "wo": wb((LAYERS, HEADS, HEAD_DIM, HIDDEN)),
        "bo": zeros((LAYERS, 1, HIDDEN)),
        "ln2_g": ones((LAYERS, 1, HIDDEN)), "ln2_b": zeros((LAYERS, 1, HIDDEN)),
        "w1": wb((LAYERS, HIDDEN, MLP)), "b1": zeros((LAYERS, 1, MLP)),
        "w2": wb((LAYERS, MLP, HIDDEN)), "b2": zeros((LAYERS, 1, HIDDEN)),
        # final encoder LayerNorm + custom heads
        "ln_g": ones((1, HIDDEN)), "ln_b": zeros((1, HIDDEN)),
        "h1_w": wb((HIDDEN, HEAD1)), "h1_b": zeros((1, HEAD1)),
        "h2_w": wb((HEAD1, HEAD2)), "h2_b": zeros((1, HEAD2)),
        "h3_w": h3_pad.astype(jnp.bfloat16),
    }


# ----------------------------- main ----------------------------------------------
if __name__ == "__main__":
    key = jax.random.PRNGKey(0)
    pkey, xkey = jax.random.split(key)
    params = init_params(pkey)

    # NCHW input, like the PyTorch module
    x = jax.random.normal(xkey, (2, C_IN, IMG, IMG), dtype=jnp.float32)

    out = jax.block_until_ready(jax.jit(vit_forward)(params, x))

    assert out.shape == (2, HEAD_OUT), out.shape
    assert bool(jnp.all(jnp.isfinite(out)))
    print("KERNEL_OK")
</pallas_src>

<mosaic_0001>
module attributes {stable_mosaic.version = 11 : i64} {
  func.func @_vit_kernel(%arg0: i32, %arg1: i32, %arg2: memref<1x5x3072xf32, #tpu.memory_space<vmem>>, %arg3: memref<3072x128xbf16, #tpu.memory_space<vmem>>, %arg4: memref<5x128xf32, #tpu.memory_space<vmem>>, %arg5: memref<1x1x128xf32, #tpu.memory_space<vmem>>, %arg6: memref<1x1x128xf32, #tpu.memory_space<vmem>>, %arg7: memref<1x4x128x96xbf16, #tpu.memory_space<vmem>>, %arg8: memref<1x4x1x96xf32, #tpu.memory_space<vmem>>, %arg9: memref<1x4x32x128xbf16, #tpu.memory_space<vmem>>, %arg10: memref<1x1x128xf32, #tpu.memory_space<vmem>>, %arg11: memref<1x1x128xf32, #tpu.memory_space<vmem>>, %arg12: memref<1x1x128xf32, #tpu.memory_space<vmem>>, %arg13: memref<1x128x256xbf16, #tpu.memory_space<vmem>>, %arg14: memref<1x1x256xf32, #tpu.memory_space<vmem>>, %arg15: memref<1x256x128xbf16, #tpu.memory_space<vmem>>, %arg16: memref<1x1x128xf32, #tpu.memory_space<vmem>>, %arg17: memref<1x128xf32, #tpu.memory_space<vmem>>, %arg18: memref<1x128xf32, #tpu.memory_space<vmem>>, %arg19: memref<128x256xbf16, #tpu.memory_space<vmem>>, %arg20: memref<1x256xf32, #tpu.memory_space<vmem>>, %arg21: memref<256x128xbf16, #tpu.memory_space<vmem>>, %arg22: memref<1x128xf32, #tpu.memory_space<vmem>>, %arg23: memref<128x128xbf16, #tpu.memory_space<vmem>>, %arg24: memref<1x8x128xf32, #tpu.memory_space<vmem>>, %arg25: memref<5x128xf32, #tpu.memory_space<vmem>>) attributes {dimension_semantics = [#tpu.dimension_semantics<parallel>, #tpu.dimension_semantics<arbitrary>], iteration_bounds = array<i64: 2, 2>, scalar_prefetch = 0 : i64, scratch_operands = 1 : i64, tpu.core_type = #tpu.core_type<tc>, window_params = [{transform_indices = @transform_0, window_bounds = array<i64: 1, 5, 3072>}, {pipeline_mode = #tpu.pipeline_mode<synchronous>, transform_indices = @transform_1, window_bounds = array<i64: 3072, 128>}, {pipeline_mode = #tpu.pipeline_mode<synchronous>, transform_indices = @transform_2, window_bounds = array<i64: 5, 128>}, {transform_indices = @transform_3, window_bounds = array<i64: 1, 1, 128>}, {transform_indices = @transform_4, window_bounds = array<i64: 1, 1, 128>}, {transform_indices = @transform_5, window_bounds = array<i64: 1, 4, 128, 96>}, {transform_indices = @transform_6, window_bounds = array<i64: 1, 4, 1, 96>}, {transform_indices = @transform_7, window_bounds = array<i64: 1, 4, 32, 128>}, {transform_indices = @transform_8, window_bounds = array<i64: 1, 1, 128>}, {transform_indices = @transform_9, window_bounds = array<i64: 1, 1, 128>}, {transform_indices = @transform_10, window_bounds = array<i64: 1, 1, 128>}, {transform_indices = @transform_11, window_bounds = array<i64: 1, 128, 256>}, {transform_indices = @transform_12, window_bounds = array<i64: 1, 1, 256>}, {transform_indices = @transform_13, window_bounds = array<i64: 1, 256, 128>}, {transform_indices = @transform_14, window_bounds = array<i64: 1, 1, 128>}, {pipeline_mode = #tpu.pipeline_mode<synchronous>, transform_indices = @transform_15, window_bounds = array<i64: 1, 128>}, {pipeline_mode = #tpu.pipeline_mode<synchronous>, transform_indices = @transform_16, window_bounds = array<i64: 1, 128>}, {pipeline_mode = #tpu.pipeline_mode<synchronous>, transform_indices = @transform_17, window_bounds = array<i64: 128, 256>}, {pipeline_mode = #tpu.pipeline_mode<synchronous>, transform_indices = @transform_18, window_bounds = array<i64: 1, 256>}, {pipeline_mode = #tpu.pipeline_mode<synchronous>, transform_indices = @transform_19, window_bounds = array<i64: 256, 128>}, {pipeline_mode = #tpu.pipeline_mode<synchronous>, transform_indices = @transform_20, window_bounds = array<i64: 1, 128>}, {pipeline_mode = #tpu.pipeline_mode<synchronous>, transform_indices = @transform_21, window_bounds = array<i64: 128, 128>}, {transform_indices = @transform_22, window_bounds = array<i64: 1, 8, 128>}]} {
    %c0_i32 = arith.constant 0 : i32
    %0 = arith.cmpi eq, %arg1, %c0_i32 : i32
    %1 = arith.extui %0 : i1 to i32
    %c0_i32_0 = arith.constant 0 : i32
    %2 = arith.cmpi ne, %1, %c0_i32_0 : i32
    scf.if %2 {
      %c0_78 = arith.constant 0 : index
      %c0_79 = arith.constant 0 : index
      %c0_80 = arith.constant 0 : index
      %157 = vector.load %arg2[%c0_78, %c0_79, %c0_80] : memref<1x5x3072xf32, #tpu.memory_space<vmem>>, vector<1x5x3072xf32>
      %158 = vector.shape_cast %157 : vector<1x5x3072xf32> to vector<5x3072xf32>
      %159 = arith.truncf %158 : vector<5x3072xf32> to vector<5x3072xbf16>
      %c0_81 = arith.constant 0 : index
      %c0_82 = arith.constant 0 : index
      %160 = vector.load %arg3[%c0_81, %c0_82] : memref<3072x128xbf16, #tpu.memory_space<vmem>>, vector<3072x128xbf16>
      %cst_83 = arith.constant dense<0.000000e+00> : vector<5x128xf32>
      %161 = tpu.matmul %159, %160, %cst_83 {dimension_numbers = #tpu.dot_dimension_numbers<[1], [0], [0], [1], [0, 0, 1, 1], [], []>} : vector<5x3072xbf16>, vector<3072x128xbf16>, vector<5x128xf32> -> vector<5x128xf32>
      %c0_84 = arith.constant 0 : index
      %c0_85 = arith.constant 0 : index
      %162 = vector.load %arg4[%c0_84, %c0_85] : memref<5x128xf32, #tpu.memory_space<vmem>>, vector<5x128xf32>
      %163 = arith.addf %161, %162 : vector<5x128xf32>
      %c0_86 = arith.constant 0 : index
      %c0_87 = arith.constant 0 : index
      %164 = vector.load %arg25[%c0_86, %c0_87] : memref<5x128xf32, #tpu.memory_space<vmem>>, vector<5x128xf32>
      tpu.vector_store %arg25[%c0_86, %c0_87], %163 {strides = array<i32>} : memref<5x128xf32, #tpu.memory_space<vmem>>, vector<5x128xf32>,
    } else {
    }
    %c0 = arith.constant 0 : index
    %c0_1 = arith.constant 0 : index
    %3 = vector.load %arg25[%c0, %c0_1] : memref<5x128xf32, #tpu.memory_space<vmem>>, vector<5x128xf32>
    %c0_2 = arith.constant 0 : index
    %c0_3 = arith.constant 0 : index
    %c0_4 = arith.constant 0 : index
    %4 = vector.load %arg5[%c0_2, %c0_3, %c0_4] : memref<1x1x128xf32, #tpu.memory_space<vmem>>, vector<1x1x128xf32>
    %5 = vector.shape_cast %4 : vector<1x1x128xf32> to vector<1x128xf32>
    %c0_5 = arith.constant 0 : index
    %c0_6 = arith.constant 0 : index
    %c0_7 = arith.constant 0 : index
    %6 = vector.load %arg6[%c0_5, %c0_6, %c0_7] : memref<1x1x128xf32, #tpu.memory_space<vmem>>, vector<1x1x128xf32>
    %7 = vector.shape_cast %6 : vector<1x1x128xf32> to vector<1x128xf32>
    %cst = arith.constant dense<0.000000e+00> : vector<5xf32>
    %8 = vector.multi_reduction <add>, %3, %cst [1] : vector<5x128xf32> to vector<5xf32>
    %9 = vector.shape_cast %8 : vector<5xf32> to vector<5x1xf32>
    %cst_8 = arith.constant 1.280000e+02 : f32
    %10 = vector.broadcast %cst_8 : f32 to vector<5x1xf32>
    %11 = arith.divf %9, %10 : vector<5x1xf32>
    %12 = vector.broadcast %11 : vector<5x1xf32> to vector<5x128xf32>
    %13 = arith.subf %3, %12 : vector<5x128xf32>
    %14 = arith.mulf %13, %13 : vector<5x128xf32>
    %cst_9 = arith.constant dense<0.000000e+00> : vector<5xf32>
    %15 = vector.multi_reduction <add>, %14, %cst_9 [1] : vector<5x128xf32> to vector<5xf32>
    %16 = vector.shape_cast %15 : vector<5xf32> to vector<5x1xf32>
    %cst_10 = arith.constant 1.280000e+02 : f32
    %17 = vector.broadcast %cst_10 : f32 to vector<5x1xf32>
    %18 = arith.divf %16, %17 : vector<5x1xf32>
    %19 = vector.broadcast %11 : vector<5x1xf32> to vector<5x128xf32>
    %20 = arith.subf %3, %19 : vector<5x128xf32>
    %cst_11 = arith.constant 9.99999997E-7 : f32
    %21 = vector.broadcast %cst_11 : f32 to vector<5x1xf32>
    %22 = arith.addf %18, %21 : vector<5x1xf32>
    %23 = math.rsqrt %22 : vector<5x1xf32>
    %24 = vector.broadcast %23 : vector<5x1xf32> to vector<5x128xf32>
    %25 = arith.mulf %20, %24 : vector<5x128xf32>
    %26 = vector.broadcast %5 : vector<1x128xf32> to vector<5x128xf32>
    %27 = arith.mulf %25, %26 : vector<5x128xf32>
    %28 = vector.broadcast %7 : vector<1x128xf32> to vector<5x128xf32>
    %29 = arith.addf %27, %28 : vector<5x128xf32>
    %30 = arith.truncf %29 : vector<5x128xf32> to vector<5x128xbf16>
    %31 = vector.shape_cast %30 : vector<5x128xbf16> to vector<1x5x128xbf16>
    %32 = vector.broadcast %31 : vector<1x5x128xbf16> to vector<4x5x128xbf16>
    %c0_12 = arith.constant 0 : index
    %c0_13 = arith.constant 0 : index
    %c0_14 = arith.constant 0 : index
    %c0_15 = arith.constant 0 : index
    %33 = vector.load %arg7[%c0_12, %c0_13, %c0_14, %c0_15] : memref<1x4x128x96xbf16, #tpu.memory_space<vmem>>, vector<1x4x128x96xbf16>
    %34 = vector.shape_cast %33 : vector<1x4x128x96xbf16> to vector<4x128x96xbf16>
    "tpu.trace_start"() <{level = 10 : i32, message = "hsd,hde->hse"}> : () -> ()
    %cst_16 = arith.constant dense<0.000000e+00> : vector<4x5x96xf32>
    %35 = tpu.matmul %32, %34, %cst_16 {dimension_numbers = #tpu.dot_dimension_numbers<[2], [1], [1], [2], [0, 0, 0, 1, 1, 2], [0], [0]>} : vector<4x5x128xbf16>, vector<4x128x96xbf16>, vector<4x5x96xf32> -> vector<4x5x96xf32>
    "tpu.trace_stop"() : () -> ()
    %c0_17 = arith.constant 0 : index
    %c0_18 = arith.constant 0 : index
    %c0_19 = arith.constant 0 : index
    %c0_20 = arith.constant 0 : index
    %36 = vector.load %arg8[%c0_17, %c0_18, %c0_19, %c0_20] : memref<1x4x1x96xf32, #tpu.memory_space<vmem>>, vector<1x4x1x96xf32>
    %37 = vector.shape_cast %36 : vector<1x4x1x96xf32> to vector<4x1x96xf32>
    %38 = vector.broadcast %37 : vector<4x1x96xf32> to vector<4x5x96xf32>
    %39 = arith.addf %35, %38 : vector<4x5x96xf32>
    %40 = vector.extract_strided_slice %39 {offsets = [0, 0, 0], sizes = [4, 5, 32], strides = [1, 1, 1]} : vector<4x5x96xf32> to vector<4x5x32xf32>
    %cst_21 = arith.constant 0.176776692 : f32
    %41 = vector.broadcast %cst_21 : f32 to vector<4x5x32xf32>
    %42 = arith.mulf %40, %41 : vector<4x5x32xf32>
    %43 = arith.truncf %42 : vector<4x5x32xf32> to vector<4x5x32xbf16>
    %44 = vector.extract_strided_slice %39 {offsets = [0, 0, 32], sizes = [4, 5, 32], strides = [1, 1, 1]} : vector<4x5x96xf32> to vector<4x5x32xf32>
    %45 = arith.truncf %44 : vector<4x5x32xf32> to vector<4x5x32xbf16>
    %46 = vector.extract_strided_slice %39 {offsets = [0, 0, 64], sizes = [4, 5, 32], strides = [1, 1, 1]} : vector<4x5x96xf32> to vector<4x5x32xf32>
    %47 = arith.truncf %46 : vector<4x5x32xf32> to vector<4x5x32xbf16>
    "tpu.trace_start"() <{level = 10 : i32, message = "hqd,hkd->hqk"}> : () -> ()
    %cst_22 = arith.constant dense<0.000000e+00> : vector<4x5x5xf32>
    %48 = tpu.matmul %43, %45, %cst_22 {dimension_numbers = #tpu.dot_dimension_numbers<[2], [2], [1], [1], [0, 0, 0, 1, 1, 1], [0], [0]>} : vector<4x5x32xbf16>, vector<4x5x32xbf16>, vector<4x5x5xf32> -> vector<4x5x5xf32>
    "tpu.trace_stop"() : () -> ()
    %cst_23 = arith.constant dense<0xFF800000> : vector<4x5xf32>
    %49 = vector.multi_reduction <maximumf>, %48, %cst_23 [2] : vector<4x5x5xf32> to vector<4x5xf32>
    %50 = vector.shape_cast %49 : vector<4x5xf32> to vector<4x5x1xf32>
    %51 = vector.broadcast %50 : vector<4x5x1xf32> to vector<4x5x5xf32>
    %52 = arith.subf %48, %51 : vector<4x5x5xf32>
    %53 = math.exp %52 : vector<4x5x5xf32>
    %cst_24 = arith.constant dense<0.000000e+00> : vector<4x5xf32>
    %54 = vector.multi_reduction <add>, %53, %cst_24 [2] : vector<4x5x5xf32> to vector<4x5xf32>
    %55 = vector.shape_cast %54 : vector<4x5xf32> to vector<4x5x1xf32>
    %56 = vector.broadcast %55 : vector<4x5x1xf32> to vector<4x5x5xf32>
    %57 = arith.divf %53, %56 : vector<4x5x5xf32>
    %58 = arith.truncf %57 : vector<4x5x5xf32> to vector<4x5x5xbf16>
    "tpu.trace_start"() <{level = 10 : i32, message = "hqk,hkd->hqd"}> : () -> ()
    %cst_25 = arith.constant dense<0.000000e+00> : vector<4x5x32xf32>
    %59 = tpu.matmul %58, %47, %cst_25 {dimension_numbers = #tpu.dot_dimension_numbers<[2], [1], [1], [2], [0, 0, 0, 1, 1, 2], [0], [0]>} : vector<4x5x5xbf16>, vector<4x5x32xbf16>, vector<4x5x32xf32> -> vector<4x5x32xf32>
    "tpu.trace_stop"() : () -> ()
    %60 = arith.truncf %59 : vector<4x5x32xf32> to vector<4x5x32xbf16>
    %c0_26 = arith.constant 0 : index
    %c0_27 = arith.constant 0 : index
    %c0_28 = arith.constant 0 : index
    %c0_29 = arith.constant 0 : index
    %61 = vector.load %arg9[%c0_26, %c0_27, %c0_28, %c0_29] : memref<1x4x32x128xbf16, #tpu.memory_space<vmem>>, vector<1x4x32x128xbf16>
    %62 = vector.shape_cast %61 : vector<1x4x32x128xbf16> to vector<4x32x128xbf16>
    "tpu.trace_start"() <{level = 10 : i32, message = "hsd,hde->hse"}> : () -> ()
    %cst_30 = arith.constant dense<0.000000e+00> : vector<4x5x128xf32>
    %63 = tpu.matmul %60, %62, %cst_30 {dimension_numbers = #tpu.dot_dimension_numbers<[2], [1], [1], [2], [0, 0, 0, 1, 1, 2], [0], [0]>} : vector<4x5x32xbf16>, vector<4x32x128xbf16>, vector<4x5x128xf32> -> vector<4x5x128xf32>
    "tpu.trace_stop"() : () -> ()
    %cst_31 = arith.constant dense<0.000000e+00> : vector<5x128xf32>
    %64 = vector.multi_reduction <add>, %63, %cst_31 [0] : vector<4x5x128xf32> to vector<5x128xf32>
    %65 = arith.addf %3, %64 : vector<5x128xf32>
    %c0_32 = arith.constant 0 : index
    %c0_33 = arith.constant 0 : index
    %c0_34 = arith.constant 0 : index
    %66 = vector.load %arg10[%c0_32, %c0_33, %c0_34] : memref<1x1x128xf32, #tpu.memory_space<vmem>>, vector<1x1x128xf32>
    %67 = vector.shape_cast %66 : vector<1x1x128xf32> to vector<1x128xf32>
    %68 = vector.broadcast %67 : vector<1x128xf32> to vector<5x128xf32>
    %69 = arith.addf %65, %68 : vector<5x128xf32>
    %c0_35 = arith.constant 0 : index
    %c0_36 = arith.constant 0 : index
    %c0_37 = arith.constant 0 : index
    %70 = vector.load %arg11[%c0_35, %c0_36, %c0_37] : memref<1x1x128xf32, #tpu.memory_space<vmem>>, vector<1x1x128xf32>
    %71 = vector.shape_cast %70 : vector<1x1x128xf32> to vector<1x128xf32>
    %c0_38 = arith.constant 0 : index
    %c0_39 = arith.constant 0 : index
    %c0_40 = arith.constant 0 : index
    %72 = vector.load %arg12[%c0_38, %c0_39, %c0_40] : memref<1x1x128xf32, #tpu.memory_space<vmem>>, vector<1x1x128xf32>
    %73 = vector.shape_cast %72 : vector<1x1x128xf32> to vector<1x128xf32>
    %cst_41 = arith.constant dense<0.000000e+00> : vector<5xf32>
    %74 = vector.multi_reduction <add>, %69, %cst_41 [1] : vector<5x128xf32> to vector<5xf32>
    %75 = vector.shape_cast %74 : vector<5xf32> to vector<5x1xf32>
    %cst_42 = arith.constant 1.280000e+02 : f32
    %76 = vector.broadcast %cst_42 : f32 to vector<5x1xf32>
    %77 = arith.divf %75, %76 : vector<5x1xf32>
    %78 = vector.broadcast %77 : vector<5x1xf32> to vector<5x128xf32>
    %79 = arith.subf %69, %78 : vector<5x128xf32>
    %80 = arith.mulf %79, %79 : vector<5x128xf32>
    %cst_43 = arith.constant dense<0.000000e+00> : vector<5xf32>
    %81 = vector.multi_reduction <add>, %80, %cst_43 [1] : vector<5x128xf32> to vector<5xf32>
    %82 = vector.shape_cast %81 : vector<5xf32> to vector<5x1xf32>
    %cst_44 = arith.constant 1.280000e+02 : f32
    %83 = vector.broadcast %cst_44 : f32 to vector<5x1xf32>
    %84 = arith.divf %82, %83 : vector<5x1xf32>
    %85 = vector.broadcast %77 : vector<5x1xf32> to vector<5x128xf32>
    %86 = arith.subf %69, %85 : vector<5x128xf32>
    %cst_45 = arith.constant 9.99999997E-7 : f32
    %87 = vector.broadcast %cst_45 : f32 to vector<5x1xf32>
    %88 = arith.addf %84, %87 : vector<5x1xf32>
    %89 = math.rsqrt %88 : vector<5x1xf32>
    %90 = vector.broadcast %89 : vector<5x1xf32> to vector<5x128xf32>
    %91 = arith.mulf %86, %90 : vector<5x128xf32>
    %92 = vector.broadcast %71 : vector<1x128xf32> to vector<5x128xf32>
    %93 = arith.mulf %91, %92 : vector<5x128xf32>
    %94 = vector.broadcast %73 : vector<1x128xf32> to vector<5x128xf32>
    %95 = arith.addf %93, %94 : vector<5x128xf32>
    %96 = arith.truncf %95 : vector<5x128xf32> to vector<5x128xbf16>
    %c0_46 = arith.constant 0 : index
    %c0_47 = arith.constant 0 : index
    %c0_48 = arith.constant 0 : index
    %97 = vector.load %arg13[%c0_46, %c0_47, %c0_48] : memref<1x128x256xbf16, #tpu.memory_space<vmem>>, vector<1x128x256xbf16>
    %98 = vector.shape_cast %97 : vector<1x128x256xbf16> to vector<128x256xbf16>
    %cst_49 = arith.constant dense<0.000000e+00> : vector<5x256xf32>
    %99 = tpu.matmul %96, %98, %cst_49 {dimension_numbers = #tpu.dot_dimension_numbers<[1], [0], [0], [1], [0, 0, 1, 1], [], []>} : vector<5x128xbf16>, vector<128x256xbf16>, vector<5x256xf32> -> vector<5x256xf32>
    %c0_50 = arith.constant 0 : index
    %c0_51 = arith.constant 0 : index
    %c0_52 = arith.constant 0 : index
    %100 = vector.load %arg14[%c0_50, %c0_51, %c0_52] : memref<1x1x256xf32, #tpu.memory_space<vmem>>, vector<1x1x256xf32>
    %101 = vector.shape_cast %100 : vector<1x1x256xf32> to vector<1x256xf32>
    %102 = vector.broadcast %101 : vector<1x256xf32> to vector<5x256xf32>
    %103 = arith.addf %99, %102 : vector<5x256xf32>
    %cst_53 = arith.constant 5.000000e-01 : f32
    %104 = vector.broadcast %cst_53 : f32 to vector<5x256xf32>
    %105 = arith.mulf %104, %103 : vector<5x256xf32>
    %cst_54 = arith.constant 0.707106769 : f32
    %106 = vector.broadcast %cst_54 : f32 to vector<5x256xf32>
    %107 = arith.mulf %103, %106 : vector<5x256xf32>
    %108 = math.absf %107 : vector<5x256xf32>
    %cst_55 = arith.constant 0.327591091 : f32
    %109 = vector.broadcast %cst_55 : f32 to vector<5x256xf32>
    %110 = arith.mulf %109, %108 : vector<5x256xf32>
    %cst_56 = arith.constant 1.000000e+00 : f32
    %111 = vector.broadcast %cst_56 : f32 to vector<5x256xf32>
    %112 = arith.addf %111, %110 : vector<5x256xf32>
    %cst_57 = arith.constant 1.000000e+00 : f32
    %113 = vector.broadcast %cst_57 : f32 to vector<5x256xf32>
    %114 = arith.divf %113, %112 : vector<5x256xf32>
    %cst_58 = arith.constant 1.06140542 : f32
    %115 = vector.broadcast %cst_58 : f32 to vector<5x256xf32>
    %116 = arith.mulf %114, %115 : vector<5x256xf32>
    %cst_59 = arith.constant -1.45315206 : f32
    %117 = vector.broadcast %cst_59 : f32 to vector<5x256xf32>
    %118 = arith.addf %117, %116 : vector<5x256xf32>
    %119 = arith.mulf %114, %118 : vector<5x256xf32>
    %cst_60 = arith.constant 1.42141378 : f32
    %120 = vector.broadcast %cst_60 : f32 to vector<5x256xf32>
    %121 = arith.addf %120, %119 : vector<5x256xf32>
    %122 = arith.mulf %114, %121 : vector<5x256xf32>
    %cst_61 = arith.constant -0.284496725 : f32
    %123 = vector.broadcast %cst_61 : f32 to vector<5x256xf32>
    %124 = arith.addf %123, %122 : vector<5x256xf32>
    %125 = arith.mulf %114, %124 : vector<5x256xf32>
    %cst_62 = arith.constant 0.254829586 : f32
    %126 = vector.broadcast %cst_62 : f32 to vector<5x256xf32>
    %127 = arith.addf %126, %125 : vector<5x256xf32>
    %128 = arith.mulf %114, %127 : vector<5x256xf32>
    %cst_63 = arith.constant 0.000000e+00 : f32
    %129 = vector.broadcast %cst_63 : f32 to vector<5x256xf32>
    %130 = arith.subf %129, %108 : vector<5x256xf32>
    %131 = arith.mulf %130, %108 : vector<5x256xf32>
    %132 = math.exp %131 : vector<5x256xf32>
    %133 = arith.mulf %128, %132 : vector<5x256xf32>
    %cst_64 = arith.constant 1.000000e+00 : f32
    %134 = vector.broadcast %cst_64 : f32 to vector<5x256xf32>
    %135 = arith.subf %134, %133 : vector<5x256xf32>
    %cst_65 = arith.constant 0.000000e+00 : f32
    %136 = vector.broadcast %cst_65 : f32 to vector<5x256xf32>
    %137 = arith.cmpf oge, %107, %136 : vector<5x256xf32>
    %cst_66 = arith.constant 0.000000e+00 : f32
    %138 = vector.broadcast %cst_66 : f32 to vector<5x256xf32>
    %139 = arith.subf %138, %135 : vector<5x256xf32>
    %140 = arith.select %137, %135, %139 : vector<5x256xi1>, vector<5x256xf32>
    %cst_67 = arith.constant 1.000000e+00 : f32
    %141 = vector.broadcast %cst_67 : f32 to vector<5x256xf32>
    %142 = arith.addf %141, %140 : vector<5x256xf32>
    %143 = arith.mulf %105, %142 : vector<5x256xf32>
    %144 = arith.truncf %143 : vector<5x256xf32> to vector<5x256xbf16>
    %c0_68 = arith.constant 0 : index
    %c0_69 = arith.constant 0 : index
    %c0_70 = arith.constant 0 : index
    %145 = vector.load %arg15[%c0_68, %c0_69, %c0_70] : memref<1x256x128xbf16, #tpu.memory_space<vmem>>, vector<1x256x128xbf16>
    %146 = vector.shape_cast %145 : vector<1x256x128xbf16> to vector<256x128xbf16>
    %cst_71 = arith.constant dense<0.000000e+00> : vector<5x128xf32>
    %147 = tpu.matmul %144, %146, %cst_71 {dimension_numbers = #tpu.dot_dimension_numbers<[1], [0], [0], [1], [0, 0, 1, 1], [], []>} : vector<5x256xbf16>, vector<256x128xbf16>, vector<5x128xf32> -> vector<5x128xf32>
    %c0_72 = arith.constant 0 : index
    %c0_73 = arith.constant 0 : index
    %c0_74 = arith.constant 0 : index
    %148 = vector.load %arg16[%c0_72, %c0_73, %c0_74] : memref<1x1x128xf32, #tpu.memory_space<vmem>>, vector<1x1x128xf32>
    %149 = vector.shape_cast %148 : vector<1x1x128xf32> to vector<1x128xf32>
    %150 = vector.broadcast %149 : vector<1x128xf32> to vector<5x128xf32>
    %151 = arith.addf %147, %150 : vector<5x128xf32>
    %152 = arith.addf %69, %151 : vector<5x128xf32>
    %c0_75 = arith.constant 0 : index
    %c0_76 = arith.constant 0 : index
    %153 = vector.load %arg25[%c0_75, %c0_76] : memref<5x128xf32, #tpu.memory_space<vmem>>, vector<5x128xf32>
    tpu.vector_store %arg25[%c0_75, %c0_76], %152 {strides = array<i32>} : memref<5x128xf32, #tpu.memory_space<vmem>>, vector<5x128xf32>,
    %c1_i32 = arith.constant 1 : i32
    %154 = arith.cmpi eq, %arg1, %c1_i32 : i32
    %155 = arith.extui %154 : i1 to i32
    %c0_i32_77 = arith.constant 0 : i32
    %156 = arith.cmpi ne, %155, %c0_i32_77 : i32
    scf.if %156 {
      %157 = vector.extract_strided_slice %152 {offsets = [0, 0], sizes = [1, 128], strides = [1, 1]} : vector<5x128xf32> to vector<1x128xf32>
      %c0_78 = arith.constant 0 : index
      %c0_79 = arith.constant 0 : index
      %158 = vector.load %arg17[%c0_78, %c0_79] : memref<1x128xf32, #tpu.memory_space<vmem>>, vector<1x128xf32>
      %c0_80 = arith.constant 0 : index
      %c0_81 = arith.constant 0 : index
      %159 = vector.load %arg18[%c0_80, %c0_81] : memref<1x128xf32, #tpu.memory_space<vmem>>, vector<1x128xf32>
      %cst_82 = arith.constant dense<0.000000e+00> : vector<1xf32>
      %160 = vector.multi_reduction <add>, %157, %cst_82 [1] : vector<1x128xf32> to vector<1xf32>
      %161 = vector.shape_cast %160 : vector<1xf32> to vector<1x1xf32>
      %cst_83 = arith.constant 1.280000e+02 : f32
      %162 = vector.broadcast %cst_83 : f32 to vector<1x1xf32>
      %163 = arith.divf %161, %162 : vector<1x1xf32>
      %164 = vector.broadcast %163 : vector<1x1xf32> to vector<1x128xf32>
      %165 = arith.subf %157, %164 : vector<1x128xf32>
      %166 = arith.mulf %165, %165 : vector<1x128xf32>
      %cst_84 = arith.constant dense<0.000000e+00> : vector<1xf32>
      %167 = vector.multi_reduction <add>, %166, %cst_84 [1] : vector<1x128xf32> to vector<1xf32>
      %168 = vector.shape_cast %167 : vector<1xf32> to vector<1x1xf32>
      %cst_85 = arith.constant 1.280000e+02 : f32
      %169 = vector.broadcast %cst_85 : f32 to vector<1x1xf32>
      %170 = arith.divf %168, %169 : vector<1x1xf32>
      %171 = vector.broadcast %163 : vector<1x1xf32> to vector<1x128xf32>
      %172 = arith.subf %157, %171 : vector<1x128xf32>
      %cst_86 = arith.constant 9.99999997E-7 : f32
      %173 = vector.broadcast %cst_86 : f32 to vector<1x1xf32>
      %174 = arith.addf %170, %173 : vector<1x1xf32>
      %175 = math.rsqrt %174 : vector<1x1xf32>
      %176 = vector.broadcast %175 : vector<1x1xf32> to vector<1x128xf32>
      %177 = arith.mulf %172, %176 : vector<1x128xf32>
      %178 = arith.mulf %177, %158 : vector<1x128xf32>
      %179 = arith.addf %178, %159 : vector<1x128xf32>
      %180 = arith.truncf %179 : vector<1x128xf32> to vector<1x128xbf16>
      %c0_87 = arith.constant 0 : index
      %c0_88 = arith.constant 0 : index
      %181 = vector.load %arg19[%c0_87, %c0_88] : memref<128x256xbf16, #tpu.memory_space<vmem>>, vector<128x256xbf16>
      %cst_89 = arith.constant dense<0.000000e+00> : vector<1x256xf32>
      %182 = tpu.matmul %180, %181, %cst_89 {dimension_numbers = #tpu.dot_dimension_numbers<[1], [0], [0], [1], [0, 0, 1, 1], [], []>} : vector<1x128xbf16>, vector<128x256xbf16>, vector<1x256xf32> -> vector<1x256xf32>
      %c0_90 = arith.constant 0 : index
      %c0_91 = arith.constant 0 : index
      %183 = vector.load %arg20[%c0_90, %c0_91] : memref<1x256xf32, #tpu.memory_space<vmem>>, vector<1x256xf32>
      %184 = arith.addf %182, %183 : vector<1x256xf32>
      %cst_92 = arith.constant 0.000000e+00 : f32
      %185 = vector.broadcast %cst_92 : f32 to vector<1x256xf32>
      %186 = arith.cmpf oge, %184, %185 : vector<1x256xf32>
      %cst_93 = arith.constant 0.00999999977 : f32
      %187 = vector.broadcast %cst_93 : f32 to vector<1x256xf32>
      %188 = arith.mulf %187, %184 : vector<1x256xf32>
      %189 = arith.select %186, %184, %188 : vector<1x256xi1>, vector<1x256xf32>
      %190 = arith.truncf %189 : vector<1x256xf32> to vector<1x256xbf16>
      %c0_94 = arith.constant 0 : index
      %c0_95 = arith.constant 0 : index
      %191 = vector.load %arg21[%c0_94, %c0_95] : memref<256x128xbf16, #tpu.memory_space<vmem>>, vector<256x128xbf16>
      %cst_96 = arith.constant dense<0.000000e+00> : vector<1x128xf32>
      %192 = tpu.matmul %190, %191, %cst_96 {dimension_numbers = #tpu.dot_dimension_numbers<[1], [0], [0], [1], [0, 0, 1, 1], [], []>} : vector<1x256xbf16>, vector<256x128xbf16>, vector<1x128xf32> -> vector<1x128xf32>
      %c0_97 = arith.constant 0 : index
      %c0_98 = arith.constant 0 : index
      %193 = vector.load %arg22[%c0_97, %c0_98] : memref<1x128xf32, #tpu.memory_space<vmem>>, vector<1x128xf32>
      %194 = arith.addf %192, %193 : vector<1x128xf32>
      %cst_99 = arith.constant 0.000000e+00 : f32
      %195 = vector.broadcast %cst_99 : f32 to vector<1x128xf32>
      %196 = arith.cmpf oge, %194, %195 : vector<1x128xf32>
      %cst_100 = arith.constant 0.00999999977 : f32
      %197 = vector.broadcast %cst_100 : f32 to vector<1x128xf32>
      %198 = arith.mulf %197, %194 : vector<1x128xf32>
      %199 = arith.select %196, %194, %198 : vector<1x128xi1>, vector<1x128xf32>
      %200 = arith.truncf %199 : vector<1x128xf32> to vector<1x128xbf16>
      %c0_101 = arith.constant 0 : index
      %c0_102 = arith.constant 0 : index
      %201 = vector.load %arg23[%c0_101, %c0_102] : memref<128x128xbf16, #tpu.memory_space<vmem>>, vector<128x128xbf16>
      %cst_103 = arith.constant dense<0.000000e+00> : vector<1x128xf32>
      %202 = tpu.matmul %200, %201, %cst_103 {dimension_numbers = #tpu.dot_dimension_numbers<[1], [0], [0], [1], [0, 0, 1, 1], [], []>} : vector<1x128xbf16>, vector<128x128xbf16>, vector<1x128xf32> -> vector<1x128xf32>
      %203 = vector.shape_cast %202 : vector<1x128xf32> to vector<1x128xf32>
      %204 = vector.broadcast %203 : vector<1x128xf32> to vector<8x128xf32>
      %c0_104 = arith.constant 0 : index
      %c0_105 = arith.constant 0 : index
      %c0_106 = arith.constant 0 : index
      %205 = vector.load %arg24[%c0_104, %c0_105, %c0_106] : memref<1x8x128xf32, #tpu.memory_space<vmem>>, vector<1x8x128xf32>
      %206 = vector.shape_cast %205 : vector<1x8x128xf32> to vector<8x128xf32>
      %207 = vector.shape_cast %204 : vector<8x128xf32> to vector<1x8x128xf32>
      tpu.vector_store %arg24[%c0_104, %c0_105, %c0_106], %207 {strides = array<i32>} : memref<1x8x128xf32, #tpu.memory_space<vmem>>, vector<1x8x128xf32>,
    } else {
    }
    return
  }
  func.func @transform_0(%arg0: i32, %arg1: i32) -> (i32, i32, i32) {
    %c0_i32 = arith.constant 0 : i32
    %c0_i32_0 = arith.constant 0 : i32
    %c0_i32_1 = arith.constant 0 : i32
    return %arg0, %c0_i32, %c0_i32_0 : i32, i32, i32
  }
  func.func @transform_1(%arg0: i32, %arg1: i32) -> (i32, i32) {
    %c0_i32 = arith.constant 0 : i32
    %c0_i32_0 = arith.constant 0 : i32
    %c0_i32_1 = arith.constant 0 : i32
    return %c0_i32, %c0_i32_0 : i32, i32
  }
  func.func @transform_2(%arg0: i32, %arg1: i32) -> (i32, i32) {
    %c0_i32 = arith.constant 0 : i32
    %c0_i32_0 = arith.constant 0 : i32
    %c0_i32_1 = arith.constant 0 : i32
    return %c0_i32, %c0_i32_0 : i32, i32
  }
  func.func @transform_3(%arg0: i32, %arg1: i32) -> (i32, i32, i32) {
    %c0_i32 = arith.constant 0 : i32
    %c0_i32_0 = arith.constant 0 : i32
    %c0_i32_1 = arith.constant 0 : i32
    return %arg1, %c0_i32, %c0_i32_0 : i32, i32, i32
  }
  func.func @transform_4(%arg0: i32, %arg1: i32) -> (i32, i32, i32) {
    %c0_i32 = arith.constant 0 : i32
    %c0_i32_0 = arith.constant 0 : i32
    %c0_i32_1 = arith.constant 0 : i32
    return %arg1, %c0_i32, %c0_i32_0 : i32, i32, i32
  }
  func.func @transform_5(%arg0: i32, %arg1: i32) -> (i32, i32, i32, i32) {
    %c0_i32 = arith.constant 0 : i32
    %c0_i32_0 = arith.constant 0 : i32
    %c0_i32_1 = arith.constant 0 : i32
    %c0_i32_2 = arith.constant 0 : i32
    return %arg1, %c0_i32, %c0_i32_0, %c0_i32_1 : i32, i32, i32, i32
  }
  func.func @transform_6(%arg0: i32, %arg1: i32) -> (i32, i32, i32, i32) {
    %c0_i32 = arith.constant 0 : i32
    %c0_i32_0 = arith.constant 0 : i32
    %c0_i32_1 = arith.constant 0 : i32
    %c0_i32_2 = arith.constant 0 : i32
    return %arg1, %c0_i32, %c0_i32_0, %c0_i32_1 : i32, i32, i32, i32
  }
  func.func @transform_7(%arg0: i32, %arg1: i32) -> (i32, i32, i32, i32) {
    %c0_i32 = arith.constant 0 : i32
    %c0_i32_0 = arith.constant 0 : i32
    %c0_i32_1 = arith.constant 0 : i32
    %c0_i32_2 = arith.constant 0 : i32
    return %arg1, %c0_i32, %c0_i32_0, %c0_i32_1 : i32, i32, i32, i32
  }
  func.func @transform_8(%arg0: i32, %arg1: i32) -> (i32, i32, i32) {
    %c0_i32 = arith.constant 0 : i32
    %c0_i32_0 = arith.constant 0 : i32
    %c0_i32_1 = arith.constant 0 : i32
    return %arg1, %c0_i32, %c0_i32_0 : i32, i32, i32
  }
  func.func @transform_9(%arg0: i32, %arg1: i32) -> (i32, i32, i32) {
    %c0_i32 = arith.constant 0 : i32
    %c0_i32_0 = arith.constant 0 : i32
    %c0_i32_1 = arith.constant 0 : i32
    return %arg1, %c0_i32, %c0_i32_0 : i32, i32, i32
  }
  func.func @transform_10(%arg0: i32, %arg1: i32) -> (i32, i32, i32) {
    %c0_i32 = arith.constant 0 : i32
    %c0_i32_0 = arith.constant 0 : i32
    %c0_i32_1 = arith.constant 0 : i32
    return %arg1, %c0_i32, %c0_i32_0 : i32, i32, i32
  }
  func.func @transform_11(%arg0: i32, %arg1: i32) -> (i32, i32, i32) {
    %c0_i32 = arith.constant 0 : i32
    %c0_i32_0 = arith.constant 0 : i32
    %c0_i32_1 = arith.constant 0 : i32
    return %arg1, %c0_i32, %c0_i32_0 : i32, i32, i32
  }
  func.func @transform_12(%arg0: i32, %arg1: i32) -> (i32, i32, i32) {
    %c0_i32 = arith.constant 0 : i32
    %c0_i32_0 = arith.constant 0 : i32
    %c0_i32_1 = arith.constant 0 : i32
    return %arg1, %c0_i32, %c0_i32_0 : i32, i32, i32
  }
  func.func @transform_13(%arg0: i32, %arg1: i32) -> (i32, i32, i32) {
    %c0_i32 = arith.constant 0 : i32
    %c0_i32_0 = arith.constant 0 : i32
    %c0_i32_1 = arith.constant 0 : i32
    return %arg1, %c0_i32, %c0_i32_0 : i32, i32, i32
  }
  func.func @transform_14(%arg0: i32, %arg1: i32) -> (i32, i32, i32) {
    %c0_i32 = arith.constant 0 : i32
    %c0_i32_0 = arith.constant 0 : i32
    %c0_i32_1 = arith.constant 0 : i32
    return %arg1, %c0_i32, %c0_i32_0 : i32, i32, i32
  }
  func.func @transform_15(%arg0: i32, %arg1: i32) -> (i32, i32) {
    %c0_i32 = arith.constant 0 : i32
    %c0_i32_0 = arith.constant 0 : i32
    %c0_i32_1 = arith.constant 0 : i32
    return %c0_i32, %c0_i32_0 : i32, i32
  }
  func.func @transform_16(%arg0: i32, %arg1: i32) -> (i32, i32) {
    %c0_i32 = arith.constant 0 : i32
    %c0_i32_0 = arith.constant 0 : i32
    %c0_i32_1 = arith.constant 0 : i32
    return %c0_i32, %c0_i32_0 : i32, i32
  }
  func.func @transform_17(%arg0: i32, %arg1: i32) -> (i32, i32) {
    %c0_i32 = arith.constant 0 : i32
    %c0_i32_0 = arith.constant 0 : i32
    %c0_i32_1 = arith.constant 0 : i32
    return %c0_i32, %c0_i32_0 : i32, i32
  }
  func.func @transform_18(%arg0: i32, %arg1: i32) -> (i32, i32) {
    %c0_i32 = arith.constant 0 : i32
    %c0_i32_0 = arith.constant 0 : i32
    %c0_i32_1 = arith.constant 0 : i32
    return %c0_i32, %c0_i32_0 : i32, i32
  }
  func.func @transform_19(%arg0: i32, %arg1: i32) -> (i32, i32) {
    %c0_i32 = arith.constant 0 : i32
    %c0_i32_0 = arith.constant 0 : i32
    %c0_i32_1 = arith.constant 0 : i32
    return %c0_i32, %c0_i32_0 : i32, i32
  }
  func.func @transform_20(%arg0: i32, %arg1: i32) -> (i32, i32) {
    %c0_i32 = arith.constant 0 : i32
    %c0_i32_0 = arith.constant 0 : i32
    %c0_i32_1 = arith.constant 0 : i32
    return %c0_i32, %c0_i32_0 : i32, i32
  }
  func.func @transform_21(%arg0: i32, %arg1: i32) -> (i32, i32) {
    %c0_i32 = arith.constant 0 : i32
    %c0_i32_0 = arith.constant 0 : i32
    %c0_i32_1 = arith.constant 0 : i32
    return %c0_i32, %c0_i32_0 : i32, i32
  }
  func.func @transform_22(%arg0: i32, %arg1: i32) -> (i32, i32, i32) {
    %c0_i32 = arith.constant 0 : i32
    %c0_i32_0 = arith.constant 0 : i32
    %c0_i32_1 = arith.constant 0 : i32
    return %arg0, %c0_i32, %c0_i32_0 : i32, i32, i32
  }
}

</mosaic_0001>

<llo_original>
// kernel: vit_forward.1
$region0: #{vit_forward.1}
  #allocation0 [shape = 'u32[]', space=smem, size = 0x4, offset = 0x4, fixed_abs, tag = 'smem constant byte address 0x4 - core index']
  #allocation1 [shape = 'u32[144,128]{1,0:T(1,128)}', space=vmem, size = 0x12000, scoped, tag = 'internal scratch']
  #allocation2 [shape = 'f32[5,128]{1,0:T(8,128)}', space=vmem, size = 0x1000, scoped, tag = 'scratch operand']
  %s0 = inlined_call_operand.vmem [shape: f32[2,5,3072], index: 0, kind: input, shape index: {}]
  %s1 = inlined_call_operand.vmem [shape: bf16[3072,128], index: 1, kind: input, shape index: {}]
  %s2 = inlined_call_operand.vmem [shape: f32[5,128], index: 2, kind: input, shape index: {}]
  %s3 = inlined_call_operand.vmem [shape: f32[2,1,128], index: 3, kind: input, shape index: {}]
  %s4 = inlined_call_operand.vmem [shape: f32[2,1,128], index: 4, kind: input, shape index: {}]
  %s5 = inlined_call_operand.vmem [shape: bf16[2,4,128,96], index: 5, kind: input, shape index: {}]
  %s6 = inlined_call_operand.vmem [shape: f32[2,4,1,96], index: 6, kind: input, shape index: {}]
  %s7 = inlined_call_operand.vmem [shape: bf16[2,4,32,128], index: 7, kind: input, shape index: {}]
  %s8 = inlined_call_operand.vmem [shape: f32[2,1,128], index: 8, kind: input, shape index: {}]
  %s9 = inlined_call_operand.vmem [shape: f32[2,1,128], index: 9, kind: input, shape index: {}]
  %s10 = inlined_call_operand.vmem [shape: f32[2,1,128], index: 10, kind: input, shape index: {}]
  %s11 = inlined_call_operand.vmem [shape: bf16[2,128,256], index: 11, kind: input, shape index: {}]
  %s12 = inlined_call_operand.vmem [shape: f32[2,1,256], index: 12, kind: input, shape index: {}]
  %s13 = inlined_call_operand.vmem [shape: bf16[2,256,128], index: 13, kind: input, shape index: {}]
  %s14 = inlined_call_operand.vmem [shape: f32[2,1,128], index: 14, kind: input, shape index: {}]
  %s15 = inlined_call_operand.vmem [shape: f32[1,128], index: 15, kind: input, shape index: {}]
  %s16 = inlined_call_operand.vmem [shape: f32[1,128], index: 16, kind: input, shape index: {}]
  %s17 = inlined_call_operand.vmem [shape: bf16[128,256], index: 17, kind: input, shape index: {}]
  %s18 = inlined_call_operand.vmem [shape: f32[1,256], index: 18, kind: input, shape index: {}]
  %s19 = inlined_call_operand.vmem [shape: bf16[256,128], index: 19, kind: input, shape index: {}]
  %s20 = inlined_call_operand.vmem [shape: f32[1,128], index: 20, kind: input, shape index: {}]
  %s21 = inlined_call_operand.vmem [shape: bf16[128,128], index: 21, kind: input, shape index: {}]
  %s22 = inlined_call_operand.vmem [shape: f32[2,8,128], index: 22, kind: output, shape index: {}]
  %s23 = sld [smem:[#allocation0]]
  $region129: #{vit_forward.1} parent=0
    _
  %s25 = ssub.s32 1, %s23
  %s26 = scalar_select 0, %s25, %s23
  loop: start=0, step=1, limit=6
  $region2: #{vit_forward.1} parent=0 // loop_pre_header
    _
  $region3: #{vit_forward.1} parent=0 // loop_header
    %s28 = sphi 0, %s32
    %p29 = scmp.ge.s32.totalorder %s28, 6
    %s35 = sphi 0, %s47
    %s36 = sphi 0, %s43
    %s37 = sphi 0, %s35
    %s38 = sphi 0, %s36
    %s39 = sphi 0, %s37
    %s40 = sphi 0, %s38
    %s50 = sphi 0, %s52
    %s53 = sphi 0, %s50
    %s54 = sphi 0, %s53
    %s70 = sphi 0, %s54
    %s74 = sphi 0, %s74
    %s76 = sphi 0, %s74
    %s77 = sphi 0, %s76
    %s91 = sphi 0, %s77
    %s95 = sphi 0, %s95
    %s97 = sphi 0, %s95
    %s98 = sphi 0, %s97
    %s112 = sphi 0, %s98
    %s118 = sphi 0, %s120
    %s121 = sphi 0, %s118
    %s122 = sphi 0, %s121
    %s138 = sphi 0, %s122
    %s144 = sphi 0, %s146
    %s147 = sphi 0, %s144
    %s148 = sphi 0, %s147
    %s164 = sphi 0, %s148
    %s170 = sphi 0, %s172
    %s173 = sphi 0, %s170
    %s174 = sphi 0, %s173
    %s190 = sphi 0, %s174
    %s196 = sphi 0, %s198
    %s199 = sphi 0, %s196
    %s200 = sphi 0, %s199
    %s216 = sphi 0, %s200
    %s222 = sphi 0, %s224
    %s225 = sphi 0, %s222
    %s226 = sphi 0, %s225
    %s242 = sphi 0, %s226
    %s248 = sphi 0, %s250
    %s251 = sphi 0, %s248
    %s252 = sphi 0, %s251
    %s268 = sphi 0, %s252
    %s274 = sphi 0, %s276
    %s277 = sphi 0, %s274
    %s278 = sphi 0, %s277
    %s294 = sphi 0, %s278
    %s300 = sphi 0, %s302
    %s303 = sphi 0, %s300
    %s304 = sphi 0, %s303
    %s320 = sphi 0, %s304
    %s326 = sphi 0, %s328
    %s329 = sphi 0, %s326
    %s330 = sphi 0, %s329
    %s346 = sphi 0, %s330
    %s352 = sphi 0, %s354
    %s355 = sphi 0, %s352
    %s356 = sphi 0, %s355
    %s372 = sphi 0, %s356
    %s378 = sphi 0, %s380
    %s381 = sphi 0, %s378
    %s382 = sphi 0, %s381
    %s398 = sphi 0, %s382
    %s404 = sphi 0, %s406
    %s407 = sphi 0, %s404
    %s408 = sphi 0, %s407
    %s424 = sphi 0, %s408
    %s428 = sphi 0, %s428
    %s430 = sphi 0, %s428
    %s431 = sphi 0, %s430
    %s445 = sphi 0, %s431
    %s449 = sphi 0, %s449
    %s451 = sphi 0, %s449
    %s452 = sphi 0, %s451
    %s466 = sphi 0, %s452
    %s470 = sphi 0, %s470
    %s472 = sphi 0, %s470
    %s473 = sphi 0, %s472
    %s487 = sphi 0, %s473
    %s491 = sphi 0, %s491
    %s493 = sphi 0, %s491
    %s494 = sphi 0, %s493
    %s508 = sphi 0, %s494
    %s512 = sphi 0, %s512
    %s514 = sphi 0, %s512
    %s515 = sphi 0, %s514
    %s529 = sphi 0, %s515
    %s533 = sphi 0, %s533
    %s535 = sphi 0, %s533
    %s536 = sphi 0, %s535
    %s550 = sphi 0, %s536
    %s554 = sphi 0, %s554
    %s556 = sphi 0, %s554
    %s557 = sphi 0, %s556
    %s571 = sphi 0, %s557
    %s577 = sphi 0, %s579
    %s580 = sphi 0, %s577
    %s581 = sphi 0, %s580
    %s597 = sphi 0, %s581
  $region4: #{vit_forward.1} parent=0 // loop_header_branch
    %31 = sbr.rel (%p29) target = $region8
  $region5: #{vit_forward.1} parent=0 // loop_body
    %s33 = ssub.s32 %s28, 1
    %s34 = ssub.s32 %s28, 2
    %s41 = sadd.s32 1, %s36
    %p42 = scmp.ge.s32.totalorder %s41, 2
    %s43 = scalar_select %p42, 0, %s41
    %s44 = sadd.s32 1, %s35
    %s45 = scalar_select %p42, %s44, %s35
    %p46 = scmp.ge.s32.totalorder %s45, 2
    %s47 = scalar_select %p46, 0, %s45
    %s48 = ssub.s32 %s35, %s47
    %p49 = scmp.eq.s32.totalorder %s48, 0
    %s51 = sadd.s32 %s50, 1
    %s52 = scalar_select %p49, %s50, %s51
    %p55 = pneg %p49
    %p56 = scmp.eq.s32.totalorder %s28, 3
    %p57 = por %p55, %p56
    %p58 = scmp.ne.s32.totalorder %s50, %s53
    %p59 = scmp.eq.s32.totalorder %s28, 0
    %p60 = por %p58, %p59
    %p61 = scmp.ne.s32.totalorder %s50, %s53
    %p62 = scmp.eq.s32.totalorder %s33, 3
    %p63 = por %p61, %p62
    %p64 = scmp.ne.s32.totalorder %s53, %s54
    %p65 = scmp.eq.s32.totalorder %s33, 0
    %p66 = por %p64, %p65
    %p67 = scmp.ne.s32.totalorder %s53, %s54
    %p68 = scmp.eq.s32.totalorder %s34, 3
    %p69 = por %p67, %p68
    %p71 = scmp.ne.s32.totalorder %s54, %s70
    %p72 = scmp.eq.s32.totalorder %s34, 0
    %p73 = por %p71, %p72
    %s75 = sadd.s32 %s74, 1
    %p78 = scmp.eq.s32.totalorder %s28, 3
    %p79 = scmp.ne.s32.totalorder %s74, %s76
    %p80 = scmp.eq.s32.totalorder %s28, 0
    %p81 = por %p79, %p80
    %p82 = scmp.ne.s32.totalorder %s74, %s76
    %p83 = scmp.eq.s32.totalorder %s33, 3
    %p84 = por %p82, %p83
    %p85 = scmp.ne.s32.totalorder %s76, %s77
    %p86 = scmp.eq.s32.totalorder %s33, 0
    %p87 = por %p85, %p86
    %p88 = scmp.ne.s32.totalorder %s76, %s77
    %p89 = scmp.eq.s32.totalorder %s34, 3
    %p90 = por %p88, %p89
    %p92 = scmp.ne.s32.totalorder %s77, %s91
    %p93 = scmp.eq.s32.totalorder %s34, 0
    %p94 = por %p92, %p93
    %s96 = sadd.s32 %s95, 1
    %p99 = scmp.eq.s32.totalorder %s28, 3
    %p100 = scmp.ne.s32.totalorder %s95, %s97
    %p101 = scmp.eq.s32.totalorder %s28, 0
    %p102 = por %p100, %p101
    %p103 = scmp.ne.s32.totalorder %s95, %s97
    %p104 = scmp.eq.s32.totalorder %s33, 3
    %p105 = por %p103, %p104
    %p106 = scmp.ne.s32.totalorder %s97, %s98
    %p107 = scmp.eq.s32.totalorder %s33, 0
    %p108 = por %p106, %p107
    %p109 = scmp.ne.s32.totalorder %s97, %s98
    %p110 = scmp.eq.s32.totalorder %s34, 3
    %p111 = por %p109, %p110
    %p113 = scmp.ne.s32.totalorder %s98, %s112
    %p114 = scmp.eq.s32.totalorder %s34, 0
    %p115 = por %p113, %p114
    %s116 = ssub.s32 %s36, %s43
    %p117 = scmp.eq.s32.totalorder %s116, 0
    %s119 = sadd.s32 %s118, 1
    %s120 = scalar_select %p117, %s118, %s119
    %p123 = pneg %p117
    %p124 = scmp.eq.s32.totalorder %s28, 3
    %p125 = por %p123, %p124
    %p126 = scmp.ne.s32.totalorder %s118, %s121
    %p127 = scmp.eq.s32.totalorder %s28, 0
    %p128 = por %p126, %p127
    %p129 = scmp.ne.s32.totalorder %s118, %s121
    %p130 = scmp.eq.s32.totalorder %s33, 3
    %p131 = por %p129, %p130
    %p132 = scmp.ne.s32.totalorder %s121, %s122
    %p133 = scmp.eq.s32.totalorder %s33, 0
    %p134 = por %p132, %p133
    %p135 = scmp.ne.s32.totalorder %s121, %s122
    %p136 = scmp.eq.s32.totalorder %s34, 3
    %p137 = por %p135, %p136
    %p139 = scmp.ne.s32.totalorder %s122, %s138
    %p140 = scmp.eq.s32.totalorder %s34, 0
    %p141 = por %p139, %p140
    %s142 = ssub.s32 %s36, %s43
    %p143 = scmp.eq.s32.totalorder %s142, 0
    %s145 = sadd.s32 %s144, 1
    %s146 = scalar_select %p143, %s144, %s145
    %p149 = pneg %p143
    %p150 = scmp.eq.s32.totalorder %s28, 3
    %p151 = por %p149, %p150
    %p152 = scmp.ne.s32.totalorder %s144, %s147
    %p153 = scmp.eq.s32.totalorder %s28, 0
    %p154 = por %p152, %p153
    %p155 = scmp.ne.s32.totalorder %s144, %s147
    %p156 = scmp.eq.s32.totalorder %s33, 3
    %p157 = por %p155, %p156
    %p158 = scmp.ne.s32.totalorder %s147, %s148
    %p159 = scmp.eq.s32.totalorder %s33, 0
    %p160 = por %p158, %p159
    %p161 = scmp.ne.s32.totalorder %s147, %s148
    %p162 = scmp.eq.s32.totalorder %s34, 3
    %p163 = por %p161, %p162
    %p165 = scmp.ne.s32.totalorder %s148, %s164
    %p166 = scmp.eq.s32.totalorder %s34, 0
    %p167 = por %p165, %p166
    %s168 = ssub.s32 %s36, %s43
    %p169 = scmp.eq.s32.totalorder %s168, 0
    %s171 = sadd.s32 %s170, 1
    %s172 = scalar_select %p169, %s170, %s171
    %p175 = pneg %p169
    %p176 = scmp.eq.s32.totalorder %s28, 3
    %p177 = por %p175, %p176
    %p178 = scmp.ne.s32.totalorder %s170, %s173
    %p179 = scmp.eq.s32.totalorder %s28, 0
    %p180 = por %p178, %p179
    %p181 = scmp.ne.s32.totalorder %s170, %s173
    %p182 = scmp.eq.s32.totalorder %s33, 3
    %p183 = por %p181, %p182
    %p184 = scmp.ne.s32.totalorder %s173, %s174
    %p185 = scmp.eq.s32.totalorder %s33, 0
    %p186 = por %p184, %p185
    %p187 = scmp.ne.s32.totalorder %s173, %s174
    %p188 = scmp.eq.s32.totalorder %s34, 3
    %p189 = por %p187, %p188
    %p191 = scmp.ne.s32.totalorder %s174, %s190
    %p192 = scmp.eq.s32.totalorder %s34, 0
    %p193 = por %p191, %p192
    %s194 = ssub.s32 %s36, %s43
    %p195 = scmp.eq.s32.totalorder %s194, 0
    %s197 = sadd.s32 %s196, 1
    %s198 = scalar_select %p195, %s196, %s197
    %p201 = pneg %p195
    %p202 = scmp.eq.s32.totalorder %s28, 3
    %p203 = por %p201, %p202
    %p204 = scmp.ne.s32.totalorder %s196, %s199
    %p205 = scmp.eq.s32.totalorder %s28, 0
    %p206 = por %p204, %p205
    %p207 = scmp.ne.s32.totalorder %s196, %s199
    %p208 = scmp.eq.s32.totalorder %s33, 3
    %p209 = por %p207, %p208
    %p210 = scmp.ne.s32.totalorder %s199, %s200
    %p211 = scmp.eq.s32.totalorder %s33, 0
    %p212 = por %p210, %p211
    %p213 = scmp.ne.s32.totalorder %s199, %s200
    %p214 = scmp.eq.s32.totalorder %s34, 3
    %p215 = por %p213, %p214
    %p217 = scmp.ne.s32.totalorder %s200, %s216
    %p218 = scmp.eq.s32.totalorder %s34, 0
    %p219 = por %p217, %p218
    %s220 = ssub.s32 %s36, %s43
    %p221 = scmp.eq.s32.totalorder %s220, 0
    %s223 = sadd.s32 %s222, 1
    %s224 = scalar_select %p221, %s222, %s223
    %p227 = pneg %p221
    %p228 = scmp.eq.s32.totalorder %s28, 3
    %p229 = por %p227, %p228
    %p230 = scmp.ne.s32.totalorder %s222, %s225
    %p231 = scmp.eq.s32.totalorder %s28, 0
    %p232 = por %p230, %p231
    %p233 = scmp.ne.s32.totalorder %s222, %s225
    %p234 = scmp.eq.s32.totalorder %s33, 3
    %p235 = por %p233, %p234
    %p236 = scmp.ne.s32.totalorder %s225, %s226
    %p237 = scmp.eq.s32.totalorder %s33, 0
    %p238 = por %p236, %p237
    %p239 = scmp.ne.s32.totalorder %s225, %s226
    %p240 = scmp.eq.s32.totalorder %s34, 3
    %p241 = por %p239, %p240
    %p243 = scmp.ne.s32.totalorder %s226, %s242
    %p244 = scmp.eq.s32.totalorder %s34, 0
    %p245 = por %p243, %p244
    %s246 = ssub.s32 %s36, %s43
    %p247 = scmp.eq.s32.totalorder %s246, 0
    %s249 = sadd.s32 %s248, 1
    %s250 = scalar_select %p247, %s248, %s249
    %p253 = pneg %p247
    %p254 = scmp.eq.s32.totalorder %s28, 3
    %p255 = por %p253, %p254
    %p256 = scmp.ne.s32.totalorder %s248, %s251
    %p257 = scmp.eq.s32.totalorder %s28, 0
    %p258 = por %p256, %p257
    %p259 = scmp.ne.s32.totalorder %s248, %s251
    %p260 = scmp.eq.s32.totalorder %s33, 3
    %p261 = por %p259, %p260
    %p262 = scmp.ne.s32.totalorder %s251, %s252
    %p263 = scmp.eq.s32.totalorder %s33, 0
    %p264 = por %p262, %p263
    %p265 = scmp.ne.s32.totalorder %s251, %s252
    %p266 = scmp.eq.s32.totalorder %s34, 3
    %p267 = por %p265, %p266
    %p269 = scmp.ne.s32.totalorder %s252, %s268
    %p270 = scmp.eq.s32.totalorder %s34, 0
    %p271 = por %p269, %p270
    %s272 = ssub.s32 %s36, %s43
    %p273 = scmp.eq.s32.totalorder %s272, 0
    %s275 = sadd.s32 %s274, 1
    %s276 = scalar_select %p273, %s274, %s275
    %p279 = pneg %p273
    %p280 = scmp.eq.s32.totalorder %s28, 3
    %p281 = por %p279, %p280
    %p282 = scmp.ne.s32.totalorder %s274, %s277
    %p283 = scmp.eq.s32.totalorder %s28, 0
    %p284 = por %p282, %p283
    %p285 = scmp.ne.s32.totalorder %s274, %s277
    %p286 = scmp.eq.s32.totalorder %s33, 3
    %p287 = por %p285, %p286
    %p288 = scmp.ne.s32.totalorder %s277, %s278
    %p289 = scmp.eq.s32.totalorder %s33, 0
    %p290 = por %p288, %p289
    %p291 = scmp.ne.s32.totalorder %s277, %s278
    %p292 = scmp.eq.s32.totalorder %s34, 3
    %p293 = por %p291, %p292
    %p295 = scmp.ne.s32.totalorder %s278, %s294
    %p296 = scmp.eq.s32.totalorder %s34, 0
    %p297 = por %p295, %p296
    %s298 = ssub.s32 %s36, %s43
    %p299 = scmp.eq.s32.totalorder %s298, 0
    %s301 = sadd.s32 %s300, 1
    %s302 = scalar_select %p299, %s300, %s301
    %p305 = pneg %p299
    %p306 = scmp.eq.s32.totalorder %s28, 3
    %p307 = por %p305, %p306
    %p308 = scmp.ne.s32.totalorder %s300, %s303
    %p309 = scmp.eq.s32.totalorder %s28, 0
    %p310 = por %p308, %p309
    %p311 = scmp.ne.s32.totalorder %s300, %s303
    %p312 = scmp.eq.s32.totalorder %s33, 3
    %p313 = por %p311, %p312
    %p314 = scmp.ne.s32.totalorder %s303, %s304
    %p315 = scmp.eq.s32.totalorder %s33, 0
    %p316 = por %p314, %p315
    %p317 = scmp.ne.s32.totalorder %s303, %s304
    %p318 = scmp.eq.s32.totalorder %s34, 3
    %p319 = por %p317, %p318
    %p321 = scmp.ne.s32.totalorder %s304, %s320
    %p322 = scmp.eq.s32.totalorder %s34, 0
    %p323 = por %p321, %p322
    %s324 = ssub.s32 %s36, %s43
    %p325 = scmp.eq.s32.totalorder %s324, 0
    %s327 = sadd.s32 %s326, 1
    %s328 = scalar_select %p325, %s326, %s327
    %p331 = pneg %p325
    %p332 = scmp.eq.s32.totalorder %s28, 3
    %p333 = por %p331, %p332
    %p334 = scmp.ne.s32.totalorder %s326, %s329
    %p335 = scmp.eq.s32.totalorder %s28, 0
    %p336 = por %p334, %p335
    %p337 = scmp.ne.s32.totalorder %s326, %s329
    %p338 = scmp.eq.s32.totalorder %s33, 3
    %p339 = por %p337, %p338
    %p340 = scmp.ne.s32.totalorder %s329, %s330
    %p341 = scmp.eq.s32.totalorder %s33, 0
    %p342 = por %p340, %p341
    %p343 = scmp.ne.s32.totalorder %s329, %s330
    %p344 = scmp.eq.s32.totalorder %s34, 3
    %p345 = por %p343, %p344
    %p347 = scmp.ne.s32.totalorder %s330, %s346
    %p348 = scmp.eq.s32.totalorder %s34, 0
    %p349 = por %p347, %p348
    %s350 = ssub.s32 %s36, %s43
    %p351 = scmp.eq.s32.totalorder %s350, 0
    %s353 = sadd.s32 %s352, 1
    %s354 = scalar_select %p351, %s352, %s353
    %p357 = pneg %p351
    %p358 = scmp.eq.s32.totalorder %s28, 3
    %p359 = por %p357, %p358
    %p360 = scmp.ne.s32.totalorder %s352, %s355
    %p361 = scmp.eq.s32.totalorder %s28, 0
    %p362 = por %p360, %p361
    %p363 = scmp.ne.s32.totalorder %s352, %s355
    %p364 = scmp.eq.s32.totalorder %s33, 3
    %p365 = por %p363, %p364
    %p366 = scmp.ne.s32.totalorder %s355, %s356
    %p367 = scmp.eq.s32.totalorder %s33, 0
    %p368 = por %p366, %p367
    %p369 = scmp.ne.s32.totalorder %s355, %s356
    %p370 = scmp.eq.s32.totalorder %s34, 3
    %p371 = por %p369, %p370
    %p373 = scmp.ne.s32.totalorder %s356, %s372
    %p374 = scmp.eq.s32.totalorder %s34, 0
    %p375 = por %p373, %p374
    %s376 = ssub.s32 %s36, %s43
    %p377 = scmp.eq.s32.totalorder %s376, 0
    %s379 = sadd.s32 %s378, 1
    %s380 = scalar_select %p377, %s378, %s379
    %p383 = pneg %p377
    %p384 = scmp.eq.s32.totalorder %s28, 3
    %p385 = por %p383, %p384
    %p386 = scmp.ne.s32.totalorder %s378, %s381
    %p387 = scmp.eq.s32.totalorder %s28, 0
    %p388 = por %p386, %p387
    %p389 = scmp.ne.s32.totalorder %s378, %s381
    %p390 = scmp.eq.s32.totalorder %s33, 3
    %p391 = por %p389, %p390
    %p392 = scmp.ne.s32.totalorder %s381, %s382
    %p393 = scmp.eq.s32.totalorder %s33, 0
    %p394 = por %p392, %p393
    %p395 = scmp.ne.s32.totalorder %s381, %s382
    %p396 = scmp.eq.s32.totalorder %s34, 3
    %p397 = por %p395, %p396
    %p399 = scmp.ne.s32.totalorder %s382, %s398
    %p400 = scmp.eq.s32.totalorder %s34, 0
    %p401 = por %p399, %p400
    %s402 = ssub.s32 %s36, %s43
    %p403 = scmp.eq.s32.totalorder %s402, 0
    %s405 = sadd.s32 %s404, 1
    %s406 = scalar_select %p403, %s404, %s405
    %p409 = pneg %p403
    %p410 = scmp.eq.s32.totalorder %s28, 3
    %p411 = por %p409, %p410
    %p412 = scmp.ne.s32.totalorder %s404, %s407
    %p413 = scmp.eq.s32.totalorder %s28, 0
    %p414 = por %p412, %p413
    %p415 = scmp.ne.s32.totalorder %s404, %s407
    %p416 = scmp.eq.s32.totalorder %s33, 3
    %p417 = por %p415, %p416
    %p418 = scmp.ne.s32.totalorder %s407, %s408
    %p419 = scmp.eq.s32.totalorder %s33, 0
    %p420 = por %p418, %p419
    %p421 = scmp.ne.s32.totalorder %s407, %s408
    %p422 = scmp.eq.s32.totalorder %s34, 3
    %p423 = por %p421, %p422
    %p425 = scmp.ne.s32.totalorder %s408, %s424
    %p426 = scmp.eq.s32.totalorder %s34, 0
    %p427 = por %p425, %p426
    %s429 = sadd.s32 %s428, 1
    %p432 = scmp.eq.s32.totalorder %s28, 3
    %p433 = scmp.ne.s32.totalorder %s428, %s430
    %p434 = scmp.eq.s32.totalorder %s28, 0
    %p435 = por %p433, %p434
    %p436 = scmp.ne.s32.totalorder %s428, %s430
    %p437 = scmp.eq.s32.totalorder %s33, 3
    %p438 = por %p436, %p437
    %p439 = scmp.ne.s32.totalorder %s430, %s431
    %p440 = scmp.eq.s32.totalorder %s33, 0
    %p441 = por %p439, %p440
    %p442 = scmp.ne.s32.totalorder %s430, %s431
    %p443 = scmp.eq.s32.totalorder %s34, 3
    %p444 = por %p442, %p443
    %p446 = scmp.ne.s32.totalorder %s431, %s445
    %p447 = scmp.eq.s32.totalorder %s34, 0
    %p448 = por %p446, %p447
    %s450 = sadd.s32 %s449, 1
    %p453 = scmp.eq.s32.totalorder %s28, 3
    %p454 = scmp.ne.s32.totalorder %s449, %s451
    %p455 = scmp.eq.s32.totalorder %s28, 0
    %p456 = por %p454, %p455
    %p457 = scmp.ne.s32.totalorder %s449, %s451
    %p458 = scmp.eq.s32.totalorder %s33, 3
    %p459 = por %p457, %p458
    %p460 = scmp.ne.s32.totalorder %s451, %s452
    %p461 = scmp.eq.s32.totalorder %s33, 0
    %p462 = por %p460, %p461
    %p463 = scmp.ne.s32.totalorder %s451, %s452
    %p464 = scmp.eq.s32.totalorder %s34, 3
    %p465 = por %p463, %p464
    %p467 = scmp.ne.s32.totalorder %s452, %s466
    %p468 = scmp.eq.s32.totalorder %s34, 0
    %p469 = por %p467, %p468
    %s471 = sadd.s32 %s470, 1
    %p474 = scmp.eq.s32.totalorder %s28, 3
    %p475 = scmp.ne.s32.totalorder %s470, %s472
    %p476 = scmp.eq.s32.totalorder %s28, 0
    %p477 = por %p475, %p476
    %p478 = scmp.ne.s32.totalorder %s470, %s472
    %p479 = scmp.eq.s32.totalorder %s33, 3
    %p480 = por %p478, %p479
    %p481 = scmp.ne.s32.totalorder %s472, %s473
    %p482 = scmp.eq.s32.totalorder %s33, 0
    %p483 = por %p481, %p482
    %p484 = scmp.ne.s32.totalorder %s472, %s473
    %p485 = scmp.eq.s32.totalorder %s34, 3
    %p486 = por %p484, %p485
    %p488 = scmp.ne.s32.totalorder %s473, %s487
    %p489 = scmp.eq.s32.totalorder %s34, 0
    %p490 = por %p488, %p489
    %s492 = sadd.s32 %s491, 1
    %p495 = scmp.eq.s32.totalorder %s28, 3
    %p496 = scmp.ne.s32.totalorder %s491, %s493
    %p497 = scmp.eq.s32.totalorder %s28, 0
    %p498 = por %p496, %p497
    %p499 = scmp.ne.s32.totalorder %s491, %s493
    %p500 = scmp.eq.s32.totalorder %s33, 3
    %p501 = por %p499, %p500
    %p502 = scmp.ne.s32.totalorder %s493, %s494
    %p503 = scmp.eq.s32.totalorder %s33, 0
    %p504 = por %p502, %p503
    %p505 = scmp.ne.s32.totalorder %s493, %s494
    %p506 = scmp.eq.s32.totalorder %s34, 3
    %p507 = por %p505, %p506
    %p509 = scmp.ne.s32.totalorder %s494, %s508
    %p510 = scmp.eq.s32.totalorder %s34, 0
    %p511 = por %p509, %p510
    %s513 = sadd.s32 %s512, 1
    %p516 = scmp.eq.s32.totalorder %s28, 3
    %p517 = scmp.ne.s32.totalorder %s512, %s514
    %p518 = scmp.eq.s32.totalorder %s28, 0
    %p519 = por %p517, %p518
    %p520 = scmp.ne.s32.totalorder %s512, %s514
    %p521 = scmp.eq.s32.totalorder %s33, 3
    %p522 = por %p520, %p521
    %p523 = scmp.ne.s32.totalorder %s514, %s515
    %p524 = scmp.eq.s32.totalorder %s33, 0
    %p525 = por %p523, %p524
    %p526 = scmp.ne.s32.totalorder %s514, %s515
    %p527 = scmp.eq.s32.totalorder %s34, 3
    %p528 = por %p526, %p527
    %p530 = scmp.ne.s32.totalorder %s515, %s529
    %p531 = scmp.eq.s32.totalorder %s34, 0
    %p532 = por %p530, %p531
    %s534 = sadd.s32 %s533, 1
    %p537 = scmp.eq.s32.totalorder %s28, 3
    %p538 = scmp.ne.s32.totalorder %s533, %s535
    %p539 = scmp.eq.s32.totalorder %s28, 0
    %p540 = por %p538, %p539
    %p541 = scmp.ne.s32.totalorder %s533, %s535
    %p542 = scmp.eq.s32.totalorder %s33, 3
    %p543 = por %p541, %p542
    %p544 = scmp.ne.s32.totalorder %s535, %s536
    %p545 = scmp.eq.s32.totalorder %s33, 0
    %p546 = por %p544, %p545
    %p547 = scmp.ne.s32.totalorder %s535, %s536
    %p548 = scmp.eq.s32.totalorder %s34, 3
    %p549 = por %p547, %p548
    %p551 = scmp.ne.s32.totalorder %s536, %s550
    %p552 = scmp.eq.s32.totalorder %s34, 0
    %p553 = por %p551, %p552
    %s555 = sadd.s32 %s554, 1
    %p558 = scmp.eq.s32.totalorder %s28, 3
    %p559 = scmp.ne.s32.totalorder %s554, %s556
    %p560 = scmp.eq.s32.totalorder %s28, 0
    %p561 = por %p559, %p560
    %p562 = scmp.ne.s32.totalorder %s554, %s556
    %p563 = scmp.eq.s32.totalorder %s33, 3
    %p564 = por %p562, %p563
    %p565 = scmp.ne.s32.totalorder %s556, %s557
    %p566 = scmp.eq.s32.totalorder %s33, 0
    %p567 = por %p565, %p566
    %p568 = scmp.ne.s32.totalorder %s556, %s557
    %p569 = scmp.eq.s32.totalorder %s34, 3
    %p570 = por %p568, %p569
    %p572 = scmp.ne.s32.totalorder %s557, %s571
    %p573 = scmp.eq.s32.totalorder %s34, 0
    %p574 = por %p572, %p573
    %s575 = ssub.s32 %s35, %s47
    %p576 = scmp.eq.s32.totalorder %s575, 0
    %s578 = sadd.s32 %s577, 1
    %s579 = scalar_select %p576, %s577, %s578
    %p582 = pneg %p576
    %p583 = scmp.eq.s32.totalorder %s28, 3
    %p584 = por %p582, %p583
    %p585 = scmp.ne.s32.totalorder %s577, %s580
    %p586 = scmp.eq.s32.totalorder %s28, 0
    %p587 = por %p585, %p586
    %p588 = scmp.ne.s32.totalorder %s577, %s580
    %p589 = scmp.eq.s32.totalorder %s33, 3
    %p590 = por %p588, %p589
    %p591 = scmp.ne.s32.totalorder %s580, %s581
    %p592 = scmp.eq.s32.totalorder %s33, 0
    %p593 = por %p591, %p592
    %p594 = scmp.ne.s32.totalorder %s580, %s581
    %p595 = scmp.eq.s32.totalorder %s34, 3
    %p596 = por %p594, %p595
    %p598 = scmp.ne.s32.totalorder %s581, %s597
    %p599 = scmp.eq.s32.totalorder %s34, 0
    %p600 = por %p598, %p599
    %p601 = scmp.le.s32.totalorder 1, %s28
    %p602 = scmp.lt.s32.totalorder %s28, 5
    %p603 = pnand %p601, %p602
    %p604 = pneg %p603
    // Predicated region
    $region9: #{vit_forward.1} parent=5 // pred_check
      _
    $region10: #{vit_forward.1} parent=5 // pred_check_branch
      %606 = sbr.rel (%p603) target = $region12
    $region11: #{vit_forward.1} parent=5 // pred_region
      %s607 = ssub.s32 %s28, 1
      // Predicated region
      $region13: #{vit_forward.1} parent=11 // pred_check
        %p608 = pneg %p87
      $region14: #{vit_forward.1} parent=11 // pred_check_branch
        %610 = sbr.rel (%p608) target = $region16
      $region15: #{vit_forward.1} parent=11 // pred_region
        _
      $region16: #{vit_forward.1} parent=11 // pred_fallthru
        _
      // Predicated region
      $region17: #{vit_forward.1} parent=11 // pred_check
        %p611 = pneg %p108
      $region18: #{vit_forward.1} parent=11 // pred_check_branch
        %613 = sbr.rel (%p611) target = $region20
      $region19: #{vit_forward.1} parent=11 // pred_region
        _
      $region20: #{vit_forward.1} parent=11 // pred_fallthru
        _
      // Predicated region
      $region21: #{vit_forward.1} parent=11 // pred_check
        %p614 = pneg %p441
      $region22: #{vit_forward.1} parent=11 // pred_check_branch
        %616 = sbr.rel (%p614) target = $region24
      $region23: #{vit_forward.1} parent=11 // pred_region
        _
      $region24: #{vit_forward.1} parent=11 // pred_fallthru
        _
      // Predicated region
      $region25: #{vit_forward.1} parent=11 // pred_check
        %p617 = pneg %p462
      $region26: #{vit_forward.1} parent=11 // pred_check_branch
        %619 = sbr.rel (%p617) target = $region28
      $region27: #{vit_forward.1} parent=11 // pred_region
        _
      $region28: #{vit_forward.1} parent=11 // pred_fallthru
        _
      // Predicated region
      $region29: #{vit_forward.1} parent=11 // pred_check
        %p620 = pneg %p483
      $region30: #{vit_forward.1} parent=11 // pred_check_branch
        %622 = sbr.rel (%p620) target = $region32
      $region31: #{vit_forward.1} parent=11 // pred_region
        _
      $region32: #{vit_forward.1} parent=11 // pred_fallthru
        _
      // Predicated region
      $region33: #{vit_forward.1} parent=11 // pred_check
        %p623 = pneg %p504
      $region34: #{vit_forward.1} parent=11 // pred_check_branch
        %625 = sbr.rel (%p623) target = $region36
      $region35: #{vit_forward.1} parent=11 // pred_region
        _
      $region36: #{vit_forward.1} parent=11 // pred_fallthru
        _
      // Predicated region
      $region37: #{vit_forward.1} parent=11 // pred_check
        %p626 = pneg %p525
      $region38: #{vit_forward.1} parent=11 // pred_check_branch
        %628 = sbr.rel (%p626) target = $region40
      $region39: #{vit_forward.1} parent=11 // pred_region
        _
      $region40: #{vit_forward.1} parent=11 // pred_fallthru
        _
      // Predicated region
      $region41: #{vit_forward.1} parent=11 // pred_check
        %p629 = pneg %p546
      $region42: #{vit_forward.1} parent=11 // pred_check_branch
        %631 = sbr.rel (%p629) target = $region44
      $region43: #{vit_forward.1} parent=11 // pred_region
        _
      $region44: #{vit_forward.1} parent=11 // pred_fallthru
        _
      // Predicated region
      $region45: #{vit_forward.1} parent=11 // pred_check
        %p632 = pneg %p567
      $region46: #{vit_forward.1} parent=11 // pred_check_branch
        %634 = sbr.rel (%p632) target = $region48
      $region47: #{vit_forward.1} parent=11 // pred_region
        _
      $region48: #{vit_forward.1} parent=11 // pred_fallthru
        _
    $region12: #{vit_forward.1} parent=5 // pred_fallthru
      _
    %p635 = scmp.lt.s32.totalorder %s28, 4
    // Predicated region
    $region49: #{vit_forward.1} parent=5 // pred_check
      %p636 = pneg %p635
    $region50: #{vit_forward.1} parent=5 // pred_check_branch
      %638 = sbr.rel (%p636) target = $region52
    $region51: #{vit_forward.1} parent=5 // pred_region
      // Predicated region
      $region53: #{vit_forward.1} parent=51 // pred_check
        %p639 = pneg %p60
      $region54: #{vit_forward.1} parent=51 // pred_check_branch
        %641 = sbr.rel (%p639) target = $region56
      $region55: #{vit_forward.1} parent=51 // pred_region
        %p642 = scmp.lt.s32.totalorder %s35, 1
        %s643 = scalar_select %p642, %s35, 1
        %s644 = smul.addr %s643, 24
        %s645 = smul.addr %s644, 8
        %s646 = scalar_lea.vmem %s0, %s645
      $region56: #{vit_forward.1} parent=51 // pred_fallthru
        _
      // Predicated region
      $region57: #{vit_forward.1} parent=51 // pred_check
        %p647 = pneg %p128
      $region58: #{vit_forward.1} parent=51 // pred_check_branch
        %649 = sbr.rel (%p647) target = $region60
      $region59: #{vit_forward.1} parent=51 // pred_region
        %p650 = scmp.lt.s32.totalorder %s36, 1
        %s651 = scalar_select %p650, %s36, 1
        %s652 = scalar_lea.vmem %s3, %s651
      $region60: #{vit_forward.1} parent=51 // pred_fallthru
        _
      // Predicated region
      $region61: #{vit_forward.1} parent=51 // pred_check
        %p653 = pneg %p154
      $region62: #{vit_forward.1} parent=51 // pred_check_branch
        %655 = sbr.rel (%p653) target = $region64
      $region63: #{vit_forward.1} parent=51 // pred_region
        %p656 = scmp.lt.s32.totalorder %s36, 1
        %s657 = scalar_select %p656, %s36, 1
        %s658 = scalar_lea.vmem %s4, %s657
      $region64: #{vit_forward.1} parent=51 // pred_fallthru
        _
      // Predicated region
      $region65: #{vit_forward.1} parent=51 // pred_check
        %p659 = pneg %p180
      $region66: #{vit_forward.1} parent=51 // pred_check_branch
        %661 = sbr.rel (%p659) target = $region68
      $region67: #{vit_forward.1} parent=51 // pred_region
        %p662 = scmp.lt.s32.totalorder %s36, 1
        %s663 = scalar_select %p662, %s36, 1
        %s664 = smul.addr %s663, 64
        %s665 = smul.addr %s664, 4
        %s666 = scalar_lea.vmem %s5, %s665
      $region68: #{vit_forward.1} parent=51 // pred_fallthru
        _
      // Predicated region
      $region69: #{vit_forward.1} parent=51 // pred_check
        %p667 = pneg %p206
      $region70: #{vit_forward.1} parent=51 // pred_check_branch
        %669 = sbr.rel (%p667) target = $region72
      $region71: #{vit_forward.1} parent=51 // pred_region
        %p670 = scmp.lt.s32.totalorder %s36, 1
        %s671 = scalar_select %p670, %s36, 1
        %s672 = smul.addr %s671, 4
        %s673 = scalar_lea.vmem %s6, %s672
      $region72: #{vit_forward.1} parent=51 // pred_fallthru
        _
      // Predicated region
      $region73: #{vit_forward.1} parent=51 // pred_check
        %p674 = pneg %p232
      $region74: #{vit_forward.1} parent=51 // pred_check_branch
        %676 = sbr.rel (%p674) target = $region76
      $region75: #{vit_forward.1} parent=51 // pred_region
        %p677 = scmp.lt.s32.totalorder %s36, 1
        %s678 = scalar_select %p677, %s36, 1
        %s679 = smul.addr %s678, 16
        %s680 = smul.addr %s679, 4
        %s681 = scalar_lea.vmem %s7, %s680
      $region76: #{vit_forward.1} parent=51 // pred_fallthru
        _
      // Predicated region
      $region77: #{vit_forward.1} parent=51 // pred_check
        %p682 = pneg %p258
      $region78: #{vit_forward.1} parent=51 // pred_check_branch
        %684 = sbr.rel (%p682) target = $region80
      $region79: #{vit_forward.1} parent=51 // pred_region
        %p685 = scmp.lt.s32.totalorder %s36, 1
        %s686 = scalar_select %p685, %s36, 1
        %s687 = scalar_lea.vmem %s8, %s686
      $region80: #{vit_forward.1} parent=51 // pred_fallthru
        _
      // Predicated region
      $region81: #{vit_forward.1} parent=51 // pred_check
        %p688 = pneg %p284
      $region82: #{vit_forward.1} parent=51 // pred_check_branch
        %690 = sbr.rel (%p688) target = $region84
      $region83: #{vit_forward.1} parent=51 // pred_region
        %p691 = scmp.lt.s32.totalorder %s36, 1
        %s692 = scalar_select %p691, %s36, 1
        %s693 = scalar_lea.vmem %s9, %s692
      $region84: #{vit_forward.1} parent=51 // pred_fallthru
        _
      // Predicated region
      $region85: #{vit_forward.1} parent=51 // pred_check
        %p694 = pneg %p310
      $region86: #{vit_forward.1} parent=51 // pred_check_branch
        %696 = sbr.rel (%p694) target = $region88
      $region87: #{vit_forward.1} parent=51 // pred_region
        %p697 = scmp.lt.s32.totalorder %s36, 1
        %s698 = scalar_select %p697, %s36, 1
        %s699 = scalar_lea.vmem %s10, %s698
      $region88: #{vit_forward.1} parent=51 // pred_fallthru
        _
      // Predicated region
      $region89: #{vit_forward.1} parent=51 // pred_check
        %p700 = pneg %p336
      $region90: #{vit_forward.1} parent=51 // pred_check_branch
        %702 = sbr.rel (%p700) target = $region92
      $region91: #{vit_forward.1} parent=51 // pred_region
        %p703 = scmp.lt.s32.totalorder %s36, 1
        %s704 = scalar_select %p703, %s36, 1
        %s705 = smul.addr %s704, 32
        %s706 = smul.addr %s705, 4
        %s707 = scalar_lea.vmem %s11, %s706
      $region92: #{vit_forward.1} parent=51 // pred_fallthru
        _
      // Predicated region
      $region93: #{vit_forward.1} parent=51 // pred_check
        %p708 = pneg %p362
      $region94: #{vit_forward.1} parent=51 // pred_check_branch
        %710 = sbr.rel (%p708) target = $region96
      $region95: #{vit_forward.1} parent=51 // pred_region
        %p711 = scmp.lt.s32.totalorder %s36, 1
        %s712 = scalar_select %p711, %s36, 1
        %s713 = smul.addr %s712, 2
        %s714 = scalar_lea.vmem %s12, %s713
      $region96: #{vit_forward.1} parent=51 // pred_fallthru
        _
      // Predicated region
      $region97: #{vit_forward.1} parent=51 // pred_check
        %p715 = pneg %p388
      $region98: #{vit_forward.1} parent=51 // pred_check_branch
        %717 = sbr.rel (%p715) target = $region100
      $region99: #{vit_forward.1} parent=51 // pred_region
        %p718 = scmp.lt.s32.totalorder %s36, 1
        %s719 = scalar_select %p718, %s36, 1
        %s720 = smul.addr %s719, 32
        %s721 = smul.addr %s720, 4
        %s722 = scalar_lea.vmem %s13, %s721
      $region100: #{vit_forward.1} parent=51 // pred_fallthru
        _
      // Predicated region
      $region101: #{vit_forward.1} parent=51 // pred_check
        %p723 = pneg %p414
      $region102: #{vit_forward.1} parent=51 // pred_check_branch
        %725 = sbr.rel (%p723) target = $region104
      $region103: #{vit_forward.1} parent=51 // pred_region
        %p726 = scmp.lt.s32.totalorder %s36, 1
        %s727 = scalar_select %p726, %s36, 1
        %s728 = scalar_lea.vmem %s14, %s727
      $region104: #{vit_forward.1} parent=51 // pred_fallthru
        _
    $region52: #{vit_forward.1} parent=5 // pred_fallthru
      _
    %p729 = scmp.le.s32.totalorder 1, %s28
    %p730 = scmp.lt.s32.totalorder %s28, 5
    %p731 = pnand %p729, %p730
    %p732 = pneg %p731
    // Predicated region
    $region105: #{vit_forward.1} parent=5 // pred_check
      _
    $region106: #{vit_forward.1} parent=5 // pred_check_branch
      %734 = sbr.rel (%p731) target = $region108
    $region107: #{vit_forward.1} parent=5 // pred_region
      %s735 = ssub.s32 %s28, 1
      %p736 = scmp.lt.s32.totalorder %s37, 1
      %s737 = scalar_select %p736, %s37, 1
      %s738 = smul.addr %s737, 24
      %s739 = smul.addr %s738, 8
      %s740 = scalar_lea.vmem %s0, %s739
      %p741 = pneg %p66
      %p742 = pneg %p63
      %p743 = pneg %p87
      %p744 = pneg %p84
      %p745 = pneg %p108
      %p746 = pneg %p105
      %p747 = scmp.lt.s32.totalorder %s38, 1
      %s748 = scalar_select %p747, %s38, 1
      %s749 = scalar_lea.vmem %s3, %s748
      %p750 = pneg %p134
      %p751 = pneg %p131
      %p752 = scmp.lt.s32.totalorder %s38, 1
      %s753 = scalar_select %p752, %s38, 1
      %s754 = scalar_lea.vmem %s4, %s753
      %p755 = pneg %p160
      %p756 = pneg %p157
      %p757 = scmp.lt.s32.totalorder %s38, 1
      %s758 = scalar_select %p757, %s38, 1
      %s759 = smul.addr %s758, 64
      %s760 = smul.addr %s759, 4
      %s761 = scalar_lea.vmem %s5, %s760
      %p762 = pneg %p186
      %p763 = pneg %p183
      %p764 = scmp.lt.s32.totalorder %s38, 1
      %s765 = scalar_select %p764, %s38, 1
      %s766 = smul.addr %s765, 4
      %s767 = scalar_lea.vmem %s6, %s766
      %p768 = pneg %p212
      %p769 = pneg %p209
      %p770 = scmp.lt.s32.totalorder %s38, 1
      %s771 = scalar_select %p770, %s38, 1
      %s772 = smul.addr %s771, 16
      %s773 = smul.addr %s772, 4
      %s774 = scalar_lea.vmem %s7, %s773
      %p775 = pneg %p238
      %p776 = pneg %p235
      %p777 = scmp.lt.s32.totalorder %s38, 1
      %s778 = scalar_select %p777, %s38, 1
      %s779 = scalar_lea.vmem %s8, %s778
      %p780 = pneg %p264
      %p781 = pneg %p261
      %p782 = scmp.lt.s32.totalorder %s38, 1
      %s783 = scalar_select %p782, %s38, 1
      %s784 = scalar_lea.vmem %s9, %s783
      %p785 = pneg %p290
      %p786 = pneg %p287
      %p787 = scmp.lt.s32.totalorder %s38, 1
      %s788 = scalar_select %p787, %s38, 1
      %s789 = scalar_lea.vmem %s10, %s788
      %p790 = pneg %p316
      %p791 = pneg %p313
      %p792 = scmp.lt.s32.totalorder %s38, 1
      %s793 = scalar_select %p792, %s38, 1
      %s794 = smul.addr %s793, 32
      %s795 = smul.addr %s794, 4
      %s796 = scalar_lea.vmem %s11, %s795
      %p797 = pneg %p342
      %p798 = pneg %p339
      %p799 = scmp.lt.s32.totalorder %s38, 1
      %s800 = scalar_select %p799, %s38, 1
      %s801 = smul.addr %s800, 2
      %s802 = scalar_lea.vmem %s12, %s801
      %p803 = pneg %p368
      %p804 = pneg %p365
      %p805 = scmp.lt.s32.totalorder %s38, 1
      %s806 = scalar_select %p805, %s38, 1
      %s807 = smul.addr %s806, 32
      %s808 = smul.addr %s807, 4
      %s809 = scalar_lea.vmem %s13, %s808
      %p810 = pneg %p394
      %p811 = pneg %p391
      %p812 = scmp.lt.s32.totalorder %s38, 1
      %s813 = scalar_select %p812, %s38, 1
      %s814 = scalar_lea.vmem %s14, %s813
      %p815 = pneg %p420
      %p816 = pneg %p417
      %p817 = pneg %p441
      %p818 = pneg %p438
      %p819 = pneg %p462
      %p820 = pneg %p459
      %p821 = pneg %p483
      %p822 = pneg %p480
      %p823 = pneg %p504
      %p824 = pneg %p501
      %p825 = pneg %p525
      %p826 = pneg %p522
      %p827 = pneg %p546
      %p828 = pneg %p543
      %p829 = pneg %p567
      %p830 = pneg %p564
      %p831 = pneg %p593
      %p832 = pneg %p590
      %p833 = scmp.lt.s32.totalorder %s37, 1
      %s834 = scalar_select %p833, %s37, 1
      %s835 = smul.addr %s834, 8
      %s836 = scalar_lea.vmem %s22, %s835
      %p837 = scmp.lt.s32.totalorder %s37, 1
      %s838 = scalar_select %p837, %s37, 1
      %s839 = smul.addr %s838, 24
      %s840 = smul.addr %s839, 8
      %s841 = scalar_lea.vmem %s0, %s840
      %p842 = scmp.lt.s32.totalorder %s38, 1
      %s843 = scalar_select %p842, %s38, 1
      %s844 = scalar_lea.vmem %s3, %s843
      %p845 = scmp.lt.s32.totalorder %s38, 1
      %s846 = scalar_select %p845, %s38, 1
      %s847 = scalar_lea.vmem %s4, %s846
      %p848 = scmp.lt.s32.totalorder %s38, 1
      %s849 = scalar_select %p848, %s38, 1
      %s850 = smul.addr %s849, 64
      %s851 = smul.addr %s850, 4
      %s852 = scalar_lea.vmem %s5, %s851
      %p853 = scmp.lt.s32.totalorder %s38, 1
      %s854 = scalar_select %p853, %s38, 1
      %s855 = smul.addr %s854, 4
      %s856 = scalar_lea.vmem %s6, %s855
      %p857 = scmp.lt.s32.totalorder %s38, 1
      %s858 = scalar_select %p857, %s38, 1
      %s859 = smul.addr %s858, 16
      %s860 = smul.addr %s859, 4
      %s861 = scalar_lea.vmem %s7, %s860
      %p862 = scmp.lt.s32.totalorder %s38, 1
      %s863 = scalar_select %p862, %s38, 1
      %s864 = scalar_lea.vmem %s8, %s863
      %p865 = scmp.lt.s32.totalorder %s38, 1
      %s866 = scalar_select %p865, %s38, 1
      %s867 = scalar_lea.vmem %s9, %s866
      %p868 = scmp.lt.s32.totalorder %s38, 1
      %s869 = scalar_select %p868, %s38, 1
      %s870 = scalar_lea.vmem %s10, %s869
      %p871 = scmp.lt.s32.totalorder %s38, 1
      %s872 = scalar_select %p871, %s38, 1
      %s873 = smul.addr %s872, 32
      %s874 = smul.addr %s873, 4
      %s875 = scalar_lea.vmem %s11, %s874
      %p876 = scmp.lt.s32.totalorder %s38, 1
      %s877 = scalar_select %p876, %s38, 1
      %s878 = smul.addr %s877, 2
      %s879 = scalar_lea.vmem %s12, %s878
      %p880 = scmp.lt.s32.totalorder %s38, 1
      %s881 = scalar_select %p880, %s38, 1
      %s882 = smul.addr %s881, 32
      %s883 = smul.addr %s882, 4
      %s884 = scalar_lea.vmem %s13, %s883
      %p885 = scmp.lt.s32.totalorder %s38, 1
      %s886 = scalar_select %p885, %s38, 1
      %s887 = scalar_lea.vmem %s14, %s886
      %p888 = scmp.lt.s32.totalorder %s37, 1
      %s889 = scalar_select %p888, %s37, 1
      %s890 = smul.addr %s889, 8
      %s891 = scalar_lea.vmem %s22, %s890
      %p893 = scmp.eq.s32.totalorder %s38, 0
      // Predicated region
      $region109: #{vit_forward.1} parent=107 // pred_check
        %p894 = pneg %p893
      $region110: #{vit_forward.1} parent=107 // pred_check_branch
        %896 = sbr.rel (%p894) target = $region112
      $region111: #{vit_forward.1} parent=107 // pred_region
        %v897 = vld [vmem:[%s841] sm:$0x1f]
        %v898 = vld [vmem:[%s841 + $0x8] sm:$0x1f]
        %v899 = vld [vmem:[%s841 + $0x10] sm:$0x1f]
        %v900 = vld [vmem:[%s841 + $0x18] sm:$0x1f]
        %v901 = vld [vmem:[%s841 + $0x20] sm:$0x1f]
        %v902 = vld [vmem:[%s841 + $0x28] sm:$0x1f]
        %v903 = vld [vmem:[%s841 + $0x30] sm:$0x1f]
        %v904 = vld [vmem:[%s841 + $0x38] sm:$0x1f]
        %v905 = vld [vmem:[%s841 + $0x40] sm:$0x1f]
        %v906 = vld [vmem:[%s841 + $0x48] sm:$0x1f]
        %v907 = vld [vmem:[%s841 + $0x50] sm:$0x1f]
        %v908 = vld [vmem:[%s841 + $0x58] sm:$0x1f]
        %v909 = vld [vmem:[%s841 + $0x60] sm:$0x1f]
        %v910 = vld [vmem:[%s841 + $0x68] sm:$0x1f]
        %v911 = vld [vmem:[%s841 + $0x70] sm:$0x1f]
        %v912 = vld [vmem:[%s841 + $0x78] sm:$0x1f]
        %v913 = vld [vmem:[%s841 + $0x80] sm:$0x1f]
        %v914 = vld [vmem:[%s841 + $0x88] sm:$0x1f]
        %v915 = vld [vmem:[%s841 + $0x90] sm:$0x1f]
        %v916 = vld [vmem:[%s841 + $0x98] sm:$0x1f]
        %v917 = vld [vmem:[%s841 + $0xa0] sm:$0x1f]
        %v918 = vld [vmem:[%s841 + $0xa8] sm:$0x1f]
        %v919 = vld [vmem:[%s841 + $0xb0] sm:$0x1f]
        %v920 = vld [vmem:[%s841 + $0xb8] sm:$0x1f]
        %v921 = vpack.c.bf16 %v897, %v897
        %v922 = vpack.c.bf16 %v898, %v898
        %v923 = vpack.c.bf16 %v899, %v899
        %v924 = vpack.c.bf16 %v900, %v900
        %v925 = vpack.c.bf16 %v901, %v901
        %v926 = vpack.c.bf16 %v902, %v902
        %v927 = vpack.c.bf16 %v903, %v903
        %v928 = vpack.c.bf16 %v904, %v904
        %v929 = vpack.c.bf16 %v905, %v905
        %v930 = vpack.c.bf16 %v906, %v906
        %v931 = vpack.c.bf16 %v907, %v907
        %v932 = vpack.c.bf16 %v908, %v908
        %v933 = vpack.c.bf16 %v909, %v909
        %v934 = vpack.c.bf16 %v910, %v910
        %v935 = vpack.c.bf16 %v911, %v911
        %v936 = vpack.c.bf16 %v912, %v912
        %v937 = vpack.c.bf16 %v913, %v913
        %v938 = vpack.c.bf16 %v914, %v914
        %v939 = vpack.c.bf16 %v915, %v915
        %v940 = vpack.c.bf16 %v916, %v916
        %v941 = vpack.c.bf16 %v917, %v917
        %v942 = vpack.c.bf16 %v918, %v918
        %v943 = vpack.c.bf16 %v919, %v919
        %v944 = vpack.c.bf16 %v920, %v920
        %v945 = vld [vmem:[%s1] sm:$0xf]
        %v946 = vld [vmem:[%s1 + $0x4] sm:$0xf]
        %v947 = vld [vmem:[%s1 + $0x8] sm:$0xf]
        %v948 = vld [vmem:[%s1 + $0xc] sm:$0xf]
        %v949 = vld [vmem:[%s1 + $0x10] sm:$0xf]
        %v950 = vld [vmem:[%s1 + $0x14] sm:$0xf]
        %v951 = vld [vmem:[%s1 + $0x18] sm:$0xf]
        %v952 = vld [vmem:[%s1 + $0x1c] sm:$0xf]
        %v953 = vld [vmem:[%s1 + $0x20] sm:$0xf]
        %v954 = vld [vmem:[%s1 + $0x24] sm:$0xf]
        %v955 = vld [vmem:[%s1 + $0x28] sm:$0xf]
        %v956 = vld [vmem:[%s1 + $0x2c] sm:$0xf]
        %v957 = vld [vmem:[%s1 + $0x30] sm:$0xf]
        %v958 = vld [vmem:[%s1 + $0x34] sm:$0xf]
        %v959 = vld [vmem:[%s1 + $0x38] sm:$0xf]
        %v960 = vld [vmem:[%s1 + $0x3c] sm:$0xf]
        %v961 = vld [vmem:[%s1 + $0x40] sm:$0xf]
        %v962 = vld [vmem:[%s1 + $0x44] sm:$0xf]
        %v963 = vld [vmem:[%s1 + $0x48] sm:$0xf]
        %v964 = vld [vmem:[%s1 + $0x4c] sm:$0xf]
        %v965 = vld [vmem:[%s1 + $0x50] sm:$0xf]
        %v966 = vld [vmem:[%s1 + $0x54] sm:$0xf]
        %v967 = vld [vmem:[%s1 + $0x58] sm:$0xf]
        %v968 = vld [vmem:[%s1 + $0x5c] sm:$0xf]
        %v969 = vld [vmem:[%s1 + $0x60] sm:$0xf]
        %v970 = vld [vmem:[%s1 + $0x64] sm:$0xf]
        %v971 = vld [vmem:[%s1 + $0x68] sm:$0xf]
        %v972 = vld [vmem:[%s1 + $0x6c] sm:$0xf]
        %v973 = vld [vmem:[%s1 + $0x70] sm:$0xf]
        %v974 = vld [vmem:[%s1 + $0x74] sm:$0xf]
        %v975 = vld [vmem:[%s1 + $0x78] sm:$0xf]
        %v976 = vld [vmem:[%s1 + $0x7c] sm:$0xf]
        %v977 = vld [vmem:[%s1 + $0x80] sm:$0xf]
        %v978 = vld [vmem:[%s1 + $0x84] sm:$0xf]
        %v979 = vld [vmem:[%s1 + $0x88] sm:$0xf]
        %v980 = vld [vmem:[%s1 + $0x8c] sm:$0xf]
        %v981 = vld [vmem:[%s1 + $0x90] sm:$0xf]
        %v982 = vld [vmem:[%s1 + $0x94] sm:$0xf]
        %v983 = vld [vmem:[%s1 + $0x98] sm:$0xf]
        %v984 = vld [vmem:[%s1 + $0x9c] sm:$0xf]
        %v985 = vld [vmem:[%s1 + $0xa0] sm:$0xf]
        %v986 = vld [vmem:[%s1 + $0xa4] sm:$0xf]
        %v987 = vld [vmem:[%s1 + $0xa8] sm:$0xf]
        %v988 = vld [vmem:[%s1 + $0xac] sm:$0xf]
        %v989 = vld [vmem:[%s1 + $0xb0] sm:$0xf]
        %v990 = vld [vmem:[%s1 + $0xb4] sm:$0xf]
        %v991 = vld [vmem:[%s1 + $0xb8] sm:$0xf]
        %v992 = vld [vmem:[%s1 + $0xbc] sm:$0xf]
        %v993 = vld [vmem:[%s1 + $0xc0] sm:$0xf]
        %v994 = vld [vmem:[%s1 + $0xc4] sm:$0xf]
        %v995 = vld [vmem:[%s1 + $0xc8] sm:$0xf]
        %v996 = vld [vmem:[%s1 + $0xcc] sm:$0xf]
        %v997 = vld [vmem:[%s1 + $0xd0] sm:$0xf]
        %v998 = vld [vmem:[%s1 + $0xd4] sm:$0xf]
        %v999 = vld [vmem:[%s1 + $0xd8] sm:$0xf]
        %v1000 = vld [vmem:[%s1 + $0xdc] sm:$0xf]
        %v1001 = vld [vmem:[%s1 + $0xe0] sm:$0xf]
        %v1002 = vld [vmem:[%s1 + $0xe4] sm:$0xf]
        %v1003 = vld [vmem:[%s1 + $0xe8] sm:$0xf]
        %v1004 = vld [vmem:[%s1 + $0xec] sm:$0xf]
        %v1005 = vld [vmem:[%s1 + $0xf0] sm:$0xf]
        %v1006 = vld [vmem:[%s1 + $0xf4] sm:$0xf]
        %v1007 = vld [vmem:[%s1 + $0xf8] sm:$0xf]
        %v1008 = vld [vmem:[%s1 + $0xfc] sm:$0xf]
        %v1009 = vld [vmem:[%s1 + $0x100] sm:$0xf]
        %v1010 = vld [vmem:[%s1 + $0x104] sm:$0xf]
        %v1011 = vld [vmem:[%s1 + $0x108] sm:$0xf]
        %v1012 = vld [vmem:[%s1 + $0x10c] sm:$0xf]
        %v1013 = vld [vmem:[%s1 + $0x110] sm:$0xf]
        %v1014 = vld [vmem:[%s1 + $0x114] sm:$0xf]
        %v1015 = vld [vmem:[%s1 + $0x118] sm:$0xf]
        %v1016 = vld [vmem:[%s1 + $0x11c] sm:$0xf]
        %v1017 = vld [vmem:[%s1 + $0x120] sm:$0xf]
        %v1018 = vld [vmem:[%s1 + $0x124] sm:$0xf]
        %v1019 = vld [vmem:[%s1 + $0x128] sm:$0xf]
        %v1020 = vld [vmem:[%s1 + $0x12c] sm:$0xf]
        %v1021 = vld [vmem:[%s1 + $0x130] sm:$0xf]
        %v1022 = vld [vmem:[%s1 + $0x134] sm:$0xf]
        %v1023 = vld [vmem:[%s1 + $0x138] sm:$0xf]
        %v1024 = vld [vmem:[%s1 + $0x13c] sm:$0xf]
        %v1025 = vld [vmem:[%s1 + $0x140] sm:$0xf]
        %v1026 = vld [vmem:[%s1 + $0x144] sm:$0xf]
        %v1027 = vld [vmem:[%s1 + $0x148] sm:$0xf]
        %v1028 = vld [vmem:[%s1 + $0x14c] sm:$0xf]
        %v1029 = vld [vmem:[%s1 + $0x150] sm:$0xf]
        %v1030 = vld [vmem:[%s1 + $0x154] sm:$0xf]
        %v1031 = vld [vmem:[%s1 + $0x158] sm:$0xf]
        %v1032 = vld [vmem:[%s1 + $0x15c] sm:$0xf]
        %v1033 = vld [vmem:[%s1 + $0x160] sm:$0xf]
        %v1034 = vld [vmem:[%s1 + $0x164] sm:$0xf]
        %v1035 = vld [vmem:[%s1 + $0x168] sm:$0xf]
        %v1036 = vld [vmem:[%s1 + $0x16c] sm:$0xf]
        %v1037 = vld [vmem:[%s1 + $0x170] sm:$0xf]
        %v1038 = vld [vmem:[%s1 + $0x174] sm:$0xf]
        %v1039 = vld [vmem:[%s1 + $0x178] sm:$0xf]
        %v1040 = vld [vmem:[%s1 + $0x17c] sm:$0xf]
        %v1041 = vld [vmem:[%s1 + $0x180] sm:$0xf]
        %v1042 = vld [vmem:[%s1 + $0x184] sm:$0xf]
        %v1043 = vld [vmem:[%s1 + $0x188] sm:$0xf]
        %v1044 = vld [vmem:[%s1 + $0x18c] sm:$0xf]
        %v1045 = vld [vmem:[%s1 + $0x190] sm:$0xf]
        %v1046 = vld [vmem:[%s1 + $0x194] sm:$0xf]
        %v1047 = vld [vmem:[%s1 + $0x198] sm:$0xf]
        %v1048 = vld [vmem:[%s1 + $0x19c] sm:$0xf]
        %v1049 = vld [vmem:[%s1 + $0x1a0] sm:$0xf]
        %v1050 = vld [vmem:[%s1 + $0x1a4] sm:$0xf]
        %v1051 = vld [vmem:[%s1 + $0x1a8] sm:$0xf]
        %v1052 = vld [vmem:[%s1 + $0x1ac] sm:$0xf]
        %v1053 = vld [vmem:[%s1 + $0x1b0] sm:$0xf]
        %v1054 = vld [vmem:[%s1 + $0x1b4] sm:$0xf]
        %v1055 = vld [vmem:[%s1 + $0x1b8] sm:$0xf]
        %v1056 = vld [vmem:[%s1 + $0x1bc] sm:$0xf]
        %v1057 = vld [vmem:[%s1 + $0x1c0] sm:$0xf]
        %v1058 = vld [vmem:[%s1 + $0x1c4] sm:$0xf]
        %v1059 = vld [vmem:[%s1 + $0x1c8] sm:$0xf]
        %v1060 = vld [vmem:[%s1 + $0x1cc] sm:$0xf]
        %v1061 = vld [vmem:[%s1 + $0x1d0] sm:$0xf]
        %v1062 = vld [vmem:[%s1 + $0x1d4] sm:$0xf]
        %v1063 = vld [vmem:[%s1 + $0x1d8] sm:$0xf]
        %v1064 = vld [vmem:[%s1 + $0x1dc] sm:$0xf]
        %v1065 = vld [vmem:[%s1 + $0x1e0] sm:$0xf]
        %v1066 = vld [vmem:[%s1 + $0x1e4] sm:$0xf]
        %v1067 = vld [vmem:[%s1 + $0x1e8] sm:$0xf]
        %v1068 = vld [vmem:[%s1 + $0x1ec] sm:$0xf]
        %v1069 = vld [vmem:[%s1 + $0x1f0] sm:$0xf]
        %v1070 = vld [vmem:[%s1 + $0x1f4] sm:$0xf]
        %v1071 = vld [vmem:[%s1 + $0x1f8] sm:$0xf]
        %v1072 = vld [vmem:[%s1 + $0x1fc] sm:$0xf]
        %v1073 = vld [vmem:[%s1 + $0x200] sm:$0xf]
        %v1074 = vld [vmem:[%s1 + $0x204] sm:$0xf]
        %v1075 = vld [vmem:[%s1 + $0x208] sm:$0xf]
        %v1076 = vld [vmem:[%s1 + $0x20c] sm:$0xf]
        %v1077 = vld [vmem:[%s1 + $0x210] sm:$0xf]
        %v1078 = vld [vmem:[%s1 + $0x214] sm:$0xf]
        %v1079 = vld [vmem:[%s1 + $0x218] sm:$0xf]
        %v1080 = vld [vmem:[%s1 + $0x21c] sm:$0xf]
        %v1081 = vld [vmem:[%s1 + $0x220] sm:$0xf]
        %v1082 = vld [vmem:[%s1 + $0x224] sm:$0xf]
        %v1083 = vld [vmem:[%s1 + $0x228] sm:$0xf]
        %v1084 = vld [vmem:[%s1 + $0x22c] sm:$0xf]
        %v1085 = vld [vmem:[%s1 + $0x230] sm:$0xf]
        %v1086 = vld [vmem:[%s1 + $0x234] sm:$0xf]
        %v1087 = vld [vmem:[%s1 + $0x238] sm:$0xf]
        %v1088 = vld [vmem:[%s1 + $0x23c] sm:$0xf]
        %v1089 = vld [vmem:[%s1 + $0x240] sm:$0xf]
        %v1090 = vld [vmem:[%s1 + $0x244] sm:$0xf]
        %v1091 = vld [vmem:[%s1 + $0x248] sm:$0xf]
        %v1092 = vld [vmem:[%s1 + $0x24c] sm:$0xf]
        %v1093 = vld [vmem:[%s1 + $0x250] sm:$0xf]
        %v1094 = vld [vmem:[%s1 + $0x254] sm:$0xf]
        %v1095 = vld [vmem:[%s1 + $0x258] sm:$0xf]
        %v1096 = vld [vmem:[%s1 + $0x25c] sm:$0xf]
        %v1097 = vld [vmem:[%s1 + $0x260] sm:$0xf]
        %v1098 = vld [vmem:[%s1 + $0x264] sm:$0xf]
        %v1099 = vld [vmem:[%s1 + $0x268] sm:$0xf]
        %v1100 = vld [vmem:[%s1 + $0x26c] sm:$0xf]
        %v1101 = vld [vmem:[%s1 + $0x270] sm:$0xf]
        %v1102 = vld [vmem:[%s1 + $0x274] sm:$0xf]
        %v1103 = vld [vmem:[%s1 + $0x278] sm:$0xf]
        %v1104 = vld [vmem:[%s1 + $0x27c] sm:$0xf]
        %v1105 = vld [vmem:[%s1 + $0x280] sm:$0xf]
        %v1106 = vld [vmem:[%s1 + $0x284] sm:$0xf]
        %v1107 = vld [vmem:[%s1 + $0x288] sm:$0xf]
        %v1108 = vld [vmem:[%s1 + $0x28c] sm:$0xf]
        %v1109 = vld [vmem:[%s1 + $0x290] sm:$0xf]
        %v1110 = vld [vmem:[%s1 + $0x294] sm:$0xf]
        %v1111 = vld [vmem:[%s1 + $0x298] sm:$0xf]
        %v1112 = vld [vmem:[%s1 + $0x29c] sm:$0xf]
        %v1113 = vld [vmem:[%s1 + $0x2a0] sm:$0xf]
        %v1114 = vld [vmem:[%s1 + $0x2a4] sm:$0xf]
        %v1115 = vld [vmem:[%s1 + $0x2a8] sm:$0xf]
        %v1116 = vld [vmem:[%s1 + $0x2ac] sm:$0xf]
        %v1117 = vld [vmem:[%s1 + $0x2b0] sm:$0xf]
        %v1118 = vld [vmem:[%s1 + $0x2b4] sm:$0xf]
        %v1119 = vld [vmem:[%s1 + $0x2b8] sm:$0xf]
        %v1120 = vld [vmem:[%s1 + $0x2bc] sm:$0xf]
        %v1121 = vld [vmem:[%s1 + $0x2c0] sm:$0xf]
        %v1122 = vld [vmem:[%s1 + $0x2c4] sm:$0xf]
        %v1123 = vld [vmem:[%s1 + $0x2c8] sm:$0xf]
        %v1124 = vld [vmem:[%s1 + $0x2cc] sm:$0xf]
        %v1125 = vld [vmem:[%s1 + $0x2d0] sm:$0xf]
        %v1126 = vld [vmem:[%s1 + $0x2d4] sm:$0xf]
        %v1127 = vld [vmem:[%s1 + $0x2d8] sm:$0xf]
        %v1128 = vld [vmem:[%s1 + $0x2dc] sm:$0xf]
        %v1129 = vld [vmem:[%s1 + $0x2e0] sm:$0xf]
        %v1130 = vld [vmem:[%s1 + $0x2e4] sm:$0xf]
        %v1131 = vld [vmem:[%s1 + $0x2e8] sm:$0xf]
        %v1132 = vld [vmem:[%s1 + $0x2ec] sm:$0xf]
        %v1133 = vld [vmem:[%s1 + $0x2f0] sm:$0xf]
        %v1134 = vld [vmem:[%s1 + $0x2f4] sm:$0xf]
        %v1135 = vld [vmem:[%s1 + $0x2f8] sm:$0xf]
        %v1136 = vld [vmem:[%s1 + $0x2fc] sm:$0xf]
        %v1137 = vld [vmem:[%s1 + $0x300] sm:$0xf]
        %v1138 = vld [vmem:[%s1 + $0x304] sm:$0xf]
        %v1139 = vld [vmem:[%s1 + $0x308] sm:$0xf]
        %v1140 = vld [vmem:[%s1 + $0x30c] sm:$0xf]
        %v1141 = vld [vmem:[%s1 + $0x310] sm:$0xf]
        %v1142 = vld [vmem:[%s1 + $0x314] sm:$0xf]
        %v1143 = vld [vmem:[%s1 + $0x318] sm:$0xf]
        %v1144 = vld [vmem:[%s1 + $0x31c] sm:$0xf]
        %v1145 = vld [vmem:[%s1 + $0x320] sm:$0xf]
        %v1146 = vld [vmem:[%s1 + $0x324] sm:$0xf]
        %v1147 = vld [vmem:[%s1 + $0x328] sm:$0xf]
        %v1148 = vld [vmem:[%s1 + $0x32c] sm:$0xf]
        %v1149 = vld [vmem:[%s1 + $0x330] sm:$0xf]
        %v1150 = vld [vmem:[%s1 + $0x334] sm:$0xf]
        %v1151 = vld [vmem:[%s1 + $0x338] sm:$0xf]
        %v1152 = vld [vmem:[%s1 + $0x33c] sm:$0xf]
        %v1153 = vld [vmem:[%s1 + $0x340] sm:$0xf]
        %v1154 = vld [vmem:[%s1 + $0x344] sm:$0xf]
        %v1155 = vld [vmem:[%s1 + $0x348] sm:$0xf]
        %v1156 = vld [vmem:[%s1 + $0x34c] sm:$0xf]
        %v1157 = vld [vmem:[%s1 + $0x350] sm:$0xf]
        %v1158 = vld [vmem:[%s1 + $0x354] sm:$0xf]
        %v1159 = vld [vmem:[%s1 + $0x358] sm:$0xf]
        %v1160 = vld [vmem:[%s1 + $0x35c] sm:$0xf]
        %v1161 = vld [vmem:[%s1 + $0x360] sm:$0xf]
        %v1162 = vld [vmem:[%s1 + $0x364] sm:$0xf]
        %v1163 = vld [vmem:[%s1 + $0x368] sm:$0xf]
        %v1164 = vld [vmem:[%s1 + $0x36c] sm:$0xf]
        %v1165 = vld [vmem:[%s1 + $0x370] sm:$0xf]
        %v1166 = vld [vmem:[%s1 + $0x374] sm:$0xf]
        %v1167 = vld [vmem:[%s1 + $0x378] sm:$0xf]
        %v1168 = vld [vmem:[%s1 + $0x37c] sm:$0xf]
        %v1169 = vld [vmem:[%s1 + $0x380] sm:$0xf]
        %v1170 = vld [vmem:[%s1 + $0x384] sm:$0xf]
        %v1171 = vld [vmem:[%s1 + $0x388] sm:$0xf]
        %v1172 = vld [vmem:[%s1 + $0x38c] sm:$0xf]
        %v1173 = vld [vmem:[%s1 + $0x390] sm:$0xf]
        %v1174 = vld [vmem:[%s1 + $0x394] sm:$0xf]
        %v1175 = vld [vmem:[%s1 + $0x398] sm:$0xf]
        %v1176 = vld [vmem:[%s1 + $0x39c] sm:$0xf]
        %v1177 = vld [vmem:[%s1 + $0x3a0] sm:$0xf]
        %v1178 = vld [vmem:[%s1 + $0x3a4] sm:$0xf]
        %v1179 = vld [vmem:[%s1 + $0x3a8] sm:$0xf]
        %v1180 = vld [vmem:[%s1 + $0x3ac] sm:$0xf]
        %v1181 = vld [vmem:[%s1 + $0x3b0] sm:$0xf]
        %v1182 = vld [vmem:[%s1 + $0x3b4] sm:$0xf]
        %v1183 = vld [vmem:[%s1 + $0x3b8] sm:$0xf]
        %v1184 = vld [vmem:[%s1 + $0x3bc] sm:$0xf]
        %v1185 = vld [vmem:[%s1 + $0x3c0] sm:$0xf]
        %v1186 = vld [vmem:[%s1 + $0x3c4] sm:$0xf]
        %v1187 = vld [vmem:[%s1 + $0x3c8] sm:$0xf]
        %v1188 = vld [vmem:[%s1 + $0x3cc] sm:$0xf]
        %v1189 = vld [vmem:[%s1 + $0x3d0] sm:$0xf]
        %v1190 = vld [vmem:[%s1 + $0x3d4] sm:$0xf]
        %v1191 = vld [vmem:[%s1 + $0x3d8] sm:$0xf]
        %v1192 = vld [vmem:[%s1 + $0x3dc] sm:$0xf]
        %v1193 = vld [vmem:[%s1 + $0x3e0] sm:$0xf]
        %v1194 = vld [vmem:[%s1 + $0x3e4] sm:$0xf]
        %v1195 = vld [vmem:[%s1 + $0x3e8] sm:$0xf]
        %v1196 = vld [vmem:[%s1 + $0x3ec] sm:$0xf]
        %v1197 = vld [vmem:[%s1 + $0x3f0] sm:$0xf]
        %v1198 = vld [vmem:[%s1 + $0x3f4] sm:$0xf]
        %v1199 = vld [vmem:[%s1 + $0x3f8] sm:$0xf]
        %v1200 = vld [vmem:[%s1 + $0x3fc] sm:$0xf]
        %v1201 = vld [vmem:[%s1 + $0x400] sm:$0xf]
        %v1202 = vld [vmem:[%s1 + $0x404] sm:$0xf]
        %v1203 = vld [vmem:[%s1 + $0x408] sm:$0xf]
        %v1204 = vld [vmem:[%s1 + $0x40c] sm:$0xf]
        %v1205 = vld [vmem:[%s1 + $0x410] sm:$0xf]
        %v1206 = vld [vmem:[%s1 + $0x414] sm:$0xf]
        %v1207 = vld [vmem:[%s1 + $0x418] sm:$0xf]
        %v1208 = vld [vmem:[%s1 + $0x41c] sm:$0xf]
        %v1209 = vld [vmem:[%s1 + $0x420] sm:$0xf]
        %v1210 = vld [vmem:[%s1 + $0x424] sm:$0xf]
        %v1211 = vld [vmem:[%s1 + $0x428] sm:$0xf]
        %v1212 = vld [vmem:[%s1 + $0x42c] sm:$0xf]
        %v1213 = vld [vmem:[%s1 + $0x430] sm:$0xf]
        %v1214 = vld [vmem:[%s1 + $0x434] sm:$0xf]
        %v1215 = vld [vmem:[%s1 + $0x438] sm:$0xf]
        %v1216 = vld [vmem:[%s1 + $0x43c] sm:$0xf]
        %v1217 = vld [vmem:[%s1 + $0x440] sm:$0xf]
        %v1218 = vld [vmem:[%s1 + $0x444] sm:$0xf]
        %v1219 = vld [vmem:[%s1 + $0x448] sm:$0xf]
        %v1220 = vld [vmem:[%s1 + $0x44c] sm:$0xf]
        %v1221 = vld [vmem:[%s1 + $0x450] sm:$0xf]
        %v1222 = vld [vmem:[%s1 + $0x454] sm:$0xf]
        %v1223 = vld [vmem:[%s1 + $0x458] sm:$0xf]
        %v1224 = vld [vmem:[%s1 + $0x45c] sm:$0xf]
        %v1225 = vld [vmem:[%s1 + $0x460] sm:$0xf]
        %v1226 = vld [vmem:[%s1 + $0x464] sm:$0xf]
        %v1227 = vld [vmem:[%s1 + $0x468] sm:$0xf]
        %v1228 = vld [vmem:[%s1 + $0x46c] sm:$0xf]
        %v1229 = vld [vmem:[%s1 + $0x470] sm:$0xf]
        %v1230 = vld [vmem:[%s1 + $0x474] sm:$0xf]
        %v1231 = vld [vmem:[%s1 + $0x478] sm:$0xf]
        %v1232 = vld [vmem:[%s1 + $0x47c] sm:$0xf]
        %v1233 = vld [vmem:[%s1 + $0x480] sm:$0xf]
        %v1234 = vld [vmem:[%s1 + $0x484] sm:$0xf]
        %v1235 = vld [vmem:[%s1 + $0x488] sm:$0xf]
        %v1236 = vld [vmem:[%s1 + $0x48c] sm:$0xf]
        %v1237 = vld [vmem:[%s1 + $0x490] sm:$0xf]
        %v1238 = vld [vmem:[%s1 + $0x494] sm:$0xf]
        %v1239 = vld [vmem:[%s1 + $0x498] sm:$0xf]
        %v1240 = vld [vmem:[%s1 + $0x49c] sm:$0xf]
        %v1241 = vld [vmem:[%s1 + $0x4a0] sm:$0xf]
        %v1242 = vld [vmem:[%s1 + $0x4a4] sm:$0xf]
        %v1243 = vld [vmem:[%s1 + $0x4a8] sm:$0xf]
        %v1244 = vld [vmem:[%s1 + $0x4ac] sm:$0xf]
        %v1245 = vld [vmem:[%s1 + $0x4b0] sm:$0xf]
        %v1246 = vld [vmem:[%s1 + $0x4b4] sm:$0xf]
        %v1247 = vld [vmem:[%s1 + $0x4b8] sm:$0xf]
        %v1248 = vld [vmem:[%s1 + $0x4bc] sm:$0xf]
        %v1249 = vld [vmem:[%s1 + $0x4c0] sm:$0xf]
        %v1250 = vld [vmem:[%s1 + $0x4c4] sm:$0xf]
        %v1251 = vld [vmem:[%s1 + $0x4c8] sm:$0xf]
        %v1252 = vld [vmem:[%s1 + $0x4cc] sm:$0xf]
        %v1253 = vld [vmem:[%s1 + $0x4d0] sm:$0xf]
        %v1254 = vld [vmem:[%s1 + $0x4d4] sm:$0xf]
        %v1255 = vld [vmem:[%s1 + $0x4d8] sm:$0xf]
        %v1256 = vld [vmem:[%s1 + $0x4dc] sm:$0xf]
        %v1257 = vld [vmem:[%s1 + $0x4e0] sm:$0xf]
        %v1258 = vld [vmem:[%s1 + $0x4e4] sm:$0xf]
        %v1259 = vld [vmem:[%s1 + $0x4e8] sm:$0xf]
        %v1260 = vld [vmem:[%s1 + $0x4ec] sm:$0xf]
        %v1261 = vld [vmem:[%s1 + $0x4f0] sm:$0xf]
        %v1262 = vld [vmem:[%s1 + $0x4f4] sm:$0xf]
        %v1263 = vld [vmem:[%s1 + $0x4f8] sm:$0xf]
        %v1264 = vld [vmem:[%s1 + $0x4fc] sm:$0xf]
        %v1265 = vld [vmem:[%s1 + $0x500] sm:$0xf]
        %v1266 = vld [vmem:[%s1 + $0x504] sm:$0xf]
        %v1267 = vld [vmem:[%s1 + $0x508] sm:$0xf]
        %v1268 = vld [vmem:[%s1 + $0x50c] sm:$0xf]
        %v1269 = vld [vmem:[%s1 + $0x510] sm:$0xf]
        %v1270 = vld [vmem:[%s1 + $0x514] sm:$0xf]
        %v1271 = vld [vmem:[%s1 + $0x518] sm:$0xf]
        %v1272 = vld [vmem:[%s1 + $0x51c] sm:$0xf]
        %v1273 = vld [vmem:[%s1 + $0x520] sm:$0xf]
        %v1274 = vld [vmem:[%s1 + $0x524] sm:$0xf]
        %v1275 = vld [vmem:[%s1 + $0x528] sm:$0xf]
        %v1276 = vld [vmem:[%s1 + $0x52c] sm:$0xf]
        %v1277 = vld [vmem:[%s1 + $0x530] sm:$0xf]
        %v1278 = vld [vmem:[%s1 + $0x534] sm:$0xf]
        %v1279 = vld [vmem:[%s1 + $0x538] sm:$0xf]
        %v1280 = vld [vmem:[%s1 + $0x53c] sm:$0xf]
        %v1281 = vld [vmem:[%s1 + $0x540] sm:$0xf]
        %v1282 = vld [vmem:[%s1 + $0x544] sm:$0xf]
        %v1283 = vld [vmem:[%s1 + $0x548] sm:$0xf]
        %v1284 = vld [vmem:[%s1 + $0x54c] sm:$0xf]
        %v1285 = vld [vmem:[%s1 + $0x550] sm:$0xf]
        %v1286 = vld [vmem:[%s1 + $0x554] sm:$0xf]
        %v1287 = vld [vmem:[%s1 + $0x558] sm:$0xf]
        %v1288 = vld [vmem:[%s1 + $0x55c] sm:$0xf]
        %v1289 = vld [vmem:[%s1 + $0x560] sm:$0xf]
        %v1290 = vld [vmem:[%s1 + $0x564] sm:$0xf]
        %v1291 = vld [vmem:[%s1 + $0x568] sm:$0xf]
        %v1292 = vld [vmem:[%s1 + $0x56c] sm:$0xf]
        %v1293 = vld [vmem:[%s1 + $0x570] sm:$0xf]
        %v1294 = vld [vmem:[%s1 + $0x574] sm:$0xf]
        %v1295 = vld [vmem:[%s1 + $0x578] sm:$0xf]
        %v1296 = vld [vmem:[%s1 + $0x57c] sm:$0xf]
        %v1297 = vld [vmem:[%s1 + $0x580] sm:$0xf]
        %v1298 = vld [vmem:[%s1 + $0x584] sm:$0xf]
        %v1299 = vld [vmem:[%s1 + $0x588] sm:$0xf]
        %v1300 = vld [vmem:[%s1 + $0x58c] sm:$0xf]
        %v1301 = vld [vmem:[%s1 + $0x590] sm:$0xf]
        %v1302 = vld [vmem:[%s1 + $0x594] sm:$0xf]
        %v1303 = vld [vmem:[%s1 + $0x598] sm:$0xf]
        %v1304 = vld [vmem:[%s1 + $0x59c] sm:$0xf]
        %v1305 = vld [vmem:[%s1 + $0x5a0] sm:$0xf]
        %v1306 = vld [vmem:[%s1 + $0x5a4] sm:$0xf]
        %v1307 = vld [vmem:[%s1 + $0x5a8] sm:$0xf]
        %v1308 = vld [vmem:[%s1 + $0x5ac] sm:$0xf]
        %v1309 = vld [vmem:[%s1 + $0x5b0] sm:$0xf]
        %v1310 = vld [vmem:[%s1 + $0x5b4] sm:$0xf]
        %v1311 = vld [vmem:[%s1 + $0x5b8] sm:$0xf]
        %v1312 = vld [vmem:[%s1 + $0x5bc] sm:$0xf]
        %v1313 = vld [vmem:[%s1 + $0x5c0] sm:$0xf]
        %v1314 = vld [vmem:[%s1 + $0x5c4] sm:$0xf]
        %v1315 = vld [vmem:[%s1 + $0x5c8] sm:$0xf]
        %v1316 = vld [vmem:[%s1 + $0x5cc] sm:$0xf]
        %v1317 = vld [vmem:[%s1 + $0x5d0] sm:$0xf]
        %v1318 = vld [vmem:[%s1 + $0x5d4] sm:$0xf]
        %v1319 = vld [vmem:[%s1 + $0x5d8] sm:$0xf]
        %v1320 = vld [vmem:[%s1 + $0x5dc] sm:$0xf]
        %v1321 = vld [vmem:[%s1 + $0x5e0] sm:$0xf]
        %v1322 = vld [vmem:[%s1 + $0x5e4] sm:$0xf]
        %v1323 = vld [vmem:[%s1 + $0x5e8] sm:$0xf]
        %v1324 = vld [vmem:[%s1 + $0x5ec] sm:$0xf]
        %v1325 = vld [vmem:[%s1 + $0x5f0] sm:$0xf]
        %v1326 = vld [vmem:[%s1 + $0x5f4] sm:$0xf]
        %v1327 = vld [vmem:[%s1 + $0x5f8] sm:$0xf]
        %v1328 = vld [vmem:[%s1 + $0x5fc] sm:$0xf]
        %v1329 = vld [vmem:[%s2] sm:$0x1f]
        %v1714 = vunpack.c.l.b16 %v945
        %v1715 = vunpack.c.l.b16 %v946
        %v1716 = vunpack.c.l.b16 %v947
        %v1717 = vunpack.c.l.b16 %v948
        %v1718 = vunpack.c.l.b16 %v949
        %v1719 = vunpack.c.l.b16 %v950
        %v1720 = vunpack.c.l.b16 %v951
        %v1721 = vunpack.c.l.b16 %v952
        %v1722 = vunpack.c.l.b16 %v953
        %v1723 = vunpack.c.l.b16 %v954
        %v1724 = vunpack.c.l.b16 %v955
        %v1725 = vunpack.c.l.b16 %v956
        %v1726 = vunpack.c.l.b16 %v957
        %v1727 = vunpack.c.l.b16 %v958
        %v1728 = vunpack.c.l.b16 %v959
        %v1729 = vunpack.c.l.b16 %v960
        %v1730 = vunpack.c.l.b16 %v961
        %v1731 = vunpack.c.l.b16 %v962
        %v1732 = vunpack.c.l.b16 %v963
        %v1733 = vunpack.c.l.b16 %v964
        %v1734 = vunpack.c.l.b16 %v965
        %v1735 = vunpack.c.l.b16 %v966
        %v1736 = vunpack.c.l.b16 %v967
        %v1737 = vunpack.c.l.b16 %v968
        %v1738 = vunpack.c.l.b16 %v969
        %v1739 = vunpack.c.l.b16 %v970
        %v1740 = vunpack.c.l.b16 %v971
        %v1741 = vunpack.c.l.b16 %v972
        %v1742 = vunpack.c.l.b16 %v973
        %v1743 = vunpack.c.l.b16 %v974
        %v1744 = vunpack.c.l.b16 %v975
        %v1745 = vunpack.c.l.b16 %v976
        %v1746 = vunpack.c.l.b16 %v977
        %v1747 = vunpack.c.l.b16 %v978
        %v1748 = vunpack.c.l.b16 %v979
        %v1749 = vunpack.c.l.b16 %v980
        %v1750 = vunpack.c.l.b16 %v981
        %v1751 = vunpack.c.l.b16 %v982
        %v1752 = vunpack.c.l.b16 %v983
        %v1753 = vunpack.c.l.b16 %v984
        %v1754 = vunpack.c.l.b16 %v985
        %v1755 = vunpack.c.l.b16 %v986
        %v1756 = vunpack.c.l.b16 %v987
        %v1757 = vunpack.c.l.b16 %v988
        %v1758 = vunpack.c.l.b16 %v989
        %v1759 = vunpack.c.l.b16 %v990
        %v1760 = vunpack.c.l.b16 %v991
        %v1761 = vunpack.c.l.b16 %v992
        %v1762 = vunpack.c.l.b16 %v993
        %v1763 = vunpack.c.l.b16 %v994
        %v1764 = vunpack.c.l.b16 %v995
        %v1765 = vunpack.c.l.b16 %v996
        %v1766 = vunpack.c.l.b16 %v997
        %v1767 = vunpack.c.l.b16 %v998
        %v1768 = vunpack.c.l.b16 %v999
        %v1769 = vunpack.c.l.b16 %v1000
        %v1770 = vunpack.c.l.b16 %v1001
        %v1771 = vunpack.c.l.b16 %v1002
        %v1772 = vunpack.c.l.b16 %v1003
        %v1773 = vunpack.c.l.b16 %v1004
        %v1774 = vunpack.c.l.b16 %v1005
        %v1775 = vunpack.c.l.b16 %v1006
        %v1776 = vunpack.c.l.b16 %v1007
        %v1777 = vunpack.c.l.b16 %v1008
        %v1778 = vunpack.c.l.b16 %v1009
        %v1779 = vunpack.c.l.b16 %v1010
        %v1780 = vunpack.c.l.b16 %v1011
        %v1781 = vunpack.c.l.b16 %v1012
        %v1782 = vunpack.c.l.b16 %v1013
        %v1783 = vunpack.c.l.b16 %v1014
        %v1784 = vunpack.c.l.b16 %v1015
        %v1785 = vunpack.c.l.b16 %v1016
        %v1786 = vunpack.c.l.b16 %v1017
        %v1787 = vunpack.c.l.b16 %v1018
        %v1788 = vunpack.c.l.b16 %v1019
        %v1789 = vunpack.c.l.b16 %v1020
        %v1790 = vunpack.c.l.b16 %v1021
        %v1791 = vunpack.c.l.b16 %v1022
        %v1792 = vunpack.c.l.b16 %v1023
        %v1793 = vunpack.c.l.b16 %v1024
        %v1794 = vunpack.c.l.b16 %v1025
        %v1795 = vunpack.c.l.b16 %v1026
        %v1796 = vunpack.c.l.b16 %v1027
        %v1797 = vunpack.c.l.b16 %v1028
        %v1798 = vunpack.c.l.b16 %v1029
        %v1799 = vunpack.c.l.b16 %v1030
        %v1800 = vunpack.c.l.b16 %v1031
        %v1801 = vunpack.c.l.b16 %v1032
        %v1802 = vunpack.c.l.b16 %v1033
        %v1803 = vunpack.c.l.b16 %v1034
        %v1804 = vunpack.c.l.b16 %v1035
        %v1805 = vunpack.c.l.b16 %v1036
        %v1806 = vunpack.c.l.b16 %v1037
        %v1807 = vunpack.c.l.b16 %v1038
        %v1808 = vunpack.c.l.b16 %v1039
        %v1809 = vunpack.c.l.b16 %v1040
        %v1810 = vunpack.c.l.b16 %v1041
        %v1811 = vunpack.c.l.b16 %v1042
        %v1812 = vunpack.c.l.b16 %v1043
        %v1813 = vunpack.c.l.b16 %v1044
        %v1814 = vunpack.c.l.b16 %v1045
        %v1815 = vunpack.c.l.b16 %v1046
        %v1816 = vunpack.c.l.b16 %v1047
        %v1817 = vunpack.c.l.b16 %v1048
        %v1818 = vunpack.c.l.b16 %v1049
        %v1819 = vunpack.c.l.b16 %v1050
        %v1820 = vunpack.c.l.b16 %v1051
        %v1821 = vunpack.c.l.b16 %v1052
        %v1822 = vunpack.c.l.b16 %v1053
        %v1823 = vunpack.c.l.b16 %v1054
        %v1824 = vunpack.c.l.b16 %v1055
        %v1825 = vunpack.c.l.b16 %v1056
        %v1826 = vunpack.c.l.b16 %v1057
        %v1827 = vunpack.c.l.b16 %v1058
        %v1828 = vunpack.c.l.b16 %v1059
        %v1829 = vunpack.c.l.b16 %v1060
        %v1830 = vunpack.c.l.b16 %v1061
        %v1831 = vunpack.c.l.b16 %v1062
        %v1832 = vunpack.c.l.b16 %v1063
        %v1833 = vunpack.c.l.b16 %v1064
        %v1834 = vunpack.c.l.b16 %v1065
        %v1835 = vunpack.c.l.b16 %v1066
        %v1836 = vunpack.c.l.b16 %v1067
        %v1837 = vunpack.c.l.b16 %v1068
        %v1838 = vunpack.c.l.b16 %v1069
        %v1839 = vunpack.c.l.b16 %v1070
        %v1840 = vunpack.c.l.b16 %v1071
        %v1841 = vunpack.c.l.b16 %v1072
        %v1842 = vunpack.c.l.b16 %v1073
        %v1843 = vunpack.c.l.b16 %v1074
        %v1844 = vunpack.c.l.b16 %v1075
        %v1845 = vunpack.c.l.b16 %v1076
        %v1846 = vunpack.c.l.b16 %v1077
        %v1847 = vunpack.c.l.b16 %v1078
        %v1848 = vunpack.c.l.b16 %v1079
        %v1849 = vunpack.c.l.b16 %v1080
        %v1850 = vunpack.c.l.b16 %v1081
        %v1851 = vunpack.c.l.b16 %v1082
        %v1852 = vunpack.c.l.b16 %v1083
        %v1853 = vunpack.c.l.b16 %v1084
        %v1854 = vunpack.c.l.b16 %v1085
        %v1855 = vunpack.c.l.b16 %v1086
        %v1856 = vunpack.c.l.b16 %v1087
        %v1857 = vunpack.c.l.b16 %v1088
        %v1858 = vunpack.c.l.b16 %v1089
        %v1859 = vunpack.c.l.b16 %v1090
        %v1860 = vunpack.c.l.b16 %v1091
        %v1861 = vunpack.c.l.b16 %v1092
        %v1862 = vunpack.c.l.b16 %v1093
        %v1863 = vunpack.c.l.b16 %v1094
        %v1864 = vunpack.c.l.b16 %v1095
        %v1865 = vunpack.c.l.b16 %v1096
        %v1866 = vunpack.c.l.b16 %v1097
        %v1867 = vunpack.c.l.b16 %v1098
        %v1868 = vunpack.c.l.b16 %v1099
        %v1869 = vunpack.c.l.b16 %v1100
        %v1870 = vunpack.c.l.b16 %v1101
        %v1871 = vunpack.c.l.b16 %v1102
        %v1872 = vunpack.c.l.b16 %v1103
        %v1873 = vunpack.c.l.b16 %v1104
        %v1874 = vunpack.c.l.b16 %v1105
        %v1875 = vunpack.c.l.b16 %v1106
        %v1876 = vunpack.c.l.b16 %v1107
        %v1877 = vunpack.c.l.b16 %v1108
        %v1878 = vunpack.c.l.b16 %v1109
        %v1879 = vunpack.c.l.b16 %v1110
        %v1880 = vunpack.c.l.b16 %v1111
        %v1881 = vunpack.c.l.b16 %v1112
        %v1882 = vunpack.c.l.b16 %v1113
        %v1883 = vunpack.c.l.b16 %v1114
        %v1884 = vunpack.c.l.b16 %v1115
        %v1885 = vunpack.c.l.b16 %v1116
        %v1886 = vunpack.c.l.b16 %v1117
        %v1887 = vunpack.c.l.b16 %v1118
        %v1888 = vunpack.c.l.b16 %v1119
        %v1889 = vunpack.c.l.b16 %v1120
        %v1890 = vunpack.c.l.b16 %v1121
        %v1891 = vunpack.c.l.b16 %v1122
        %v1892 = vunpack.c.l.b16 %v1123
        %v1893 = vunpack.c.l.b16 %v1124
        %v1894 = vunpack.c.l.b16 %v1125
        %v1895 = vunpack.c.l.b16 %v1126
        %v1896 = vunpack.c.l.b16 %v1127
        %v1897 = vunpack.c.l.b16 %v1128
        %v1898 = vunpack.c.l.b16 %v1129
        %v1899 = vunpack.c.l.b16 %v1130
        %v1900 = vunpack.c.l.b16 %v1131
        %v1901 = vunpack.c.l.b16 %v1132
        %v1902 = vunpack.c.l.b16 %v1133
        %v1903 = vunpack.c.l.b16 %v1134
        %v1904 = vunpack.c.l.b16 %v1135
        %v1905 = vunpack.c.l.b16 %v1136
        %v1906 = vunpack.c.l.b16 %v1137
        %v1907 = vunpack.c.l.b16 %v1138
        %v1908 = vunpack.c.l.b16 %v1139
        %v1909 = vunpack.c.l.b16 %v1140
        %v1910 = vunpack.c.l.b16 %v1141
        %v1911 = vunpack.c.l.b16 %v1142
        %v1912 = vunpack.c.l.b16 %v1143
        %v1913 = vunpack.c.l.b16 %v1144
        %v1914 = vunpack.c.l.b16 %v1145
        %v1915 = vunpack.c.l.b16 %v1146
        %v1916 = vunpack.c.l.b16 %v1147
        %v1917 = vunpack.c.l.b16 %v1148
        %v1918 = vunpack.c.l.b16 %v1149
        %v1919 = vunpack.c.l.b16 %v1150
        %v1920 = vunpack.c.l.b16 %v1151
        %v1921 = vunpack.c.l.b16 %v1152
        %v1922 = vunpack.c.l.b16 %v1153
        %v1923 = vunpack.c.l.b16 %v1154
        %v1924 = vunpack.c.l.b16 %v1155
        %v1925 = vunpack.c.l.b16 %v1156
        %v1926 = vunpack.c.l.b16 %v1157
        %v1927 = vunpack.c.l.b16 %v1158
        %v1928 = vunpack.c.l.b16 %v1159
        %v1929 = vunpack.c.l.b16 %v1160
        %v1930 = vunpack.c.l.b16 %v1161
        %v1931 = vunpack.c.l.b16 %v1162
        %v1932 = vunpack.c.l.b16 %v1163
        %v1933 = vunpack.c.l.b16 %v1164
        %v1934 = vunpack.c.l.b16 %v1165
        %v1935 = vunpack.c.l.b16 %v1166
        %v1936 = vunpack.c.l.b16 %v1167
        %v1937 = vunpack.c.l.b16 %v1168
        %v1938 = vunpack.c.l.b16 %v1169
        %v1939 = vunpack.c.l.b16 %v1170
        %v1940 = vunpack.c.l.b16 %v1171
        %v1941 = vunpack.c.l.b16 %v1172
        %v1942 = vunpack.c.l.b16 %v1173
        %v1943 = vunpack.c.l.b16 %v1174
        %v1944 = vunpack.c.l.b16 %v1175
        %v1945 = vunpack.c.l.b16 %v1176
        %v1946 = vunpack.c.l.b16 %v1177
        %v1947 = vunpack.c.l.b16 %v1178
        %v1948 = vunpack.c.l.b16 %v1179
        %v1949 = vunpack.c.l.b16 %v1180
        %v1950 = vunpack.c.l.b16 %v1181
        %v1951 = vunpack.c.l.b16 %v1182
        %v1952 = vunpack.c.l.b16 %v1183
        %v1953 = vunpack.c.l.b16 %v1184
        %v1954 = vunpack.c.l.b16 %v1185
        %v1955 = vunpack.c.l.b16 %v1186
        %v1956 = vunpack.c.l.b16 %v1187
        %v1957 = vunpack.c.l.b16 %v1188
        %v1958 = vunpack.c.l.b16 %v1189
        %v1959 = vunpack.c.l.b16 %v1190
        %v1960 = vunpack.c.l.b16 %v1191
        %v1961 = vunpack.c.l.b16 %v1192
        %v1962 = vunpack.c.l.b16 %v1193
        %v1963 = vunpack.c.l.b16 %v1194
        %v1964 = vunpack.c.l.b16 %v1195
        %v1965 = vunpack.c.l.b16 %v1196
        %v1966 = vunpack.c.l.b16 %v1197
        %v1967 = vunpack.c.l.b16 %v1198
        %v1968 = vunpack.c.l.b16 %v1199
        %v1969 = vunpack.c.l.b16 %v1200
        %v1970 = vunpack.c.l.b16 %v1201
        %v1971 = vunpack.c.l.b16 %v1202
        %v1972 = vunpack.c.l.b16 %v1203
        %v1973 = vunpack.c.l.b16 %v1204
        %v1974 = vunpack.c.l.b16 %v1205
        %v1975 = vunpack.c.l.b16 %v1206
        %v1976 = vunpack.c.l.b16 %v1207
        %v1977 = vunpack.c.l.b16 %v1208
        %v1978 = vunpack.c.l.b16 %v1209
        %v1979 = vunpack.c.l.b16 %v1210
        %v1980 = vunpack.c.l.b16 %v1211
        %v1981 = vunpack.c.l.b16 %v1212
        %v1982 = vunpack.c.l.b16 %v1213
        %v1983 = vunpack.c.l.b16 %v1214
        %v1984 = vunpack.c.l.b16 %v1215
        %v1985 = vunpack.c.l.b16 %v1216
        %v1986 = vunpack.c.l.b16 %v1217
        %v1987 = vunpack.c.l.b16 %v1218
        %v1988 = vunpack.c.l.b16 %v1219
        %v1989 = vunpack.c.l.b16 %v1220
        %v1990 = vunpack.c.l.b16 %v1221
        %v1991 = vunpack.c.l.b16 %v1222
        %v1992 = vunpack.c.l.b16 %v1223
        %v1993 = vunpack.c.l.b16 %v1224
        %v1994 = vunpack.c.l.b16 %v1225
        %v1995 = vunpack.c.l.b16 %v1226
        %v1996 = vunpack.c.l.b16 %v1227
        %v1997 = vunpack.c.l.b16 %v1228
        %v1998 = vunpack.c.l.b16 %v1229
        %v1999 = vunpack.c.l.b16 %v1230
        %v2000 = vunpack.c.l.b16 %v1231
        %v2001 = vunpack.c.l.b16 %v1232
        %v2002 = vunpack.c.l.b16 %v1233
        %v2003 = vunpack.c.l.b16 %v1234
        %v2004 = vunpack.c.l.b16 %v1235
        %v2005 = vunpack.c.l.b16 %v1236
        %v2006 = vunpack.c.l.b16 %v1237
        %v2007 = vunpack.c.l.b16 %v1238
        %v2008 = vunpack.c.l.b16 %v1239
        %v2009 = vunpack.c.l.b16 %v1240
        %v2010 = vunpack.c.l.b16 %v1241
        %v2011 = vunpack.c.l.b16 %v1242
        %v2012 = vunpack.c.l.b16 %v1243
        %v2013 = vunpack.c.l.b16 %v1244
        %v2014 = vunpack.c.l.b16 %v1245
        %v2015 = vunpack.c.l.b16 %v1246
        %v2016 = vunpack.c.l.b16 %v1247
        %v2017 = vunpack.c.l.b16 %v1248
        %v2018 = vunpack.c.l.b16 %v1249
        %v2019 = vunpack.c.l.b16 %v1250
        %v2020 = vunpack.c.l.b16 %v1251
        %v2021 = vunpack.c.l.b16 %v1252
        %v2022 = vunpack.c.l.b16 %v1253
        %v2023 = vunpack.c.l.b16 %v1254
        %v2024 = vunpack.c.l.b16 %v1255
        %v2025 = vunpack.c.l.b16 %v1256
        %v2026 = vunpack.c.l.b16 %v1257
        %v2027 = vunpack.c.l.b16 %v1258
        %v2028 = vunpack.c.l.b16 %v1259
        %v2029 = vunpack.c.l.b16 %v1260
        %v2030 = vunpack.c.l.b16 %v1261
        %v2031 = vunpack.c.l.b16 %v1262
        %v2032 = vunpack.c.l.b16 %v1263
        %v2033 = vunpack.c.l.b16 %v1264
        %v2034 = vunpack.c.l.b16 %v1265
        %v2035 = vunpack.c.l.b16 %v1266
        %v2036 = vunpack.c.l.b16 %v1267
        %v2037 = vunpack.c.l.b16 %v1268
        %v2038 = vunpack.c.l.b16 %v1269
        %v2039 = vunpack.c.l.b16 %v1270
        %v2040 = vunpack.c.l.b16 %v1271
        %v2041 = vunpack.c.l.b16 %v1272
        %v2042 = vunpack.c.l.b16 %v1273
        %v2043 = vunpack.c.l.b16 %v1274
        %v2044 = vunpack.c.l.b16 %v1275
        %v2045 = vunpack.c.l.b16 %v1276
        %v2046 = vunpack.c.l.b16 %v1277
        %v2047 = vunpack.c.l.b16 %v1278
        %v2048 = vunpack.c.l.b16 %v1279
        %v2049 = vunpack.c.l.b16 %v1280
        %v2050 = vunpack.c.l.b16 %v1281
        %v2051 = vunpack.c.l.b16 %v1282
        %v2052 = vunpack.c.l.b16 %v1283
        %v2053 = vunpack.c.l.b16 %v1284
        %v2054 = vunpack.c.l.b16 %v1285
        %v2055 = vunpack.c.l.b16 %v1286
        %v2056 = vunpack.c.l.b16 %v1287
        %v2057 = vunpack.c.l.b16 %v1288
        %v2058 = vunpack.c.l.b16 %v1289
        %v2059 = vunpack.c.l.b16 %v1290
        %v2060 = vunpack.c.l.b16 %v1291
        %v2061 = vunpack.c.l.b16 %v1292
        %v2062 = vunpack.c.l.b16 %v1293
        %v2063 = vunpack.c.l.b16 %v1294
        %v2064 = vunpack.c.l.b16 %v1295
        %v2065 = vunpack.c.l.b16 %v1296
        %v2066 = vunpack.c.l.b16 %v1297
        %v2067 = vunpack.c.l.b16 %v1298
        %v2068 = vunpack.c.l.b16 %v1299
        %v2069 = vunpack.c.l.b16 %v1300
        %v2070 = vunpack.c.l.b16 %v1301
        %v2071 = vunpack.c.l.b16 %v1302
        %v2072 = vunpack.c.l.b16 %v1303
        %v2073 = vunpack.c.l.b16 %v1304
        %v2074 = vunpack.c.l.b16 %v1305
        %v2075 = vunpack.c.l.b16 %v1306
        %v2076 = vunpack.c.l.b16 %v1307
        %v2077 = vunpack.c.l.b16 %v1308
        %v2078 = vunpack.c.l.b16 %v1309
        %v2079 = vunpack.c.l.b16 %v1310
        %v2080 = vunpack.c.l.b16 %v1311
        %v2081 = vunpack.c.l.b16 %v1312
        %v2082 = vunpack.c.l.b16 %v1313
        %v2083 = vunpack.c.l.b16 %v1314
        %v2084 = vunpack.c.l.b16 %v1315
        %v2085 = vunpack.c.l.b16 %v1316
        %v2086 = vunpack.c.l.b16 %v1317
        %v2087 = vunpack.c.l.b16 %v1318
        %v2088 = vunpack.c.l.b16 %v1319
        %v2089 = vunpack.c.l.b16 %v1320
        %v2090 = vunpack.c.l.b16 %v1321
        %v2091 = vunpack.c.l.b16 %v1322
        %v2092 = vunpack.c.l.b16 %v1323
        %v2093 = vunpack.c.l.b16 %v1324
        %v2094 = vunpack.c.l.b16 %v1325
        %v2095 = vunpack.c.l.b16 %v1326
        %v2096 = vunpack.c.l.b16 %v1327
        %v2097 = vunpack.c.l.b16 %v1328
        %v2098 = vpack.c.b16 %v1715, %v1714
        %v2099 = vpack.c.b16 %v1717, %v1716
        %v2100 = vpack.c.b16 %v1719, %v1718
        %v2101 = vpack.c.b16 %v1721, %v1720
        %v2102 = vpack.c.b16 %v1723, %v1722
        %v2103 = vpack.c.b16 %v1725, %v1724
        %v2104 = vpack.c.b16 %v1727, %v1726
        %v2105 = vpack.c.b16 %v1729, %v1728
        %v2106 = vpack.c.b16 %v1731, %v1730
        %v2107 = vpack.c.b16 %v1733, %v1732
        %v2108 = vpack.c.b16 %v1735, %v1734
        %v2109 = vpack.c.b16 %v1737, %v1736
        %v2110 = vpack.c.b16 %v1739, %v1738
        %v2111 = vpack.c.b16 %v1741, %v1740
        %v2112 = vpack.c.b16 %v1743, %v1742
        %v2113 = vpack.c.b16 %v1745, %v1744
        %v2114 = vpack.c.b16 %v1747, %v1746
        %v2115 = vpack.c.b16 %v1749, %v1748
        %v2116 = vpack.c.b16 %v1751, %v1750
        %v2117 = vpack.c.b16 %v1753, %v1752
        %v2118 = vpack.c.b16 %v1755, %v1754
        %v2119 = vpack.c.b16 %v1757, %v1756
        %v2120 = vpack.c.b16 %v1759, %v1758
        %v2121 = vpack.c.b16 %v1761, %v1760
        %v2122 = vpack.c.b16 %v1763, %v1762
        %v2123 = vpack.c.b16 %v1765, %v1764
        %v2124 = vpack.c.b16 %v1767, %v1766
        %v2125 = vpack.c.b16 %v1769, %v1768
        %v2126 = vpack.c.b16 %v1771, %v1770
        %v2127 = vpack.c.b16 %v1773, %v1772
        %v2128 = vpack.c.b16 %v1775, %v1774
        %v2129 = vpack.c.b16 %v1777, %v1776
        %v2130 = vpack.c.b16 %v1779, %v1778
        %v2131 = vpack.c.b16 %v1781, %v1780
        %v2132 = vpack.c.b16 %v1783, %v1782
        %v2133 = vpack.c.b16 %v1785, %v1784
        %v2134 = vpack.c.b16 %v1787, %v1786
        %v2135 = vpack.c.b16 %v1789, %v1788
        %v2136 = vpack.c.b16 %v1791, %v1790
        %v2137 = vpack.c.b16 %v1793, %v1792
        %v2138 = vpack.c.b16 %v1795, %v1794
        %v2139 = vpack.c.b16 %v1797, %v1796
        %v2140 = vpack.c.b16 %v1799, %v1798
        %v2141 = vpack.c.b16 %v1801, %v1800
        %v2142 = vpack.c.b16 %v1803, %v1802
        %v2143 = vpack.c.b16 %v1805, %v1804
        %v2144 = vpack.c.b16 %v1807, %v1806
        %v2145 = vpack.c.b16 %v1809, %v1808
        %v2146 = vpack.c.b16 %v1811, %v1810
        %v2147 = vpack.c.b16 %v1813, %v1812
        %v2148 = vpack.c.b16 %v1815, %v1814
        %v2149 = vpack.c.b16 %v1817, %v1816
        %v2150 = vpack.c.b16 %v1819, %v1818
        %v2151 = vpack.c.b16 %v1821, %v1820
        %v2152 = vpack.c.b16 %v1823, %v1822
        %v2153 = vpack.c.b16 %v1825, %v1824
        %v2154 = vpack.c.b16 %v1827, %v1826
        %v2155 = vpack.c.b16 %v1829, %v1828
        %v2156 = vpack.c.b16 %v1831, %v1830
        %v2157 = vpack.c.b16 %v1833, %v1832
        %v2158 = vpack.c.b16 %v1835, %v1834
        %v2159 = vpack.c.b16 %v1837, %v1836
        %v2160 = vpack.c.b16 %v1839, %v1838
        %v2161 = vpack.c.b16 %v1841, %v1840
        %v2162 = vpack.c.b16 %v1843, %v1842
        %v2163 = vpack.c.b16 %v1845, %v1844
        %v2164 = vpack.c.b16 %v1847, %v1846
        %v2165 = vpack.c.b16 %v1849, %v1848
        %v2166 = vpack.c.b16 %v1851, %v1850
        %v2167 = vpack.c.b16 %v1853, %v1852
        %v2168 = vpack.c.b16 %v1855, %v1854
        %v2169 = vpack.c.b16 %v1857, %v1856
        %v2170 = vpack.c.b16 %v1859, %v1858
        %v2171 = vpack.c.b16 %v1861, %v1860
        %v2172 = vpack.c.b16 %v1863, %v1862
        %v2173 = vpack.c.b16 %v1865, %v1864
        %v2174 = vpack.c.b16 %v1867, %v1866
        %v2175 = vpack.c.b16 %v1869, %v1868
        %v2176 = vpack.c.b16 %v1871, %v1870
        %v2177 = vpack.c.b16 %v1873, %v1872
        %v2178 = vpack.c.b16 %v1875, %v1874
        %v2179 = vpack.c.b16 %v1877, %v1876
        %v2180 = vpack.c.b16 %v1879, %v1878
        %v2181 = vpack.c.b16 %v1881, %v1880
        %v2182 = vpack.c.b16 %v1883, %v1882
        %v2183 = vpack.c.b16 %v1885, %v1884
        %v2184 = vpack.c.b16 %v1887, %v1886
        %v2185 = vpack.c.b16 %v1889, %v1888
        %v2186 = vpack.c.b16 %v1891, %v1890
        %v2187 = vpack.c.b16 %v1893, %v1892
        %v2188 = vpack.c.b16 %v1895, %v1894
        %v2189 = vpack.c.b16 %v1897, %v1896
        %v2190 = vpack.c.b16 %v1899, %v1898
        %v2191 = vpack.c.b16 %v1901, %v1900
        %v2192 = vpack.c.b16 %v1903, %v1902
        %v2193 = vpack.c.b16 %v1905, %v1904
        %v2194 = vpack.c.b16 %v1907, %v1906
        %v2195 = vpack.c.b16 %v1909, %v1908
        %v2196 = vpack.c.b16 %v1911, %v1910
        %v2197 = vpack.c.b16 %v1913, %v1912
        %v2198 = vpack.c.b16 %v1915, %v1914
        %v2199 = vpack.c.b16 %v1917, %v1916
        %v2200 = vpack.c.b16 %v1919, %v1918
        %v2201 = vpack.c.b16 %v1921, %v1920
        %v2202 = vpack.c.b16 %v1923, %v1922
        %v2203 = vpack.c.b16 %v1925, %v1924
        %v2204 = vpack.c.b16 %v1927, %v1926
        %v2205 = vpack.c.b16 %v1929, %v1928
        %v2206 = vpack.c.b16 %v1931, %v1930
        %v2207 = vpack.c.b16 %v1933, %v1932
        %v2208 = vpack.c.b16 %v1935, %v1934
        %v2209 = vpack.c.b16 %v1937, %v1936
        %v2210 = vpack.c.b16 %v1939, %v1938
        %v2211 = vpack.c.b16 %v1941, %v1940
        %v2212 = vpack.c.b16 %v1943, %v1942
        %v2213 = vpack.c.b16 %v1945, %v1944
        %v2214 = vpack.c.b16 %v1947, %v1946
        %v2215 = vpack.c.b16 %v1949, %v1948
        %v2216 = vpack.c.b16 %v1951, %v1950
        %v2217 = vpack.c.b16 %v1953, %v1952
        %v2218 = vpack.c.b16 %v1955, %v1954
        %v2219 = vpack.c.b16 %v1957, %v1956
        %v2220 = vpack.c.b16 %v1959, %v1958
        %v2221 = vpack.c.b16 %v1961, %v1960
        %v2222 = vpack.c.b16 %v1963, %v1962
        %v2223 = vpack.c.b16 %v1965, %v1964
        %v2224 = vpack.c.b16 %v1967, %v1966
        %v2225 = vpack.c.b16 %v1969, %v1968
        %v2226 = vpack.c.b16 %v1971, %v1970
        %v2227 = vpack.c.b16 %v1973, %v1972
        %v2228 = vpack.c.b16 %v1975, %v1974
        %v2229 = vpack.c.b16 %v1977, %v1976
        %v2230 = vpack.c.b16 %v1979, %v1978
        %v2231 = vpack.c.b16 %v1981, %v1980
        %v2232 = vpack.c.b16 %v1983, %v1982
        %v2233 = vpack.c.b16 %v1985, %v1984
        %v2234 = vpack.c.b16 %v1987, %v1986
        %v2235 = vpack.c.b16 %v1989, %v1988
        %v2236 = vpack.c.b16 %v1991, %v1990
        %v2237 = vpack.c.b16 %v1993, %v1992
        %v2238 = vpack.c.b16 %v1995, %v1994
        %v2239 = vpack.c.b16 %v1997, %v1996
        %v2240 = vpack.c.b16 %v1999, %v1998
        %v2241 = vpack.c.b16 %v2001, %v2000
        %v2242 = vpack.c.b16 %v2003, %v2002
        %v2243 = vpack.c.b16 %v2005, %v2004
        %v2244 = vpack.c.b16 %v2007, %v2006
        %v2245 = vpack.c.b16 %v2009, %v2008
        %v2246 = vpack.c.b16 %v2011, %v2010
        %v2247 = vpack.c.b16 %v2013, %v2012
        %v2248 = vpack.c.b16 %v2015, %v2014
        %v2249 = vpack.c.b16 %v2017, %v2016
        %v2250 = vpack.c.b16 %v2019, %v2018
        %v2251 = vpack.c.b16 %v2021, %v2020
        %v2252 = vpack.c.b16 %v2023, %v2022
        %v2253 = vpack.c.b16 %v2025, %v2024
        %v2254 = vpack.c.b16 %v2027, %v2026
        %v2255 = vpack.c.b16 %v2029, %v2028
        %v2256 = vpack.c.b16 %v2031, %v2030
        %v2257 = vpack.c.b16 %v2033, %v2032
        %v2258 = vpack.c.b16 %v2035, %v2034
        %v2259 = vpack.c.b16 %v2037, %v2036
        %v2260 = vpack.c.b16 %v2039, %v2038
        %v2261 = vpack.c.b16 %v2041, %v2040
        %v2262 = vpack.c.b16 %v2043, %v2042
        %v2263 = vpack.c.b16 %v2045, %v2044
        %v2264 = vpack.c.b16 %v2047, %v2046
        %v2265 = vpack.c.b16 %v2049, %v2048
        %v2266 = vpack.c.b16 %v2051, %v2050
        %v2267 = vpack.c.b16 %v2053, %v2052
        %v2268 = vpack.c.b16 %v2055, %v2054
        %v2269 = vpack.c.b16 %v2057, %v2056
        %v2270 = vpack.c.b16 %v2059, %v2058
        %v2271 = vpack.c.b16 %v2061, %v2060
        %v2272 = vpack.c.b16 %v2063, %v2062
        %v2273 = vpack.c.b16 %v2065, %v2064
        %v2274 = vpack.c.b16 %v2067, %v2066
        %v2275 = vpack.c.b16 %v2069, %v2068
        %v2276 = vpack.c.b16 %v2071, %v2070
        %v2277 = vpack.c.b16 %v2073, %v2072
        %v2278 = vpack.c.b16 %v2075, %v2074
        %v2279 = vpack.c.b16 %v2077, %v2076
        %v2280 = vpack.c.b16 %v2079, %v2078
        %v2281 = vpack.c.b16 %v2081, %v2080
        %v2282 = vpack.c.b16 %v2083, %v2082
        %v2283 = vpack.c.b16 %v2085, %v2084
        %v2284 = vpack.c.b16 %v2087, %v2086
        %v2285 = vpack.c.b16 %v2089, %v2088
        %v2286 = vpack.c.b16 %v2091, %v2090
        %v2287 = vpack.c.b16 %v2093, %v2092
        %v2288 = vpack.c.b16 %v2095, %v2094
        %v2289 = vpack.c.b16 %v2097, %v2096
        %2482 = vmatprep.subr.bf16.mxu0 0
        %2483 = vmatpush1.bf16.msra.mxu0 %v2098
        %2484 = vmatprep.subr.bf16.mxu0 0
        %2485 = vmatpush1.bf16.msra.mxu0 %v2099
        %2486 = vmatprep.subr.bf16.mxu0 0
        %2487 = vmatpush1.bf16.msra.mxu0 %v2100
        %2488 = vmatprep.subr.bf16.mxu0 0
        %2489 = vmatpush1.bf16.msra.mxu0 %v2101
        %2490 = vmatprep.subr.bf16.mxu0 0
        %2491 = vmatpush1.bf16.msra.mxu0 %v2102
        %2492 = vmatprep.subr.bf16.mxu0 0
        %2493 = vmatpush1.bf16.msra.mxu0 %v2103
        %2494 = vmatprep.subr.bf16.mxu0 0
        %2495 = vmatpush1.bf16.msra.mxu0 %v2104
        %2496 = vmatprep.subr.bf16.mxu0 0
        %2497 = vmatpush1.bf16.msra.mxu0 %v2105
        %2498 = vmatprep.subr.bf16.mxu0 0
        %2499 = vmatpush1.bf16.msra.mxu0 %v2106
        %2500 = vmatprep.subr.bf16.mxu0 0
        %2501 = vmatpush1.bf16.msra.mxu0 %v2107
        %2502 = vmatprep.subr.bf16.mxu0 0
        %2503 = vmatpush1.bf16.msra.mxu0 %v2108
        %2504 = vmatprep.subr.bf16.mxu0 0
        %2505 = vmatpush1.bf16.msra.mxu0 %v2109
        %2506 = vmatprep.subr.bf16.mxu0 0
        %2507 = vmatpush1.bf16.msra.mxu0 %v2110
        %2508 = vmatprep.subr.bf16.mxu0 0
        %2509 = vmatpush1.bf16.msra.mxu0 %v2111
        %2510 = vmatprep.subr.bf16.mxu0 0
        %2511 = vmatpush1.bf16.msra.mxu0 %v2112
        %2512 = vmatprep.subr.bf16.mxu0 0
        %2513 = vmatpush1.bf16.msra.mxu0 %v2113
        %2514 = vmatprep.mubr.bf16.mxu0 %v922
        %2515 = vmatmul.mubr.bf16.gmra.mrb[0].mxu0 %v921
        %v2516 = vpop.f32.mrb[0].mxu0
        %v2517 = vadd.f32 %v1329, %v2516
        %v2518 = vpop.f32.mrb[0].mxu0
        %v2519 = vpop.f32.mrb[0].mxu0
        %v2520 = vpop.f32.mrb[0].mxu0
        %2521 = vdwg.mxu0
        %2522 = vmatprep.subr.bf16.mxu0 0
        %2523 = vmatpush1.bf16.msra.mxu0 %v2114
        %2524 = vmatprep.subr.bf16.mxu0 0
        %2525 = vmatpush1.bf16.msra.mxu0 %v2115
        %2526 = vmatprep.subr.bf16.mxu0 0
        %2527 = vmatpush1.bf16.msra.mxu0 %v2116
        %2528 = vmatprep.subr.bf16.mxu0 0
        %2529 = vmatpush1.bf16.msra.mxu0 %v2117
        %2530 = vmatprep.subr.bf16.mxu0 0
        %2531 = vmatpush1.bf16.msra.mxu0 %v2118
        %2532 = vmatprep.subr.bf16.mxu0 0
        %2533 = vmatpush1.bf16.msra.mxu0 %v2119
        %2534 = vmatprep.subr.bf16.mxu0 0
        %2535 = vmatpush1.bf16.msra.mxu0 %v2120
        %2536 = vmatprep.subr.bf16.mxu0 0
        %2537 = vmatpush1.bf16.msra.mxu0 %v2121
        %2538 = vmatprep.subr.bf16.mxu0 0
        %2539 = vmatpush1.bf16.msra.mxu0 %v2122
        %2540 = vmatprep.subr.bf16.mxu0 0
        %2541 = vmatpush1.bf16.msra.mxu0 %v2123
        %2542 = vmatprep.subr.bf16.mxu0 0
        %2543 = vmatpush1.bf16.msra.mxu0 %v2124
        %2544 = vmatprep.subr.bf16.mxu0 0
        %2545 = vmatpush1.bf16.msra.mxu0 %v2125
        %2546 = vmatprep.subr.bf16.mxu0 0
        %2547 = vmatpush1.bf16.msra.mxu0 %v2126
        %2548 = vmatprep.subr.bf16.mxu0 0
        %2549 = vmatpush1.bf16.msra.mxu0 %v2127
        %2550 = vmatprep.subr.bf16.mxu0 0
        %2551 = vmatpush1.bf16.msra.mxu0 %v2128
        %2552 = vmatprep.subr.bf16.mxu0 0
        %2553 = vmatpush1.bf16.msra.mxu0 %v2129
        %2554 = vmatprep.mubr.bf16.mxu0 %v924
        %2555 = vmatmul.mubr.bf16.gmra.mrb[0].mxu0 %v923
        %v2556 = vpop.f32.mrb[0].mxu0
        %v2557 = vadd.f32 %v2517, %v2556
        %v2558 = vpop.f32.mrb[0].mxu0
        %v2559 = vpop.f32.mrb[0].mxu0
        %v2560 = vpop.f32.mrb[0].mxu0
        %2561 = vdwg.mxu0
        %2562 = vmatprep.subr.bf16.mxu0 0
        %2563 = vmatpush1.bf16.msra.mxu0 %v2130
        %2564 = vmatprep.subr.bf16.mxu0 0
        %2565 = vmatpush1.bf16.msra.mxu0 %v2131
        %2566 = vmatprep.subr.bf16.mxu0 0
        %2567 = vmatpush1.bf16.msra.mxu0 %v2132
        %2568 = vmatprep.subr.bf16.mxu0 0
        %2569 = vmatpush1.bf16.msra.mxu0 %v2133
        %2570 = vmatprep.subr.bf16.mxu0 0
        %2571 = vmatpush1.bf16.msra.mxu0 %v2134
        %2572 = vmatprep.subr.bf16.mxu0 0
        %2573 = vmatpush1.bf16.msra.mxu0 %v2135
        %2574 = vmatprep.subr.bf16.mxu0 0
        %2575 = vmatpush1.bf16.msra.mxu0 %v2136
        %2576 = vmatprep.subr.bf16.mxu0 0
        %2577 = vmatpush1.bf16.msra.mxu0 %v2137
        %2578 = vmatprep.subr.bf16.mxu0 0
        %2579 = vmatpush1.bf16.msra.mxu0 %v2138
        %2580 = vmatprep.subr.bf16.mxu0 0
        %2581 = vmatpush1.bf16.msra.mxu0 %v2139
        %2582 = vmatprep.subr.bf16.mxu0 0
        %2583 = vmatpush1.bf16.msra.mxu0 %v2140
        %2584 = vmatprep.subr.bf16.mxu0 0
        %2585 = vmatpush1.bf16.msra.mxu0 %v2141
        %2586 = vmatprep.subr.bf16.mxu0 0
        %2587 = vmatpush1.bf16.msra.mxu0 %v2142
        %2588 = vmatprep.subr.bf16.mxu0 0
        %2589 = vmatpush1.bf16.msra.mxu0 %v2143
        %2590 = vmatprep.subr.bf16.mxu0 0
        %2591 = vmatpush1.bf16.msra.mxu0 %v2144
        %2592 = vmatprep.subr.bf16.mxu0 0
        %2593 = vmatpush1.bf16.msra.mxu0 %v2145
        %2594 = vmatprep.mubr.bf16.mxu0 %v926
        %2595 = vmatmul.mubr.bf16.gmra.mrb[0].mxu0 %v925
        %v2596 = vpop.f32.mrb[0].mxu0
        %v2597 = vadd.f32 %v2557, %v2596
        %v2598 = vpop.f32.mrb[0].mxu0
        %v2599 = vpop.f32.mrb[0].mxu0
        %v2600 = vpop.f32.mrb[0].mxu0
        %2601 = vdwg.mxu0
        %2602 = vmatprep.subr.bf16.mxu0 0
        %2603 = vmatpush1.bf16.msra.mxu0 %v2146
        %2604 = vmatprep.subr.bf16.mxu0 0
        %2605 = vmatpush1.bf16.msra.mxu0 %v2147
        %2606 = vmatprep.subr.bf16.mxu0 0
        %2607 = vmatpush1.bf16.msra.mxu0 %v2148
        %2608 = vmatprep.subr.bf16.mxu0 0
        %2609 = vmatpush1.bf16.msra.mxu0 %v2149
        %2610 = vmatprep.subr.bf16.mxu0 0
        %2611 = vmatpush1.bf16.msra.mxu0 %v2150
        %2612 = vmatprep.subr.bf16.mxu0 0
        %2613 = vmatpush1.bf16.msra.mxu0 %v2151
        %2614 = vmatprep.subr.bf16.mxu0 0
        %2615 = vmatpush1.bf16.msra.mxu0 %v2152
        %2616 = vmatprep.subr.bf16.mxu0 0
        %2617 = vmatpush1.bf16.msra.mxu0 %v2153
        %2618 = vmatprep.subr.bf16.mxu0 0
        %2619 = vmatpush1.bf16.msra.mxu0 %v2154
        %2620 = vmatprep.subr.bf16.mxu0 0
        %2621 = vmatpush1.bf16.msra.mxu0 %v2155
        %2622 = vmatprep.subr.bf16.mxu0 0
        %2623 = vmatpush1.bf16.msra.mxu0 %v2156
        %2624 = vmatprep.subr.bf16.mxu0 0
        %2625 = vmatpush1.bf16.msra.mxu0 %v2157
        %2626 = vmatprep.subr.bf16.mxu0 0
        %2627 = vmatpush1.bf16.msra.mxu0 %v2158
        %2628 = vmatprep.subr.bf16.mxu0 0
        %2629 = vmatpush1.bf16.msra.mxu0 %v2159
        %2630 = vmatprep.subr.bf16.mxu0 0
        %2631 = vmatpush1.bf16.msra.mxu0 %v2160
        %2632 = vmatprep.subr.bf16.mxu0 0
        %2633 = vmatpush1.bf16.msra.mxu0 %v2161
        %2634 = vmatprep.mubr.bf16.mxu0 %v928
        %2635 = vmatmul.mubr.bf16.gmra.mrb[0].mxu0 %v927
        %v2636 = vpop.f32.mrb[0].mxu0
        %v2637 = vadd.f32 %v2597, %v2636
        %v2638 = vpop.f32.mrb[0].mxu0
        %v2639 = vpop.f32.mrb[0].mxu0
        %v2640 = vpop.f32.mrb[0].mxu0
        %2641 = vdwg.mxu0
        %2642 = vmatprep.subr.bf16.mxu0 0
        %2643 = vmatpush1.bf16.msra.mxu0 %v2162
        %2644 = vmatprep.subr.bf16.mxu0 0
        %2645 = vmatpush1.bf16.msra.mxu0 %v2163
        %2646 = vmatprep.subr.bf16.mxu0 0
        %2647 = vmatpush1.bf16.msra.mxu0 %v2164
        %2648 = vmatprep.subr.bf16.mxu0 0
        %2649 = vmatpush1.bf16.msra.mxu0 %v2165
        %2650 = vmatprep.subr.bf16.mxu0 0
        %2651 = vmatpush1.bf16.msra.mxu0 %v2166
        %2652 = vmatprep.subr.bf16.mxu0 0
        %2653 = vmatpush1.bf16.msra.mxu0 %v2167
        %2654 = vmatprep.subr.bf16.mxu0 0
        %2655 = vmatpush1.bf16.msra.mxu0 %v2168
        %2656 = vmatprep.subr.bf16.mxu0 0
        %2657 = vmatpush1.bf16.msra.mxu0 %v2169
        %2658 = vmatprep.subr.bf16.mxu0 0
        %2659 = vmatpush1.bf16.msra.mxu0 %v2170
        %2660 = vmatprep.subr.bf16.mxu0 0
        %2661 = vmatpush1.bf16.msra.mxu0 %v2171
        %2662 = vmatprep.subr.bf16.mxu0 0
        %2663 = vmatpush1.bf16.msra.mxu0 %v2172
        %2664 = vmatprep.subr.bf16.mxu0 0
        %2665 = vmatpush1.bf16.msra.mxu0 %v2173
        %2666 = vmatprep.subr.bf16.mxu0 0
        %2667 = vmatpush1.bf16.msra.mxu0 %v2174
        %2668 = vmatprep.subr.bf16.mxu0 0
        %2669 = vmatpush1.bf16.msra.mxu0 %v2175
        %2670 = vmatprep.subr.bf16.mxu0 0
        %2671 = vmatpush1.bf16.msra.mxu0 %v2176
        %2672 = vmatprep.subr.bf16.mxu0 0
        %2673 = vmatpush1.bf16.msra.mxu0 %v2177
        %2674 = vmatprep.mubr.bf16.mxu0 %v930
        %2675 = vmatmul.mubr.bf16.gmra.mrb[0].mxu0 %v929
        %v2676 = vpop.f32.mrb[0].mxu0
        %v2677 = vadd.f32 %v2637, %v2676
        %v2678 = vpop.f32.mrb[0].mxu0
        %v2679 = vpop.f32.mrb[0].mxu0
        %v2680 = vpop.f32.mrb[0].mxu0
        %2681 = vdwg.mxu0
        %2682 = vmatprep.subr.bf16.mxu0 0
        %2683 = vmatpush1.bf16.msra.mxu0 %v2178
        %2684 = vmatprep.subr.bf16.mxu0 0
        %2685 = vmatpush1.bf16.msra.mxu0 %v2179
        %2686 = vmatprep.subr.bf16.mxu0 0
        %2687 = vmatpush1.bf16.msra.mxu0 %v2180
        %2688 = vmatprep.subr.bf16.mxu0 0
        %2689 = vmatpush1.bf16.msra.mxu0 %v2181
        %2690 = vmatprep.subr.bf16.mxu0 0
        %2691 = vmatpush1.bf16.msra.mxu0 %v2182
        %2692 = vmatprep.subr.bf16.mxu0 0
        %2693 = vmatpush1.bf16.msra.mxu0 %v2183
        %2694 = vmatprep.subr.bf16.mxu0 0
        %2695 = vmatpush1.bf16.msra.mxu0 %v2184
        %2696 = vmatprep.subr.bf16.mxu0 0
        %2697 = vmatpush1.bf16.msra.mxu0 %v2185
        %2698 = vmatprep.subr.bf16.mxu0 0
        %2699 = vmatpush1.bf16.msra.mxu0 %v2186
        %2700 = vmatprep.subr.bf16.mxu0 0
        %2701 = vmatpush1.bf16.msra.mxu0 %v2187
        %2702 = vmatprep.subr.bf16.mxu0 0
        %2703 = vmatpush1.bf16.msra.mxu0 %v2188
        %2704 = vmatprep.subr.bf16.mxu0 0
        %2705 = vmatpush1.bf16.msra.mxu0 %v2189
        %2706 = vmatprep.subr.bf16.mxu0 0
        %2707 = vmatpush1.bf16.msra.mxu0 %v2190
        %2708 = vmatprep.subr.bf16.mxu0 0
        %2709 = vmatpush1.bf16.msra.mxu0 %v2191
        %2710 = vmatprep.subr.bf16.mxu0 0
        %2711 = vmatpush1.bf16.msra.mxu0 %v2192
        %2712 = vmatprep.subr.bf16.mxu0 0
        %2713 = vmatpush1.bf16.msra.mxu0 %v2193
        %2714 = vmatprep.mubr.bf16.mxu0 %v932
        %2715 = vmatmul.mubr.bf16.gmra.mrb[0].mxu0 %v931
        %v2716 = vpop.f32.mrb[0].mxu0
        %v2717 = vadd.f32 %v2677, %v2716
        %v2718 = vpop.f32.mrb[0].mxu0
        %v2719 = vpop.f32.mrb[0].mxu0
        %v2720 = vpop.f32.mrb[0].mxu0
        %2721 = vdwg.mxu0
        %2722 = vmatprep.subr.bf16.mxu0 0
        %2723 = vmatpush1.bf16.msra.mxu0 %v2194
        %2724 = vmatprep.subr.bf16.mxu0 0
        %2725 = vmatpush1.bf16.msra.mxu0 %v2195
        %2726 = vmatprep.subr.bf16.mxu0 0
        %2727 = vmatpush1.bf16.msra.mxu0 %v2196
        %2728 = vmatprep.subr.bf16.mxu0 0
        %2729 = vmatpush1.bf16.msra.mxu0 %v2197
        %2730 = vmatprep.subr.bf16.mxu0 0
        %2731 = vmatpush1.bf16.msra.mxu0 %v2198
        %2732 = vmatprep.subr.bf16.mxu0 0
        %2733 = vmatpush1.bf16.msra.mxu0 %v2199
        %2734 = vmatprep.subr.bf16.mxu0 0
        %2735 = vmatpush1.bf16.msra.mxu0 %v2200
        %2736 = vmatprep.subr.bf16.mxu0 0
        %2737 = vmatpush1.bf16.msra.mxu0 %v2201
        %2738 = vmatprep.subr.bf16.mxu0 0
        %2739 = vmatpush1.bf16.msra.mxu0 %v2202
        %2740 = vmatprep.subr.bf16.mxu0 0
        %2741 = vmatpush1.bf16.msra.mxu0 %v2203
        %2742 = vmatprep.subr.bf16.mxu0 0
        %2743 = vmatpush1.bf16.msra.mxu0 %v2204
        %2744 = vmatprep.subr.bf16.mxu0 0
        %2745 = vmatpush1.bf16.msra.mxu0 %v2205
        %2746 = vmatprep.subr.bf16.mxu0 0
        %2747 = vmatpush1.bf16.msra.mxu0 %v2206
        %2748 = vmatprep.subr.bf16.mxu0 0
        %2749 = vmatpush1.bf16.msra.mxu0 %v2207
        %2750 = vmatprep.subr.bf16.mxu0 0
        %2751 = vmatpush1.bf16.msra.mxu0 %v2208
        %2752 = vmatprep.subr.bf16.mxu0 0
        %2753 = vmatpush1.bf16.msra.mxu0 %v2209
        %2754 = vmatprep.mubr.bf16.mxu0 %v934
        %2755 = vmatmul.mubr.bf16.gmra.mrb[0].mxu0 %v933
        %v2756 = vpop.f32.mrb[0].mxu0
        %v2757 = vadd.f32 %v2717, %v2756
        %v2758 = vpop.f32.mrb[0].mxu0
        %v2759 = vpop.f32.mrb[0].mxu0
        %v2760 = vpop.f32.mrb[0].mxu0
        %2761 = vdwg.mxu0
        %2762 = vmatprep.subr.bf16.mxu0 0
        %2763 = vmatpush1.bf16.msra.mxu0 %v2210
        %2764 = vmatprep.subr.bf16.mxu0 0
        %2765 = vmatpush1.bf16.msra.mxu0 %v2211
        %2766 = vmatprep.subr.bf16.mxu0 0
        %2767 = vmatpush1.bf16.msra.mxu0 %v2212
        %2768 = vmatprep.subr.bf16.mxu0 0
        %2769 = vmatpush1.bf16.msra.mxu0 %v2213
        %2770 = vmatprep.subr.bf16.mxu0 0
        %2771 = vmatpush1.bf16.msra.mxu0 %v2214
        %2772 = vmatprep.subr.bf16.mxu0 0
        %2773 = vmatpush1.bf16.msra.mxu0 %v2215
        %2774 = vmatprep.subr.bf16.mxu0 0
        %2775 = vmatpush1.bf16.msra.mxu0 %v2216
        %2776 = vmatprep.subr.bf16.mxu0 0
        %2777 = vmatpush1.bf16.msra.mxu0 %v2217
        %2778 = vmatprep.subr.bf16.mxu0 0
        %2779 = vmatpush1.bf16.msra.mxu0 %v2218
        %2780 = vmatprep.subr.bf16.mxu0 0
        %2781 = vmatpush1.bf16.msra.mxu0 %v2219
        %2782 = vmatprep.subr.bf16.mxu0 0
        %2783 = vmatpush1.bf16.msra.mxu0 %v2220
        %2784 = vmatprep.subr.bf16.mxu0 0
        %2785 = vmatpush1.bf16.msra.mxu0 %v2221
        %2786 = vmatprep.subr.bf16.mxu0 0
        %2787 = vmatpush1.bf16.msra.mxu0 %v2222
        %2788 = vmatprep.subr.bf16.mxu0 0
        %2789 = vmatpush1.bf16.msra.mxu0 %v2223
        %2790 = vmatprep.subr.bf16.mxu0 0
        %2791 = vmatpush1.bf16.msra.mxu0 %v2224
        %2792 = vmatprep.subr.bf16.mxu0 0
        %2793 = vmatpush1.bf16.msra.mxu0 %v2225
        %2794 = vmatprep.mubr.bf16.mxu0 %v936
        %2795 = vmatmul.mubr.bf16.gmra.mrb[0].mxu0 %v935
        %v2796 = vpop.f32.mrb[0].mxu0
        %v2797 = vadd.f32 %v2757, %v2796
        %v2798 = vpop.f32.mrb[0].mxu0
        %v2799 = vpop.f32.mrb[0].mxu0
        %v2800 = vpop.f32.mrb[0].mxu0
        %2801 = vdwg.mxu0
        %2802 = vmatprep.subr.bf16.mxu0 0
        %2803 = vmatpush1.bf16.msra.mxu0 %v2226
        %2804 = vmatprep.subr.bf16.mxu0 0
        %2805 = vmatpush1.bf16.msra.mxu0 %v2227
        %2806 = vmatprep.subr.bf16.mxu0 0
        %2807 = vmatpush1.bf16.msra.mxu0 %v2228
        %2808 = vmatprep.subr.bf16.mxu0 0
        %2809 = vmatpush1.bf16.msra.mxu0 %v2229
        %2810 = vmatprep.subr.bf16.mxu0 0
        %2811 = vmatpush1.bf16.msra.mxu0 %v2230
        %2812 = vmatprep.subr.bf16.mxu0 0
        %2813 = vmatpush1.bf16.msra.mxu0 %v2231
        %2814 = vmatprep.subr.bf16.mxu0 0
        %2815 = vmatpush1.bf16.msra.mxu0 %v2232
        %2816 = vmatprep.subr.bf16.mxu0 0
        %2817 = vmatpush1.bf16.msra.mxu0 %v2233
        %2818 = vmatprep.subr.bf16.mxu0 0
        %2819 = vmatpush1.bf16.msra.mxu0 %v2234
        %2820 = vmatprep.subr.bf16.mxu0 0
        %2821 = vmatpush1.bf16.msra.mxu0 %v2235
        %2822 = vmatprep.subr.bf16.mxu0 0
        %2823 = vmatpush1.bf16.msra.mxu0 %v2236
        %2824 = vmatprep.subr.bf16.mxu0 0
        %2825 = vmatpush1.bf16.msra.mxu0 %v2237
        %2826 = vmatprep.subr.bf16.mxu0 0
        %2827 = vmatpush1.bf16.msra.mxu0 %v2238
        %2828 = vmatprep.subr.bf16.mxu0 0
        %2829 = vmatpush1.bf16.msra.mxu0 %v2239
        %2830 = vmatprep.subr.bf16.mxu0 0
        %2831 = vmatpush1.bf16.msra.mxu0 %v2240
        %2832 = vmatprep.subr.bf16.mxu0 0
        %2833 = vmatpush1.bf16.msra.mxu0 %v2241
        %2834 = vmatprep.mubr.bf16.mxu0 %v938
        %2835 = vmatmul.mubr.bf16.gmra.mrb[0].mxu0 %v937
        %v2836 = vpop.f32.mrb[0].mxu0
        %v2837 = vadd.f32 %v2797, %v2836
        %v2838 = vpop.f32.mrb[0].mxu0
        %v2839 = vpop.f32.mrb[0].mxu0
        %v2840 = vpop.f32.mrb[0].mxu0
        %2841 = vdwg.mxu0
        %2842 = vmatprep.subr.bf16.mxu0 0
        %2843 = vmatpush1.bf16.msra.mxu0 %v2242
        %2844 = vmatprep.subr.bf16.mxu0 0
        %2845 = vmatpush1.bf16.msra.mxu0 %v2243
        %2846 = vmatprep.subr.bf16.mxu0 0
        %2847 = vmatpush1.bf16.msra.mxu0 %v2244
        %2848 = vmatprep.subr.bf16.mxu0 0
        %2849 = vmatpush1.bf16.msra.mxu0 %v2245
        %2850 = vmatprep.subr.bf16.mxu0 0
        %2851 = vmatpush1.bf16.msra.mxu0 %v2246
        %2852 = vmatprep.subr.bf16.mxu0 0
        %2853 = vmatpush1.bf16.msra.mxu0 %v2247
        %2854 = vmatprep.subr.bf16.mxu0 0
        %2855 = vmatpush1.bf16.msra.mxu0 %v2248
        %2856 = vmatprep.subr.bf16.mxu0 0
        %2857 = vmatpush1.bf16.msra.mxu0 %v2249
        %2858 = vmatprep.subr.bf16.mxu0 0
        %2859 = vmatpush1.bf16.msra.mxu0 %v2250
        %2860 = vmatprep.subr.bf16.mxu0 0
        %2861 = vmatpush1.bf16.msra.mxu0 %v2251
        %2862 = vmatprep.subr.bf16.mxu0 0
        %2863 = vmatpush1.bf16.msra.mxu0 %v2252
        %2864 = vmatprep.subr.bf16.mxu0 0
        %2865 = vmatpush1.bf16.msra.mxu0 %v2253
        %2866 = vmatprep.subr.bf16.mxu0 0
        %2867 = vmatpush1.bf16.msra.mxu0 %v2254
        %2868 = vmatprep.subr.bf16.mxu0 0
        %2869 = vmatpush1.bf16.msra.mxu0 %v2255
        %2870 = vmatprep.subr.bf16.mxu0 0
        %2871 = vmatpush1.bf16.msra.mxu0 %v2256
        %2872 = vmatprep.subr.bf16.mxu0 0
        %2873 = vmatpush1.bf16.msra.mxu0 %v2257
        %2874 = vmatprep.mubr.bf16.mxu0 %v940
        %2875 = vmatmul.mubr.bf16.gmra.mrb[0].mxu0 %v939
        %v2876 = vpop.f32.mrb[0].mxu0
        %v2877 = vadd.f32 %v2837, %v2876
        %v2878 = vpop.f32.mrb[0].mxu0
        %v2879 = vpop.f32.mrb[0].mxu0
        %v2880 = vpop.f32.mrb[0].mxu0
        %2881 = vdwg.mxu0
        %2882 = vmatprep.subr.bf16.mxu0 0
        %2883 = vmatpush1.bf16.msra.mxu0 %v2258
        %2884 = vmatprep.subr.bf16.mxu0 0
        %2885 = vmatpush1.bf16.msra.mxu0 %v2259
        %2886 = vmatprep.subr.bf16.mxu0 0
        %2887 = vmatpush1.bf16.msra.mxu0 %v2260
        %2888 = vmatprep.subr.bf16.mxu0 0
        %2889 = vmatpush1.bf16.msra.mxu0 %v2261
        %2890 = vmatprep.subr.bf16.mxu0 0
        %2891 = vmatpush1.bf16.msra.mxu0 %v2262
        %2892 = vmatprep.subr.bf16.mxu0 0
        %2893 = vmatpush1.bf16.msra.mxu0 %v2263
        %2894 = vmatprep.subr.bf16.mxu0 0
        %2895 = vmatpush1.bf16.msra.mxu0 %v2264
        %2896 = vmatprep.subr.bf16.mxu0 0
        %2897 = vmatpush1.bf16.msra.mxu0 %v2265
        %2898 = vmatprep.subr.bf16.mxu0 0
        %2899 = vmatpush1.bf16.msra.mxu0 %v2266
        %2900 = vmatprep.subr.bf16.mxu0 0
        %2901 = vmatpush1.bf16.msra.mxu0 %v2267
        %2902 = vmatprep.subr.bf16.mxu0 0
        %2903 = vmatpush1.bf16.msra.mxu0 %v2268
        %2904 = vmatprep.subr.bf16.mxu0 0
        %2905 = vmatpush1.bf16.msra.mxu0 %v2269
        %2906 = vmatprep.subr.bf16.mxu0 0
        %2907 = vmatpush1.bf16.msra.mxu0 %v2270
        %2908 = vmatprep.subr.bf16.mxu0 0
        %2909 = vmatpush1.bf16.msra.mxu0 %v2271
        %2910 = vmatprep.subr.bf16.mxu0 0
        %2911 = vmatpush1.bf16.msra.mxu0 %v2272
        %2912 = vmatprep.subr.bf16.mxu0 0
        %2913 = vmatpush1.bf16.msra.mxu0 %v2273
        %2914 = vmatprep.mubr.bf16.mxu0 %v942
        %2915 = vmatmul.mubr.bf16.gmra.mrb[0].mxu0 %v941
        %v2916 = vpop.f32.mrb[0].mxu0
        %v2917 = vadd.f32 %v2877, %v2916
        %v2918 = vpop.f32.mrb[0].mxu0
        %v2919 = vpop.f32.mrb[0].mxu0
        %v2920 = vpop.f32.mrb[0].mxu0
        %2921 = vdwg.mxu0
        %2922 = vmatprep.subr.bf16.mxu0 0
        %2923 = vmatpush1.bf16.msra.mxu0 %v2274
        %2924 = vmatprep.subr.bf16.mxu0 0
        %2925 = vmatpush1.bf16.msra.mxu0 %v2275
        %2926 = vmatprep.subr.bf16.mxu0 0
        %2927 = vmatpush1.bf16.msra.mxu0 %v2276
        %2928 = vmatprep.subr.bf16.mxu0 0
        %2929 = vmatpush1.bf16.msra.mxu0 %v2277
        %2930 = vmatprep.subr.bf16.mxu0 0
        %2931 = vmatpush1.bf16.msra.mxu0 %v2278
        %2932 = vmatprep.subr.bf16.mxu0 0
        %2933 = vmatpush1.bf16.msra.mxu0 %v2279
        %2934 = vmatprep.subr.bf16.mxu0 0
        %2935 = vmatpush1.bf16.msra.mxu0 %v2280
        %2936 = vmatprep.subr.bf16.mxu0 0
        %2937 = vmatpush1.bf16.msra.mxu0 %v2281
        %2938 = vmatprep.subr.bf16.mxu0 0
        %2939 = vmatpush1.bf16.msra.mxu0 %v2282
        %2940 = vmatprep.subr.bf16.mxu0 0
        %2941 = vmatpush1.bf16.msra.mxu0 %v2283
        %2942 = vmatprep.subr.bf16.mxu0 0
        %2943 = vmatpush1.bf16.msra.mxu0 %v2284
        %2944 = vmatprep.subr.bf16.mxu0 0
        %2945 = vmatpush1.bf16.msra.mxu0 %v2285
        %2946 = vmatprep.subr.bf16.mxu0 0
        %2947 = vmatpush1.bf16.msra.mxu0 %v2286
        %2948 = vmatprep.subr.bf16.mxu0 0
        %2949 = vmatpush1.bf16.msra.mxu0 %v2287
        %2950 = vmatprep.subr.bf16.mxu0 0
        %2951 = vmatpush1.bf16.msra.mxu0 %v2288
        %2952 = vmatprep.subr.bf16.mxu0 0
        %2953 = vmatpush1.bf16.msra.mxu0 %v2289
        %2954 = vmatprep.mubr.bf16.mxu0 %v944
        %2955 = vmatmul.mubr.bf16.gmra.mrb[0].mxu0 %v943
        %v2956 = vpop.f32.mrb[0].mxu0
        %v2957 = vadd.f32 %v2917, %v2956
        %v2958 = vpop.f32.mrb[0].mxu0
        %v2959 = vpop.f32.mrb[0].mxu0
        %v2960 = vpop.f32.mrb[0].mxu0
        %2961 = vdwg.mxu0
        %2962 = vst [vmem:[#allocation2] sm:$0x1f] %v2957
      $region112: #{vit_forward.1} parent=107 // pred_fallthru
        _
      %v2963 = vld [vmem:[#allocation2] sm:$0x1f]
      %v2964 = vld [vmem:[%s844] sm:$0x1]
      %v2965 = vld [vmem:[%s847] sm:$0x1]
      %vm2966 = vcmask 1044480
      %v2967 = vsel %vm2966, %v2963, 0.0
      %2968 = vadd.xlane.f32.xlu0 %v2967
      %v2969 = vpop.xlane.xlu0 %2968
      %v2970 = vrcp.pop 128.0
      %v2971 = vmul.f32 %v2969, %v2970
      %v2972 = vsub.f32 %v2963, %v2971
      %v2973 = vmul.f32 %v2972, %v2972
      %v2974 = vsel %vm2966, %v2973, 0.0
      %2975 = vadd.xlane.f32.xlu0 %v2974
      %v2976 = vpop.xlane.xlu0 %2975
      %v2977 = vmul.f32 %v2976, %v2970
      %v2978 = vadd.f32 %v2977, 1e-06
      %v2979 = vrsqrt.pop %v2978
      %v2980 = vmul.f32 %v2972, %v2979
      %v2982 = vlaneseq
      %v2983 = vshrl.u32 %v2982, 7
      %v2984 = vsub.s32 0, %v2983
      %v2985 = vrot.slane %v2964, %v2984
      %v2987 = vmul.f32 %v2980, %v2985
      %v2989 = vlaneseq
      %v2990 = vshrl.u32 %v2989, 7
      %v2991 = vsub.s32 0, %v2990
      %v2992 = vrot.slane %v2965, %v2991
      %v2994 = vadd.f32 %v2987, %v2992
      %v2995 = vpack.c.bf16 %v2994, %v2994
      %v2996 = vld [vmem:[%s852] sm:$0xf]
      %v2997 = vld [vmem:[%s852 + $0x4] sm:$0xf]
      %v2998 = vld [vmem:[%s852 + $0x8] sm:$0xf]
      %v2999 = vld [vmem:[%s852 + $0xc] sm:$0xf]
      %v3000 = vld [vmem:[%s852 + $0x10] sm:$0xf]
      %v3001 = vld [vmem:[%s852 + $0x14] sm:$0xf]
      %v3002 = vld [vmem:[%s852 + $0x18] sm:$0xf]
      %v3003 = vld [vmem:[%s852 + $0x1c] sm:$0xf]
      %v3004 = vld [vmem:[%s852 + $0x20] sm:$0xf]
      %v3005 = vld [vmem:[%s852 + $0x24] sm:$0xf]
      %v3006 = vld [vmem:[%s852 + $0x28] sm:$0xf]
      %v3007 = vld [vmem:[%s852 + $0x2c] sm:$0xf]
      %v3008 = vld [vmem:[%s852 + $0x30] sm:$0xf]
      %v3009 = vld [vmem:[%s852 + $0x34] sm:$0xf]
      %v3010 = vld [vmem:[%s852 + $0x38] sm:$0xf]
      %v3011 = vld [vmem:[%s852 + $0x3c] sm:$0xf]
      %v3012 = vld [vmem:[%s852 + $0x40] sm:$0xf]
      %v3013 = vld [vmem:[%s852 + $0x44] sm:$0xf]
      %v3014 = vld [vmem:[%s852 + $0x48] sm:$0xf]
      %v3015 = vld [vmem:[%s852 + $0x4c] sm:$0xf]
      %v3016 = vld [vmem:[%s852 + $0x50] sm:$0xf]
      %v3017 = vld [vmem:[%s852 + $0x54] sm:$0xf]
      %v3018 = vld [vmem:[%s852 + $0x58] sm:$0xf]
      %v3019 = vld [vmem:[%s852 + $0x5c] sm:$0xf]
      %v3020 = vld [vmem:[%s852 + $0x60] sm:$0xf]
      %v3021 = vld [vmem:[%s852 + $0x64] sm:$0xf]
      %v3022 = vld [vmem:[%s852 + $0x68] sm:$0xf]
      %v3023 = vld [vmem:[%s852 + $0x6c] sm:$0xf]
      %v3024 = vld [vmem:[%s852 + $0x70] sm:$0xf]
      %v3025 = vld [vmem:[%s852 + $0x74] sm:$0xf]
      %v3026 = vld [vmem:[%s852 + $0x78] sm:$0xf]
      %v3027 = vld [vmem:[%s852 + $0x7c] sm:$0xf]
      %v3028 = vld [vmem:[%s852 + $0x80] sm:$0xf]
      %v3029 = vld [vmem:[%s852 + $0x84] sm:$0xf]
      %v3030 = vld [vmem:[%s852 + $0x88] sm:$0xf]
      %v3031 = vld [vmem:[%s852 + $0x8c] sm:$0xf]
      %v3032 = vld [vmem:[%s852 + $0x90] sm:$0xf]
      %v3033 = vld [vmem:[%s852 + $0x94] sm:$0xf]
      %v3034 = vld [vmem:[%s852 + $0x98] sm:$0xf]
      %v3035 = vld [vmem:[%s852 + $0x9c] sm:$0xf]
      %v3036 = vld [vmem:[%s852 + $0xa0] sm:$0xf]
      %v3037 = vld [vmem:[%s852 + $0xa4] sm:$0xf]
      %v3038 = vld [vmem:[%s852 + $0xa8] sm:$0xf]
      %v3039 = vld [vmem:[%s852 + $0xac] sm:$0xf]
      %v3040 = vld [vmem:[%s852 + $0xb0] sm:$0xf]
      %v3041 = vld [vmem:[%s852 + $0xb4] sm:$0xf]
      %v3042 = vld [vmem:[%s852 + $0xb8] sm:$0xf]
      %v3043 = vld [vmem:[%s852 + $0xbc] sm:$0xf]
      %v3044 = vld [vmem:[%s852 + $0xc0] sm:$0xf]
      %v3045 = vld [vmem:[%s852 + $0xc4] sm:$0xf]
      %v3046 = vld [vmem:[%s852 + $0xc8] sm:$0xf]
      %v3047 = vld [vmem:[%s852 + $0xcc] sm:$0xf]
      %v3048 = vld [vmem:[%s852 + $0xd0] sm:$0xf]
      %v3049 = vld [vmem:[%s852 + $0xd4] sm:$0xf]
      %v3050 = vld [vmem:[%s852 + $0xd8] sm:$0xf]
      %v3051 = vld [vmem:[%s852 + $0xdc] sm:$0xf]
      %v3052 = vld [vmem:[%s852 + $0xe0] sm:$0xf]
      %v3053 = vld [vmem:[%s852 + $0xe4] sm:$0xf]
      %v3054 = vld [vmem:[%s852 + $0xe8] sm:$0xf]
      %v3055 = vld [vmem:[%s852 + $0xec] sm:$0xf]
      %v3056 = vld [vmem:[%s852 + $0xf0] sm:$0xf]
      %v3057 = vld [vmem:[%s852 + $0xf4] sm:$0xf]
      %v3058 = vld [vmem:[%s852 + $0xf8] sm:$0xf]
      %v3059 = vld [vmem:[%s852 + $0xfc] sm:$0xf]
      %v3060 = vld [vmem:[%s856] sm:$0x1]
      %v3061 = vld [vmem:[%s856 + $0x1] sm:$0x1]
      %v3062 = vld [vmem:[%s856 + $0x2] sm:$0x1]
      %v3063 = vld [vmem:[%s856 + $0x3] sm:$0x1]
      %v3068 = vlaneseq
      %v3069 = vshrl.u32 %v3068, 7
      %v3070 = vsub.s32 0, %v3069
      %v3071 = vrot.slane %v3060, %v3070
      %v3072 = vlaneseq
      %v3073 = vshrl.u32 %v3072, 7
      %v3074 = vsub.s32 0, %v3073
      %v3075 = vrot.slane %v3061, %v3074
      %v3076 = vlaneseq
      %v3077 = vshrl.u32 %v3076, 7
      %v3078 = vsub.s32 0, %v3077
      %v3079 = vrot.slane %v3062, %v3078
      %v3080 = vlaneseq
      %v3081 = vshrl.u32 %v3080, 7
      %v3082 = vsub.s32 0, %v3081
      %v3083 = vrot.slane %v3063, %v3082
      %v3104 = vunpack.c.l.b16 %v2996
      %v3105 = vunpack.c.l.b16 %v2997
      %v3106 = vunpack.c.l.b16 %v2998
      %v3107 = vunpack.c.l.b16 %v2999
      %v3108 = vunpack.c.l.b16 %v3000
      %v3109 = vunpack.c.l.b16 %v3001
      %v3110 = vunpack.c.l.b16 %v3002
      %v3111 = vunpack.c.l.b16 %v3003
      %v3112 = vunpack.c.l.b16 %v3004
      %v3113 = vunpack.c.l.b16 %v3005
      %v3114 = vunpack.c.l.b16 %v3006
      %v3115 = vunpack.c.l.b16 %v3007
      %v3116 = vunpack.c.l.b16 %v3008
      %v3117 = vunpack.c.l.b16 %v3009
      %v3118 = vunpack.c.l.b16 %v3010
      %v3119 = vunpack.c.l.b16 %v3011
      %v3120 = vpack.c.b16 %v3105, %v3104
      %v3121 = vpack.c.b16 %v3107, %v3106
      %v3122 = vpack.c.b16 %v3109, %v3108
      %v3123 = vpack.c.b16 %v3111, %v3110
      %v3124 = vpack.c.b16 %v3113, %v3112
      %v3125 = vpack.c.b16 %v3115, %v3114
      %v3126 = vpack.c.b16 %v3117, %v3116
      %v3127 = vpack.c.b16 %v3119, %v3118
      %3136 = vmatprep.subr.bf16.mxu0 0
      %3137 = vmatpush1.bf16.msra.mxu0 %v3120
      %3138 = vmatprep.subr.bf16.mxu0 0
      %3139 = vmatpush1.bf16.msra.mxu0 %v3121
      %3140 = vmatprep.subr.bf16.mxu0 0
      %3141 = vmatpush1.bf16.msra.mxu0 %v3122
      %3142 = vmatprep.subr.bf16.mxu0 0
      %3143 = vmatpush1.bf16.msra.mxu0 %v3123
      %3144 = vmatprep.subr.bf16.mxu0 0
      %3145 = vmatpush1.bf16.msra.mxu0 %v3124
      %3146 = vmatprep.subr.bf16.mxu0 0
      %3147 = vmatpush1.bf16.msra.mxu0 %v3125
      %3148 = vmatprep.subr.bf16.mxu0 0
      %3149 = vmatpush1.bf16.msra.mxu0 %v3126
      %3150 = vmatprep.subr.bf16.mxu0 0
      %3151 = vmatpush1.bf16.msra.mxu0 %v3127
      %3152 = vmatprep.subr.bf16.mxu0 0
      %3153 = vmatpush1.bf16.msra.mxu0 0
      %3154 = vmatprep.subr.bf16.mxu0 0
      %3155 = vmatpush1.bf16.msra.mxu0 0
      %3156 = vmatprep.subr.bf16.mxu0 0
      %3157 = vmatpush1.bf16.msra.mxu0 0
      %3158 = vmatprep.subr.bf16.mxu0 0
      %3159 = vmatpush1.bf16.msra.mxu0 0
      %3160 = vmatprep.subr.bf16.mxu0 0
      %3161 = vmatpush1.bf16.msra.mxu0 0
      %3162 = vmatprep.subr.bf16.mxu0 0
      %3163 = vmatpush1.bf16.msra.mxu0 0
      %3164 = vmatprep.subr.bf16.mxu0 0
      %3165 = vmatpush1.bf16.msra.mxu0 0
      %3166 = vmatprep.subr.bf16.mxu0 0
      %3167 = vmatpush1.bf16.msra.mxu0 0
      %3168 = vmatprep.mubr.bf16.mxu0 0
      %3169 = vmatmul.mubr.bf16.gmra.mrb[0].mxu0 %v2995
      %v3170 = vpop.f32.mrb[0].mxu0
      %v3171 = vadd.f32 %v3071, %v3170
      %v3172 = vpop.f32.mrb[0].mxu0
      %v3173 = vpop.f32.mrb[0].mxu0
      %v3174 = vpop.f32.mrb[0].mxu0
      %3175 = vdwg.mxu0
      %v3192 = vunpack.c.l.b16 %v3012
      %v3193 = vunpack.c.l.b16 %v3013
      %v3194 = vunpack.c.l.b16 %v3014
      %v3195 = vunpack.c.l.b16 %v3015
      %v3196 = vunpack.c.l.b16 %v3016
      %v3197 = vunpack.c.l.b16 %v3017
      %v3198 = vunpack.c.l.b16 %v3018
      %v3199 = vunpack.c.l.b16 %v3019
      %v3200 = vunpack.c.l.b16 %v3020
      %v3201 = vunpack.c.l.b16 %v3021
      %v3202 = vunpack.c.l.b16 %v3022
      %v3203 = vunpack.c.l.b16 %v3023
      %v3204 = vunpack.c.l.b16 %v3024
      %v3205 = vunpack.c.l.b16 %v3025
      %v3206 = vunpack.c.l.b16 %v3026
      %v3207 = vunpack.c.l.b16 %v3027
      %v3208 = vpack.c.b16 %v3193, %v3192
      %v3209 = vpack.c.b16 %v3195, %v3194
      %v3210 = vpack.c.b16 %v3197, %v3196
      %v3211 = vpack.c.b16 %v3199, %v3198
      %v3212 = vpack.c.b16 %v3201, %v3200
      %v3213 = vpack.c.b16 %v3203, %v3202
      %v3214 = vpack.c.b16 %v3205, %v3204
      %v3215 = vpack.c.b16 %v3207, %v3206
      %3224 = vmatprep.subr.bf16.mxu0 0
      %3225 = vmatpush1.bf16.msra.mxu0 %v3208
      %3226 = vmatprep.subr.bf16.mxu0 0
      %3227 = vmatpush1.bf16.msra.mxu0 %v3209
      %3228 = vmatprep.subr.bf16.mxu0 0
      %3229 = vmatpush1.bf16.msra.mxu0 %v3210
      %3230 = vmatprep.subr.bf16.mxu0 0
      %3231 = vmatpush1.bf16.msra.mxu0 %v3211
      %3232 = vmatprep.subr.bf16.mxu0 0
      %3233 = vmatpush1.bf16.msra.mxu0 %v3212
      %3234 = vmatprep.subr.bf16.mxu0 0
      %3235 = vmatpush1.bf16.msra.mxu0 %v3213
      %3236 = vmatprep.subr.bf16.mxu0 0
      %3237 = vmatpush1.bf16.msra.mxu0 %v3214
      %3238 = vmatprep.subr.bf16.mxu0 0
      %3239 = vmatpush1.bf16.msra.mxu0 %v3215
      %3240 = vmatprep.subr.bf16.mxu0 0
      %3241 = vmatpush1.bf16.msra.mxu0 0
      %3242 = vmatprep.subr.bf16.mxu0 0
      %3243 = vmatpush1.bf16.msra.mxu0 0
      %3244 = vmatprep.subr.bf16.mxu0 0
      %3245 = vmatpush1.bf16.msra.mxu0 0
      %3246 = vmatprep.subr.bf16.mxu0 0
      %3247 = vmatpush1.bf16.msra.mxu0 0
      %3248 = vmatprep.subr.bf16.mxu0 0
      %3249 = vmatpush1.bf16.msra.mxu0 0
      %3250 = vmatprep.subr.bf16.mxu0 0
      %3251 = vmatpush1.bf16.msra.mxu0 0
      %3252 = vmatprep.subr.bf16.mxu0 0
      %3253 = vmatpush1.bf16.msra.mxu0 0
      %3254 = vmatprep.subr.bf16.mxu0 0
      %3255 = vmatpush1.bf16.msra.mxu0 0
      %3256 = vmatprep.mubr.bf16.mxu0 0
      %3257 = vmatmul.mubr.bf16.gmra.mrb[0].mxu0 %v2995
      %v3258 = vpop.f32.mrb[0].mxu0
      %v3259 = vadd.f32 %v3075, %v3258
      %v3260 = vpop.f32.mrb[0].mxu0
      %v3261 = vpop.f32.mrb[0].mxu0
      %v3262 = vpop.f32.mrb[0].mxu0
      %3263 = vdwg.mxu0
      %v3280 = vunpack.c.l.b16 %v3028
      %v3281 = vunpack.c.l.b16 %v3029
      %v3282 = vunpack.c.l.b16 %v3030
      %v3283 = vunpack.c.l.b16 %v3031
      %v3284 = vunpack.c.l.b16 %v3032
      %v3285 = vunpack.c.l.b16 %v3033
      %v3286 = vunpack.c.l.b16 %v3034
      %v3287 = vunpack.c.l.b16 %v3035
      %v3288 = vunpack.c.l.b16 %v3036
      %v3289 = vunpack.c.l.b16 %v3037
      %v3290 = vunpack.c.l.b16 %v3038
      %v3291 = vunpack.c.l.b16 %v3039
      %v3292 = vunpack.c.l.b16 %v3040
      %v3293 = vunpack.c.l.b16 %v3041
      %v3294 = vunpack.c.l.b16 %v3042
      %v3295 = vunpack.c.l.b16 %v3043
      %v3296 = vpack.c.b16 %v3281, %v3280
      %v3297 = vpack.c.b16 %v3283, %v3282
      %v3298 = vpack.c.b16 %v3285, %v3284
      %v3299 = vpack.c.b16 %v3287, %v3286
      %v3300 = vpack.c.b16 %v3289, %v3288
      %v3301 = vpack.c.b16 %v3291, %v3290
      %v3302 = vpack.c.b16 %v3293, %v3292
      %v3303 = vpack.c.b16 %v3295, %v3294
      %3312 = vmatprep.subr.bf16.mxu0 0
      %3313 = vmatpush1.bf16.msra.mxu0 %v3296
      %3314 = vmatprep.subr.bf16.mxu0 0
      %3315 = vmatpush1.bf16.msra.mxu0 %v3297
      %3316 = vmatprep.subr.bf16.mxu0 0
      %3317 = vmatpush1.bf16.msra.mxu0 %v3298
      %3318 = vmatprep.subr.bf16.mxu0 0
      %3319 = vmatpush1.bf16.msra.mxu0 %v3299
      %3320 = vmatprep.subr.bf16.mxu0 0
      %3321 = vmatpush1.bf16.msra.mxu0 %v3300
      %3322 = vmatprep.subr.bf16.mxu0 0
      %3323 = vmatpush1.bf16.msra.mxu0 %v3301
      %3324 = vmatprep.subr.bf16.mxu0 0
      %3325 = vmatpush1.bf16.msra.mxu0 %v3302
      %3326 = vmatprep.subr.bf16.mxu0 0
      %3327 = vmatpush1.bf16.msra.mxu0 %v3303
      %3328 = vmatprep.subr.bf16.mxu0 0
      %3329 = vmatpush1.bf16.msra.mxu0 0
      %3330 = vmatprep.subr.bf16.mxu0 0
      %3331 = vmatpush1.bf16.msra.mxu0 0
      %3332 = vmatprep.subr.bf16.mxu0 0
      %3333 = vmatpush1.bf16.msra.mxu0 0
      %3334 = vmatprep.subr.bf16.mxu0 0
      %3335 = vmatpush1.bf16.msra.mxu0 0
      %3336 = vmatprep.subr.bf16.mxu0 0
      %3337 = vmatpush1.bf16.msra.mxu0 0
      %3338 = vmatprep.subr.bf16.mxu0 0
      %3339 = vmatpush1.bf16.msra.mxu0 0
      %3340 = vmatprep.subr.bf16.mxu0 0
      %3341 = vmatpush1.bf16.msra.mxu0 0
      %3342 = vmatprep.subr.bf16.mxu0 0
      %3343 = vmatpush1.bf16.msra.mxu0 0
      %3344 = vmatprep.mubr.bf16.mxu0 0
      %3345 = vmatmul.mubr.bf16.gmra.mrb[0].mxu0 %v2995
      %v3346 = vpop.f32.mrb[0].mxu0
      %v3347 = vadd.f32 %v3079, %v3346
      %v3348 = vpop.f32.mrb[0].mxu0
      %v3349 = vpop.f32.mrb[0].mxu0
      %v3350 = vpop.f32.mrb[0].mxu0
      %3351 = vdwg.mxu0
      %v3368 = vunpack.c.l.b16 %v3044
      %v3369 = vunpack.c.l.b16 %v3045
      %v3370 = vunpack.c.l.b16 %v3046
      %v3371 = vunpack.c.l.b16 %v3047
      %v3372 = vunpack.c.l.b16 %v3048
      %v3373 = vunpack.c.l.b16 %v3049
      %v3374 = vunpack.c.l.b16 %v3050
      %v3375 = vunpack.c.l.b16 %v3051
      %v3376 = vunpack.c.l.b16 %v3052
      %v3377 = vunpack.c.l.b16 %v3053
      %v3378 = vunpack.c.l.b16 %v3054
      %v3379 = vunpack.c.l.b16 %v3055
      %v3380 = vunpack.c.l.b16 %v3056
      %v3381 = vunpack.c.l.b16 %v3057
      %v3382 = vunpack.c.l.b16 %v3058
      %v3383 = vunpack.c.l.b16 %v3059
      %v3384 = vpack.c.b16 %v3369, %v3368
      %v3385 = vpack.c.b16 %v3371, %v3370
      %v3386 = vpack.c.b16 %v3373, %v3372
      %v3387 = vpack.c.b16 %v3375, %v3374
      %v3388 = vpack.c.b16 %v3377, %v3376
      %v3389 = vpack.c.b16 %v3379, %v3378
      %v3390 = vpack.c.b16 %v3381, %v3380
      %v3391 = vpack.c.b16 %v3383, %v3382
      %3400 = vmatprep.subr.bf16.mxu0 0
      %3401 = vmatpush1.bf16.msra.mxu0 %v3384
      %3402 = vmatprep.subr.bf16.mxu0 0
      %3403 = vmatpush1.bf16.msra.mxu0 %v3385
      %3404 = vmatprep.subr.bf16.mxu0 0
      %3405 = vmatpush1.bf16.msra.mxu0 %v3386
      %3406 = vmatprep.subr.bf16.mxu0 0
      %3407 = vmatpush1.bf16.msra.mxu0 %v3387
      %3408 = vmatprep.subr.bf16.mxu0 0
      %3409 = vmatpush1.bf16.msra.mxu0 %v3388
      %3410 = vmatprep.subr.bf16.mxu0 0
      %3411 = vmatpush1.bf16.msra.mxu0 %v3389
      %3412 = vmatprep.subr.bf16.mxu0 0
      %3413 = vmatpush1.bf16.msra.mxu0 %v3390
      %3414 = vmatprep.subr.bf16.mxu0 0
      %3415 = vmatpush1.bf16.msra.mxu0 %v3391
      %3416 = vmatprep.subr.bf16.mxu0 0
      %3417 = vmatpush1.bf16.msra.mxu0 0
      %3418 = vmatprep.subr.bf16.mxu0 0
      %3419 = vmatpush1.bf16.msra.mxu0 0
      %3420 = vmatprep.subr.bf16.mxu0 0
      %3421 = vmatpush1.bf16.msra.mxu0 0
      %3422 = vmatprep.subr.bf16.mxu0 0
      %3423 = vmatpush1.bf16.msra.mxu0 0
      %3424 = vmatprep.subr.bf16.mxu0 0
      %3425 = vmatpush1.bf16.msra.mxu0 0
      %3426 = vmatprep.subr.bf16.mxu0 0
      %3427 = vmatpush1.bf16.msra.mxu0 0
      %3428 = vmatprep.subr.bf16.mxu0 0
      %3429 = vmatpush1.bf16.msra.mxu0 0
      %3430 = vmatprep.subr.bf16.mxu0 0
      %3431 = vmatpush1.bf16.msra.mxu0 0
      %3432 = vmatprep.mubr.bf16.mxu0 0
      %3433 = vmatmul.mubr.bf16.gmra.mrb[0].mxu0 %v2995
      %v3434 = vpop.f32.mrb[0].mxu0
      %v3435 = vadd.f32 %v3083, %v3434
      %v3436 = vpop.f32.mrb[0].mxu0
      %v3437 = vpop.f32.mrb[0].mxu0
      %v3438 = vpop.f32.mrb[0].mxu0
      %3439 = vdwg.mxu0
      %v3440 = vmul.f32 %v3171, 0.17677669
      %v3441 = vmul.f32 %v3259, 0.17677669
      %v3442 = vmul.f32 %v3347, 0.17677669
      %v3443 = vmul.f32 %v3435, 0.17677669
      %v3444 = vpack.c.bf16 %v3440, %v3440
      %v3445 = vpack.c.bf16 %v3441, %v3441
      %v3446 = vpack.c.bf16 %v3442, %v3442
      %v3447 = vpack.c.bf16 %v3443, %v3443
      %v3448 = vpack.c.bf16 %v3171, %v3171
      %v3449 = vpack.c.bf16 %v3259, %v3259
      %v3450 = vpack.c.bf16 %v3347, %v3347
      %v3451 = vpack.c.bf16 %v3435, %v3435
      %3453 = vrot.lane.b32.xlu0 %v3448, 96
      %v3454 = vpop.permute.xlu0 %3453
      %vm3455 = vcmask 261120
      %v3457 = vsel %vm3455, %v3444, 0
      %v3460 = vsel %vm3455, %v3454, 0
      %3462 = vmatprep.subr.bf16.mxu0 0
      %3463 = vmatpush1.bf16.xpose.msra.mxu0 %v3460
      %3464 = vmatprep.subr.bf16.mxu0 0
      %3465 = vmatpush1.bf16.xpose.msra.mxu0 0
      %3466 = vmatprep.subr.bf16.mxu0 0
      %3467 = vmatpush1.bf16.xpose.msra.mxu0 0
      %3468 = vmatprep.subr.bf16.mxu0 0
      %3469 = vmatpush1.bf16.xpose.msra.mxu0 0
      %3470 = vmatprep.subr.bf16.mxu0 0
      %3471 = vmatpush1.bf16.xpose.msra.mxu0 0
      %3472 = vmatprep.subr.bf16.mxu0 0
      %3473 = vmatpush1.bf16.xpose.msra.mxu0 0
      %3474 = vmatprep.subr.bf16.mxu0 0
      %3475 = vmatpush1.bf16.xpose.msra.mxu0 0
      %3476 = vmatprep.subr.bf16.mxu0 0
      %3477 = vmatpush1.bf16.xpose.msra.mxu0 0
      %3478 = vmatprep.subr.bf16.mxu0 0
      %3479 = vmatpush1.bf16.xpose.msra.mxu0 0
      %3480 = vmatprep.subr.bf16.mxu0 0
      %3481 = vmatpush1.bf16.xpose.msra.mxu0 0
      %3482 = vmatprep.subr.bf16.mxu0 0
      %3483 = vmatpush1.bf16.xpose.msra.mxu0 0
      %3484 = vmatprep.subr.bf16.mxu0 0
      %3485 = vmatpush1.bf16.xpose.msra.mxu0 0
      %3486 = vmatprep.subr.bf16.mxu0 0
      %3487 = vmatpush1.bf16.xpose.msra.mxu0 0
      %3488 = vmatprep.subr.bf16.mxu0 0
      %3489 = vmatpush1.bf16.xpose.msra.mxu0 0
      %3490 = vmatprep.subr.bf16.mxu0 0
      %3491 = vmatpush1.bf16.xpose.msra.mxu0 0
      %3492 = vmatprep.subr.bf16.mxu0 0
      %3493 = vmatpush1.bf16.xpose.msra.mxu0 0
      %3494 = vmatprep.mubr.bf16.mxu0 0
      %3495 = vmatmul.mubr.bf16.gmra.mrb[0].mxu0 %v3457
      %v3496 = vpop.f32.mrb[0].mxu0
      %v3497 = vadd.f32 0.0, %v3496
      %v3498 = vpop.f32.mrb[0].mxu0
      %v3499 = vpop.f32.mrb[0].mxu0
      %v3500 = vpop.f32.mrb[0].mxu0
      %3501 = vdwg.mxu0
      %3503 = vrot.lane.b32.xlu0 %v3449, 96
      %v3504 = vpop.permute.xlu0 %3503
      %v3506 = vsel %vm3455, %v3445, 0
      %v3509 = vsel %vm3455, %v3504, 0
      %3511 = vmatprep.subr.bf16.mxu0 0
      %3512 = vmatpush1.bf16.xpose.msra.mxu0 %v3509
      %3513 = vmatprep.subr.bf16.mxu0 0
      %3514 = vmatpush1.bf16.xpose.msra.mxu0 0
      %3515 = vmatprep.subr.bf16.mxu0 0
      %3516 = vmatpush1.bf16.xpose.msra.mxu0 0
      %3517 = vmatprep.subr.bf16.mxu0 0
      %3518 = vmatpush1.bf16.xpose.msra.mxu0 0
      %3519 = vmatprep.subr.bf16.mxu0 0
      %3520 = vmatpush1.bf16.xpose.msra.mxu0 0
      %3521 = vmatprep.subr.bf16.mxu0 0
      %3522 = vmatpush1.bf16.xpose.msra.mxu0 0
      %3523 = vmatprep.subr.bf16.mxu0 0
      %3524 = vmatpush1.bf16.xpose.msra.mxu0 0
      %3525 = vmatprep.subr.bf16.mxu0 0
      %3526 = vmatpush1.bf16.xpose.msra.mxu0 0
      %3527 = vmatprep.subr.bf16.mxu0 0
      %3528 = vmatpush1.bf16.xpose.msra.mxu0 0
      %3529 = vmatprep.subr.bf16.mxu0 0
      %3530 = vmatpush1.bf16.xpose.msra.mxu0 0
      %3531 = vmatprep.subr.bf16.mxu0 0
      %3532 = vmatpush1.bf16.xpose.msra.mxu0 0
      %3533 = vmatprep.subr.bf16.mxu0 0
      %3534 = vmatpush1.bf16.xpose.msra.mxu0 0
      %3535 = vmatprep.subr.bf16.mxu0 0
      %3536 = vmatpush1.bf16.xpose.msra.mxu0 0
      %3537 = vmatprep.subr.bf16.mxu0 0
      %3538 = vmatpush1.bf16.xpose.msra.mxu0 0
      %3539 = vmatprep.subr.bf16.mxu0 0
      %3540 = vmatpush1.bf16.xpose.msra.mxu0 0
      %3541 = vmatprep.subr.bf16.mxu0 0
      %3542 = vmatpush1.bf16.xpose.msra.mxu0 0
      %3543 = vmatprep.mubr.bf16.mxu0 0
      %3544 = vmatmul.mubr.bf16.gmra.mrb[0].mxu0 %v3506
      %v3545 = vpop.f32.mrb[0].mxu0
      %v3546 = vadd.f32 0.0, %v3545
      %v3547 = vpop.f32.mrb[0].mxu0
      %v3548 = vpop.f32.mrb[0].mxu0
      %v3549 = vpop.f32.mrb[0].mxu0
      %3550 = vdwg.mxu0
      %3552 = vrot.lane.b32.xlu0 %v3450, 96
      %v3553 = vpop.permute.xlu0 %3552
      %v3555 = vsel %vm3455, %v3446, 0
      %v3558 = vsel %vm3455, %v3553, 0
      %3560 = vmatprep.subr.bf16.mxu0 0
      %3561 = vmatpush1.bf16.xpose.msra.mxu0 %v3558
      %3562 = vmatprep.subr.bf16.mxu0 0
      %3563 = vmatpush1.bf16.xpose.msra.mxu0 0
      %3564 = vmatprep.subr.bf16.mxu0 0
      %3565 = vmatpush1.bf16.xpose.msra.mxu0 0
      %3566 = vmatprep.subr.bf16.mxu0 0
      %3567 = vmatpush1.bf16.xpose.msra.mxu0 0
      %3568 = vmatprep.subr.bf16.mxu0 0
      %3569 = vmatpush1.bf16.xpose.msra.mxu0 0
      %3570 = vmatprep.subr.bf16.mxu0 0
      %3571 = vmatpush1.bf16.xpose.msra.mxu0 0
      %3572 = vmatprep.subr.bf16.mxu0 0
      %3573 = vmatpush1.bf16.xpose.msra.mxu0 0
      %3574 = vmatprep.subr.bf16.mxu0 0
      %3575 = vmatpush1.bf16.xpose.msra.mxu0 0
      %3576 = vmatprep.subr.bf16.mxu0 0
      %3577 = vmatpush1.bf16.xpose.msra.mxu0 0
      %3578 = vmatprep.subr.bf16.mxu0 0
      %3579 = vmatpush1.bf16.xpose.msra.mxu0 0
      %3580 = vmatprep.subr.bf16.mxu0 0
      %3581 = vmatpush1.bf16.xpose.msra.mxu0 0
      %3582 = vmatprep.subr.bf16.mxu0 0
      %3583 = vmatpush1.bf16.xpose.msra.mxu0 0
      %3584 = vmatprep.subr.bf16.mxu0 0
      %3585 = vmatpush1.bf16.xpose.msra.mxu0 0
      %3586 = vmatprep.subr.bf16.mxu0 0
      %3587 = vmatpush1.bf16.xpose.msra.mxu0 0
      %3588 = vmatprep.subr.bf16.mxu0 0
      %3589 = vmatpush1.bf16.xpose.msra.mxu0 0
      %3590 = vmatprep.subr.bf16.mxu0 0
      %3591 = vmatpush1.bf16.xpose.msra.mxu0 0
      %3592 = vmatprep.mubr.bf16.mxu0 0
      %3593 = vmatmul.mubr.bf16.gmra.mrb[0].mxu0 %v3555
      %v3594 = vpop.f32.mrb[0].mxu0
      %v3595 = vadd.f32 0.0, %v3594
      %v3596 = vpop.f32.mrb[0].mxu0
      %v3597 = vpop.f32.mrb[0].mxu0
      %v3598 = vpop.f32.mrb[0].mxu0
      %3599 = vdwg.mxu0
      %3601 = vrot.lane.b32.xlu0 %v3451, 96
      %v3602 = vpop.permute.xlu0 %3601
      %v3604 = vsel %vm3455, %v3447, 0
      %v3607 = vsel %vm3455, %v3602, 0
      %3609 = vmatprep.subr.bf16.mxu0 0
      %3610 = vmatpush1.bf16.xpose.msra.mxu0 %v3607
      %3611 = vmatprep.subr.bf16.mxu0 0
      %3612 = vmatpush1.bf16.xpose.msra.mxu0 0
      %3613 = vmatprep.subr.bf16.mxu0 0
      %3614 = vmatpush1.bf16.xpose.msra.mxu0 0
      %3615 = vmatprep.subr.bf16.mxu0 0
      %3616 = vmatpush1.bf16.xpose.msra.mxu0 0
      %3617 = vmatprep.subr.bf16.mxu0 0
      %3618 = vmatpush1.bf16.xpose.msra.mxu0 0
      %3619 = vmatprep.subr.bf16.mxu0 0
      %3620 = vmatpush1.bf16.xpose.msra.mxu0 0
      %3621 = vmatprep.subr.bf16.mxu0 0
      %3622 = vmatpush1.bf16.xpose.msra.mxu0 0
      %3623 = vmatprep.subr.bf16.mxu0 0
      %3624 = vmatpush1.bf16.xpose.msra.mxu0 0
      %3625 = vmatprep.subr.bf16.mxu0 0
      %3626 = vmatpush1.bf16.xpose.msra.mxu0 0
      %3627 = vmatprep.subr.bf16.mxu0 0
      %3628 = vmatpush1.bf16.xpose.msra.mxu0 0
      %3629 = vmatprep.subr.bf16.mxu0 0
      %3630 = vmatpush1.bf16.xpose.msra.mxu0 0
      %3631 = vmatprep.subr.bf16.mxu0 0
      %3632 = vmatpush1.bf16.xpose.msra.mxu0 0
      %3633 = vmatprep.subr.bf16.mxu0 0
      %3634 = vmatpush1.bf16.xpose.msra.mxu0 0
      %3635 = vmatprep.subr.bf16.mxu0 0
      %3636 = vmatpush1.bf16.xpose.msra.mxu0 0
      %3637 = vmatprep.subr.bf16.mxu0 0
      %3638 = vmatpush1.bf16.xpose.msra.mxu0 0
      %3639 = vmatprep.subr.bf16.mxu0 0
      %3640 = vmatpush1.bf16.xpose.msra.mxu0 0
      %3641 = vmatprep.mubr.bf16.mxu0 0
      %3642 = vmatmul.mubr.bf16.gmra.mrb[0].mxu0 %v3604
      %v3643 = vpop.f32.mrb[0].mxu0
      %v3644 = vadd.f32 0.0, %v3643
      %v3645 = vpop.f32.mrb[0].mxu0
      %v3646 = vpop.f32.mrb[0].mxu0
      %v3647 = vpop.f32.mrb[0].mxu0
      %3648 = vdwg.mxu0
      %vm3649 = vcmask 36864
      %v3650 = vsel %vm3649, %v3497, -inf
      %3651 = vmax.xlane.f32.xlu0 %v3650
      %v3652 = vpop.xlane.xlu0 %3651
      %v3653 = vsel %vm3649, %v3546, -inf
      %3654 = vmax.xlane.f32.xlu0 %v3653
      %v3655 = vpop.xlane.xlu0 %3654
      %v3656 = vsel %vm3649, %v3595, -inf
      %3657 = vmax.xlane.f32.xlu0 %v3656
      %v3658 = vpop.xlane.xlu0 %3657
      %v3659 = vsel %vm3649, %v3644, -inf
      %3660 = vmax.xlane.f32.xlu0 %v3659
      %v3661 = vpop.xlane.xlu0 %3660
      %v3662 = vsub.f32 %v3497, %v3652
      %v3663 = vsub.f32 %v3546, %v3655
      %v3664 = vsub.f32 %v3595, %v3658
      %v3665 = vsub.f32 %v3644, %v3661
      %v3666 = vmul.f32 %v3662, 1.442695
      %v3667 = vpow.pop %v3666
      %v3668 = vmul.f32 %v3663, 1.442695
      %v3669 = vpow.pop %v3668
      %v3670 = vmul.f32 %v3664, 1.442695
      %v3671 = vpow.pop %v3670
      %v3672 = vmul.f32 %v3665, 1.442695
      %v3673 = vpow.pop %v3672
      %v3674 = vsel %vm3649, %v3667, 0.0
      %3675 = vadd.xlane.f32.xlu0 %v3674
      %v3676 = vpop.xlane.xlu0 %3675
      %v3677 = vsel %vm3649, %v3669, 0.0
      %3678 = vadd.xlane.f32.xlu0 %v3677
      %v3679 = vpop.xlane.xlu0 %3678
      %v3680 = vsel %vm3649, %v3671, 0.0
      %3681 = vadd.xlane.f32.xlu0 %v3680
      %v3682 = vpop.xlane.xlu0 %3681
      %v3683 = vsel %vm3649, %v3673, 0.0
      %3684 = vadd.xlane.f32.xlu0 %v3683
      %v3685 = vpop.xlane.xlu0 %3684
      %v3686 = vrcp.pop %v3676
      %v3687 = vmul.f32 %v3667, %v3686
      %v3688 = vrcp.pop %v3679
      %v3689 = vmul.f32 %v3669, %v3688
      %v3690 = vrcp.pop %v3682
      %v3691 = vmul.f32 %v3671, %v3690
      %v3692 = vrcp.pop %v3685
      %v3693 = vmul.f32 %v3673, %v3692
      %v3694 = vpack.c.bf16 %v3687, %v3687
      %v3695 = vpack.c.bf16 %v3689, %v3689
      %v3696 = vpack.c.bf16 %v3691, %v3691
      %v3697 = vpack.c.bf16 %v3693, %v3693
      %3698 = vrot.lane.b32.xlu0 %v3448, 64
      %v3699 = vpop.permute.xlu0 %3698
      %vm3700 = vcmask 39936
      %v3702 = vsel %vm3700, %v3694, 0
      %vm3704 = vcmask 1041408
      %vm3705 = vcmask 1042432
      %v3706 = vsel %vm3704, 4294967295, 65535
      %v3707 = vsel %vm3705, %v3706, 0
      %v3709 = vand.u32 %v3699, %v3707
      %3711 = vmatprep.subr.bf16.mxu0 0
      %3712 = vmatpush1.bf16.msra.mxu0 %v3709
      %3713 = vmatprep.subr.bf16.mxu0 0
      %3714 = vmatpush1.bf16.msra.mxu0 0
      %3715 = vmatprep.subr.bf16.mxu0 0
      %3716 = vmatpush1.bf16.msra.mxu0 0
      %3717 = vmatprep.subr.bf16.mxu0 0
      %3718 = vmatpush1.bf16.msra.mxu0 0
      %3719 = vmatprep.subr.bf16.mxu0 0
      %3720 = vmatpush1.bf16.msra.mxu0 0
      %3721 = vmatprep.subr.bf16.mxu0 0
      %3722 = vmatpush1.bf16.msra.mxu0 0
      %3723 = vmatprep.subr.bf16.mxu0 0
      %3724 = vmatpush1.bf16.msra.mxu0 0
      %3725 = vmatprep.subr.bf16.mxu0 0
      %3726 = vmatpush1.bf16.msra.mxu0 0
      %3727 = vmatprep.subr.bf16.mxu0 0
      %3728 = vmatpush1.bf16.msra.mxu0 0
      %3729 = vmatprep.subr.bf16.mxu0 0
      %3730 = vmatpush1.bf16.msra.mxu0 0
      %3731 = vmatprep.subr.bf16.mxu0 0
      %3732 = vmatpush1.bf16.msra.mxu0 0
      %3733 = vmatprep.subr.bf16.mxu0 0
      %3734 = vmatpush1.bf16.msra.mxu0 0
      %3735 = vmatprep.subr.bf16.mxu0 0
      %3736 = vmatpush1.bf16.msra.mxu0 0
      %3737 = vmatprep.subr.bf16.mxu0 0
      %3738 = vmatpush1.bf16.msra.mxu0 0
      %3739 = vmatprep.subr.bf16.mxu0 0
      %3740 = vmatpush1.bf16.msra.mxu0 0
      %3741 = vmatprep.subr.bf16.mxu0 0
      %3742 = vmatpush1.bf16.msra.mxu0 0
      %3743 = vmatprep.mubr.bf16.mxu0 0
      %3744 = vmatmul.mubr.bf16.gmra.mrb[0].mxu0 %v3702
      %v3745 = vpop.f32.mrb[0].mxu0
      %v3746 = vadd.f32 0.0, %v3745
      %v3747 = vpop.f32.mrb[0].mxu0
      %v3748 = vpop.f32.mrb[0].mxu0
      %v3749 = vpop.f32.mrb[0].mxu0
      %3750 = vdwg.mxu0
      %3751 = vrot.lane.b32.xlu0 %v3449, 64
      %v3752 = vpop.permute.xlu0 %3751
      %v3754 = vsel %vm3700, %v3695, 0
      %v3757 = vand.u32 %v3752, %v3707
      %3759 = vmatprep.subr.bf16.mxu0 0
      %3760 = vmatpush1.bf16.msra.mxu0 %v3757
      %3761 = vmatprep.subr.bf16.mxu0 0
      %3762 = vmatpush1.bf16.msra.mxu0 0
      %3763 = vmatprep.subr.bf16.mxu0 0
      %3764 = vmatpush1.bf16.msra.mxu0 0
      %3765 = vmatprep.subr.bf16.mxu0 0
      %3766 = vmatpush1.bf16.msra.mxu0 0
      %3767 = vmatprep.subr.bf16.mxu0 0
      %3768 = vmatpush1.bf16.msra.mxu0 0
      %3769 = vmatprep.subr.bf16.mxu0 0
      %3770 = vmatpush1.bf16.msra.mxu0 0
      %3771 = vmatprep.subr.bf16.mxu0 0
      %3772 = vmatpush1.bf16.msra.mxu0 0
      %3773 = vmatprep.subr.bf16.mxu0 0
      %3774 = vmatpush1.bf16.msra.mxu0 0
      %3775 = vmatprep.subr.bf16.mxu0 0
      %3776 = vmatpush1.bf16.msra.mxu0 0
      %3777 = vmatprep.subr.bf16.mxu0 0
      %3778 = vmatpush1.bf16.msra.mxu0 0
      %3779 = vmatprep.subr.bf16.mxu0 0
      %3780 = vmatpush1.bf16.msra.mxu0 0
      %3781 = vmatprep.subr.bf16.mxu0 0
      %3782 = vmatpush1.bf16.msra.mxu0 0
      %3783 = vmatprep.subr.bf16.mxu0 0
      %3784 = vmatpush1.bf16.msra.mxu0 0
      %3785 = vmatprep.subr.bf16.mxu0 0
      %3786 = vmatpush1.bf16.msra.mxu0 0
      %3787 = vmatprep.subr.bf16.mxu0 0
      %3788 = vmatpush1.bf16.msra.mxu0 0
      %3789 = vmatprep.subr.bf16.mxu0 0
      %3790 = vmatpush1.bf16.msra.mxu0 0
      %3791 = vmatprep.mubr.bf16.mxu0 0
      %3792 = vmatmul.mubr.bf16.gmra.mrb[0].mxu0 %v3754
      %v3793 = vpop.f32.mrb[0].mxu0
      %v3794 = vadd.f32 0.0, %v3793
      %v3795 = vpop.f32.mrb[0].mxu0
      %v3796 = vpop.f32.mrb[0].mxu0
      %v3797 = vpop.f32.mrb[0].mxu0
      %3798 = vdwg.mxu0
      %3799 = vrot.lane.b32.xlu0 %v3450, 64
      %v3800 = vpop.permute.xlu0 %3799
      %v3802 = vsel %vm3700, %v3696, 0
      %v3805 = vand.u32 %v3800, %v3707
      %3807 = vmatprep.subr.bf16.mxu0 0
      %3808 = vmatpush1.bf16.msra.mxu0 %v3805
      %3809 = vmatprep.subr.bf16.mxu0 0
      %3810 = vmatpush1.bf16.msra.mxu0 0
      %3811 = vmatprep.subr.bf16.mxu0 0
      %3812 = vmatpush1.bf16.msra.mxu0 0
      %3813 = vmatprep.subr.bf16.mxu0 0
      %3814 = vmatpush1.bf16.msra.mxu0 0
      %3815 = vmatprep.subr.bf16.mxu0 0
      %3816 = vmatpush1.bf16.msra.mxu0 0
      %3817 = vmatprep.subr.bf16.mxu0 0
      %3818 = vmatpush1.bf16.msra.mxu0 0
      %3819 = vmatprep.subr.bf16.mxu0 0
      %3820 = vmatpush1.bf16.msra.mxu0 0
      %3821 = vmatprep.subr.bf16.mxu0 0
      %3822 = vmatpush1.bf16.msra.mxu0 0
      %3823 = vmatprep.subr.bf16.mxu0 0
      %3824 = vmatpush1.bf16.msra.mxu0 0
      %3825 = vmatprep.subr.bf16.mxu0 0
      %3826 = vmatpush1.bf16.msra.mxu0 0
      %3827 = vmatprep.subr.bf16.mxu0 0
      %3828 = vmatpush1.bf16.msra.mxu0 0
      %3829 = vmatprep.subr.bf16.mxu0 0
      %3830 = vmatpush1.bf16.msra.mxu0 0
      %3831 = vmatprep.subr.bf16.mxu0 0
      %3832 = vmatpush1.bf16.msra.mxu0 0
      %3833 = vmatprep.subr.bf16.mxu0 0
      %3834 = vmatpush1.bf16.msra.mxu0 0
      %3835 = vmatprep.subr.bf16.mxu0 0
      %3836 = vmatpush1.bf16.msra.mxu0 0
      %3837 = vmatprep.subr.bf16.mxu0 0
      %3838 = vmatpush1.bf16.msra.mxu0 0
      %3839 = vmatprep.mubr.bf16.mxu0 0
      %3840 = vmatmul.mubr.bf16.gmra.mrb[0].mxu0 %v3802
      %v3841 = vpop.f32.mrb[0].mxu0
      %v3842 = vadd.f32 0.0, %v3841
      %v3843 = vpop.f32.mrb[0].mxu0
      %v3844 = vpop.f32.mrb[0].mxu0
      %v3845 = vpop.f32.mrb[0].mxu0
      %3846 = vdwg.mxu0
      %3847 = vrot.lane.b32.xlu0 %v3451, 64
      %v3848 = vpop.permute.xlu0 %3847
      %v3850 = vsel %vm3700, %v3697, 0
      %v3853 = vand.u32 %v3848, %v3707
      %3855 = vmatprep.subr.bf16.mxu0 0
      %3856 = vmatpush1.bf16.msra.mxu0 %v3853
      %3857 = vmatprep.subr.bf16.mxu0 0
      %3858 = vmatpush1.bf16.msra.mxu0 0
      %3859 = vmatprep.subr.bf16.mxu0 0
      %3860 = vmatpush1.bf16.msra.mxu0 0
      %3861 = vmatprep.subr.bf16.mxu0 0
      %3862 = vmatpush1.bf16.msra.mxu0 0
      %3863 = vmatprep.subr.bf16.mxu0 0
      %3864 = vmatpush1.bf16.msra.mxu0 0
      %3865 = vmatprep.subr.bf16.mxu0 0
      %3866 = vmatpush1.bf16.msra.mxu0 0
      %3867 = vmatprep.subr.bf16.mxu0 0
      %3868 = vmatpush1.bf16.msra.mxu0 0
      %3869 = vmatprep.subr.bf16.mxu0 0
      %3870 = vmatpush1.bf16.msra.mxu0 0
      %3871 = vmatprep.subr.bf16.mxu0 0
      %3872 = vmatpush1.bf16.msra.mxu0 0
      %3873 = vmatprep.subr.bf16.mxu0 0
      %3874 = vmatpush1.bf16.msra.mxu0 0
      %3875 = vmatprep.subr.bf16.mxu0 0
      %3876 = vmatpush1.bf16.msra.mxu0 0
      %3877 = vmatprep.subr.bf16.mxu0 0
      %3878 = vmatpush1.bf16.msra.mxu0 0
      %3879 = vmatprep.subr.bf16.mxu0 0
      %3880 = vmatpush1.bf16.msra.mxu0 0
      %3881 = vmatprep.subr.bf16.mxu0 0
      %3882 = vmatpush1.bf16.msra.mxu0 0
      %3883 = vmatprep.subr.bf16.mxu0 0
      %3884 = vmatpush1.bf16.msra.mxu0 0
      %3885 = vmatprep.subr.bf16.mxu0 0
      %3886 = vmatpush1.bf16.msra.mxu0 0
      %3887 = vmatprep.mubr.bf16.mxu0 0
      %3888 = vmatmul.mubr.bf16.gmra.mrb[0].mxu0 %v3850
      %v3889 = vpop.f32.mrb[0].mxu0
      %v3890 = vadd.f32 0.0, %v3889
      %v3891 = vpop.f32.mrb[0].mxu0
      %v3892 = vpop.f32.mrb[0].mxu0
      %v3893 = vpop.f32.mrb[0].mxu0
      %3894 = vdwg.mxu0
      %v3895 = vpack.c.bf16 %v3746, %v3746
      %v3896 = vpack.c.bf16 %v3794, %v3794
      %v3897 = vpack.c.bf16 %v3842, %v3842
      %v3898 = vpack.c.bf16 %v3890, %v3890
      %v3899 = vld [vmem:[%s861] sm:$0xf]
      %v3900 = vld [vmem:[%s861 + $0x4] sm:$0xf]
      %v3901 = vld [vmem:[%s861 + $0x8] sm:$0xf]
      %v3902 = vld [vmem:[%s861 + $0xc] sm:$0xf]
      %v3903 = vld [vmem:[%s861 + $0x10] sm:$0xf]
      %v3904 = vld [vmem:[%s861 + $0x14] sm:$0xf]
      %v3905 = vld [vmem:[%s861 + $0x18] sm:$0xf]
      %v3906 = vld [vmem:[%s861 + $0x1c] sm:$0xf]
      %v3907 = vld [vmem:[%s861 + $0x20] sm:$0xf]
      %v3908 = vld [vmem:[%s861 + $0x24] sm:$0xf]
      %v3909 = vld [vmem:[%s861 + $0x28] sm:$0xf]
      %v3910 = vld [vmem:[%s861 + $0x2c] sm:$0xf]
      %v3911 = vld [vmem:[%s861 + $0x30] sm:$0xf]
      %v3912 = vld [vmem:[%s861 + $0x34] sm:$0xf]
      %v3913 = vld [vmem:[%s861 + $0x38] sm:$0xf]
      %v3914 = vld [vmem:[%s861 + $0x3c] sm:$0xf]
      %v3919 = vunpack.c.l.b16 %v3899
      %v3920 = vunpack.c.l.b16 %v3900
      %v3921 = vunpack.c.l.b16 %v3901
      %v3922 = vunpack.c.l.b16 %v3902
      %v3923 = vpack.c.b16 %v3920, %v3919
      %v3924 = vpack.c.b16 %v3922, %v3921
      %v3928 = vsel %vm3455, %v3895, 0
      %3930 = vmatprep.subr.bf16.mxu0 0
      %3931 = vmatpush1.bf16.msra.mxu0 %v3923
      %3932 = vmatprep.subr.bf16.mxu0 0
      %3933 = vmatpush1.bf16.msra.mxu0 %v3924
      %3934 = vmatprep.subr.bf16.mxu0 0
      %3935 = vmatpush1.bf16.msra.mxu0 0
      %3936 = vmatprep.subr.bf16.mxu0 0
      %3937 = vmatpush1.bf16.msra.mxu0 0
      %3938 = vmatprep.subr.bf16.mxu0 0
      %3939 = vmatpush1.bf16.msra.mxu0 0
      %3940 = vmatprep.subr.bf16.mxu0 0
      %3941 = vmatpush1.bf16.msra.mxu0 0
      %3942 = vmatprep.subr.bf16.mxu0 0
      %3943 = vmatpush1.bf16.msra.mxu0 0
      %3944 = vmatprep.subr.bf16.mxu0 0
      %3945 = vmatpush1.bf16.msra.mxu0 0
      %3946 = vmatprep.subr.bf16.mxu0 0
      %3947 = vmatpush1.bf16.msra.mxu0 0
      %3948 = vmatprep.subr.bf16.mxu0 0
      %3949 = vmatpush1.bf16.msra.mxu0 0
      %3950 = vmatprep.subr.bf16.mxu0 0
      %3951 = vmatpush1.bf16.msra.mxu0 0
      %3952 = vmatprep.subr.bf16.mxu0 0
      %3953 = vmatpush1.bf16.msra.mxu0 0
      %3954 = vmatprep.subr.bf16.mxu0 0
      %3955 = vmatpush1.bf16.msra.mxu0 0
      %3956 = vmatprep.subr.bf16.mxu0 0
      %3957 = vmatpush1.bf16.msra.mxu0 0
      %3958 = vmatprep.subr.bf16.mxu0 0
      %3959 = vmatpush1.bf16.msra.mxu0 0
      %3960 = vmatprep.subr.bf16.mxu0 0
      %3961 = vmatpush1.bf16.msra.mxu0 0
      %3962 = vmatprep.mubr.bf16.mxu0 0
      %3963 = vmatmul.mubr.bf16.gmra.mrb[0].mxu0 %v3928
      %v3964 = vpop.f32.mrb[0].mxu0
      %v3965 = vadd.f32 0.0, %v3964
      %v3966 = vpop.f32.mrb[0].mxu0
      %v3967 = vpop.f32.mrb[0].mxu0
      %v3968 = vpop.f32.mrb[0].mxu0
      %3969 = vdwg.mxu0
      %v3974 = vunpack.c.l.b16 %v3903
      %v3975 = vunpack.c.l.b16 %v3904
      %v3976 = vunpack.c.l.b16 %v3905
      %v3977 = vunpack.c.l.b16 %v3906
      %v3978 = vpack.c.b16 %v3975, %v3974
      %v3979 = vpack.c.b16 %v3977, %v3976
      %v3983 = vsel %vm3455, %v3896, 0
      %3985 = vmatprep.subr.bf16.mxu0 0
      %3986 = vmatpush1.bf16.msra.mxu0 %v3978
      %3987 = vmatprep.subr.bf16.mxu0 0
      %3988 = vmatpush1.bf16.msra.mxu0 %v3979
      %3989 = vmatprep.subr.bf16.mxu0 0
      %3990 = vmatpush1.bf16.msra.mxu0 0
      %3991 = vmatprep.subr.bf16.mxu0 0
      %3992 = vmatpush1.bf16.msra.mxu0 0
      %3993 = vmatprep.subr.bf16.mxu0 0
      %3994 = vmatpush1.bf16.msra.mxu0 0
      %3995 = vmatprep.subr.bf16.mxu0 0
      %3996 = vmatpush1.bf16.msra.mxu0 0
      %3997 = vmatprep.subr.bf16.mxu0 0
      %3998 = vmatpush1.bf16.msra.mxu0 0
      %3999 = vmatprep.subr.bf16.mxu0 0
      %4000 = vmatpush1.bf16.msra.mxu0 0
      %4001 = vmatprep.subr.bf16.mxu0 0
      %4002 = vmatpush1.bf16.msra.mxu0 0
      %4003 = vmatprep.subr.bf16.mxu0 0
      %4004 = vmatpush1.bf16.msra.mxu0 0
      %4005 = vmatprep.subr.bf16.mxu0 0
      %4006 = vmatpush1.bf16.msra.mxu0 0
      %4007 = vmatprep.subr.bf16.mxu0 0
      %4008 = vmatpush1.bf16.msra.mxu0 0
      %4009 = vmatprep.subr.bf16.mxu0 0
      %4010 = vmatpush1.bf16.msra.mxu0 0
      %4011 = vmatprep.subr.bf16.mxu0 0
      %4012 = vmatpush1.bf16.msra.mxu0 0
      %4013 = vmatprep.subr.bf16.mxu0 0
      %4014 = vmatpush1.bf16.msra.mxu0 0
      %4015 = vmatprep.subr.bf16.mxu0 0
      %4016 = vmatpush1.bf16.msra.mxu0 0
      %4017 = vmatprep.mubr.bf16.mxu0 0
      %4018 = vmatmul.mubr.bf16.gmra.mrb[0].mxu0 %v3983
      %v4019 = vpop.f32.mrb[0].mxu0
      %v4020 = vadd.f32 0.0, %v4019
      %v4021 = vpop.f32.mrb[0].mxu0
      %v4022 = vpop.f32.mrb[0].mxu0
      %v4023 = vpop.f32.mrb[0].mxu0
      %4024 = vdwg.mxu0
      %v4029 = vunpack.c.l.b16 %v3907
      %v4030 = vunpack.c.l.b16 %v3908
      %v4031 = vunpack.c.l.b16 %v3909
      %v4032 = vunpack.c.l.b16 %v3910
      %v4033 = vpack.c.b16 %v4030, %v4029
      %v4034 = vpack.c.b16 %v4032, %v4031
      %v4038 = vsel %vm3455, %v3897, 0
      %4040 = vmatprep.subr.bf16.mxu0 0
      %4041 = vmatpush1.bf16.msra.mxu0 %v4033
      %4042 = vmatprep.subr.bf16.mxu0 0
      %4043 = vmatpush1.bf16.msra.mxu0 %v4034
      %4044 = vmatprep.subr.bf16.mxu0 0
      %4045 = vmatpush1.bf16.msra.mxu0 0
      %4046 = vmatprep.subr.bf16.mxu0 0
      %4047 = vmatpush1.bf16.msra.mxu0 0
      %4048 = vmatprep.subr.bf16.mxu0 0
      %4049 = vmatpush1.bf16.msra.mxu0 0
      %4050 = vmatprep.subr.bf16.mxu0 0
      %4051 = vmatpush1.bf16.msra.mxu0 0
      %4052 = vmatprep.subr.bf16.mxu0 0
      %4053 = vmatpush1.bf16.msra.mxu0 0
      %4054 = vmatprep.subr.bf16.mxu0 0
      %4055 = vmatpush1.bf16.msra.mxu0 0
      %4056 = vmatprep.subr.bf16.mxu0 0
      %4057 = vmatpush1.bf16.msra.mxu0 0
      %4058 = vmatprep.subr.bf16.mxu0 0
      %4059 = vmatpush1.bf16.msra.mxu0 0
      %4060 = vmatprep.subr.bf16.mxu0 0
      %4061 = vmatpush1.bf16.msra.mxu0 0
      %4062 = vmatprep.subr.bf16.mxu0 0
      %4063 = vmatpush1.bf16.msra.mxu0 0
      %4064 = vmatprep.subr.bf16.mxu0 0
      %4065 = vmatpush1.bf16.msra.mxu0 0
      %4066 = vmatprep.subr.bf16.mxu0 0
      %4067 = vmatpush1.bf16.msra.mxu0 0
      %4068 = vmatprep.subr.bf16.mxu0 0
      %4069 = vmatpush1.bf16.msra.mxu0 0
      %4070 = vmatprep.subr.bf16.mxu0 0
      %4071 = vmatpush1.bf16.msra.mxu0 0
      %4072 = vmatprep.mubr.bf16.mxu0 0
      %4073 = vmatmul.mubr.bf16.gmra.mrb[0].mxu0 %v4038
      %v4074 = vpop.f32.mrb[0].mxu0
      %v4075 = vadd.f32 0.0, %v4074
      %v4076 = vpop.f32.mrb[0].mxu0
      %v4077 = vpop.f32.mrb[0].mxu0
      %v4078 = vpop.f32.mrb[0].mxu0
      %4079 = vdwg.mxu0
      %v4084 = vunpack.c.l.b16 %v3911
      %v4085 = vunpack.c.l.b16 %v3912
      %v4086 = vunpack.c.l.b16 %v3913
      %v4087 = vunpack.c.l.b16 %v3914
      %v4088 = vpack.c.b16 %v4085, %v4084
      %v4089 = vpack.c.b16 %v4087, %v4086
      %v4093 = vsel %vm3455, %v3898, 0
      %4095 = vmatprep.subr.bf16.mxu0 0
      %4096 = vmatpush1.bf16.msra.mxu0 %v4088
      %4097 = vmatprep.subr.bf16.mxu0 0
      %4098 = vmatpush1.bf16.msra.mxu0 %v4089
      %4099 = vmatprep.subr.bf16.mxu0 0
      %4100 = vmatpush1.bf16.msra.mxu0 0
      %4101 = vmatprep.subr.bf16.mxu0 0
      %4102 = vmatpush1.bf16.msra.mxu0 0
      %4103 = vmatprep.subr.bf16.mxu0 0
      %4104 = vmatpush1.bf16.msra.mxu0 0
      %4105 = vmatprep.subr.bf16.mxu0 0
      %4106 = vmatpush1.bf16.msra.mxu0 0
      %4107 = vmatprep.subr.bf16.mxu0 0
      %4108 = vmatpush1.bf16.msra.mxu0 0
      %4109 = vmatprep.subr.bf16.mxu0 0
      %4110 = vmatpush1.bf16.msra.mxu0 0
      %4111 = vmatprep.subr.bf16.mxu0 0
      %4112 = vmatpush1.bf16.msra.mxu0 0
      %4113 = vmatprep.subr.bf16.mxu0 0
      %4114 = vmatpush1.bf16.msra.mxu0 0
      %4115 = vmatprep.subr.bf16.mxu0 0
      %4116 = vmatpush1.bf16.msra.mxu0 0
      %4117 = vmatprep.subr.bf16.mxu0 0
      %4118 = vmatpush1.bf16.msra.mxu0 0
      %4119 = vmatprep.subr.bf16.mxu0 0
      %4120 = vmatpush1.bf16.msra.mxu0 0
      %4121 = vmatprep.subr.bf16.mxu0 0
      %4122 = vmatpush1.bf16.msra.mxu0 0
      %4123 = vmatprep.subr.bf16.mxu0 0
      %4124 = vmatpush1.bf16.msra.mxu0 0
      %4125 = vmatprep.subr.bf16.mxu0 0
      %4126 = vmatpush1.bf16.msra.mxu0 0
      %4127 = vmatprep.mubr.bf16.mxu0 0
      %4128 = vmatmul.mubr.bf16.gmra.mrb[0].mxu0 %v4093
      %v4129 = vpop.f32.mrb[0].mxu0
      %v4130 = vadd.f32 0.0, %v4129
      %v4131 = vpop.f32.mrb[0].mxu0
      %v4132 = vpop.f32.mrb[0].mxu0
      %v4133 = vpop.f32.mrb[0].mxu0
      %4134 = vdwg.mxu0
      %v4135 = vsel %vm2966, %v3965, 0.0
      %v4136 = vsel %vm2966, %v4020, 0.0
      %v4137 = vadd.f32 %v4135, %v4136
      %v4138 = vsel %vm2966, %v4075, 0.0
      %v4139 = vadd.f32 %v4137, %v4138
      %v4140 = vsel %vm2966, %v4130, 0.0
      %v4141 = vadd.f32 %v4139, %v4140
      %v4142 = vadd.f32 %v2963, %v4141
      %v4143 = vld [vmem:[%s864] sm:$0x1]
      %v4145 = vlaneseq
      %v4146 = vshrl.u32 %v4145, 7
      %v4147 = vsub.s32 0, %v4146
      %v4148 = vrot.slane %v4143, %v4147
      %v4150 = vadd.f32 %v4142, %v4148
      %v4151 = vld [vmem:[%s867] sm:$0x1]
      %v4152 = vld [vmem:[%s870] sm:$0x1]
      %v4153 = vsel %vm2966, %v4150, 0.0
      %4154 = vadd.xlane.f32.xlu0 %v4153
      %v4155 = vpop.xlane.xlu0 %4154
      %v4156 = vmul.f32 %v4155, %v2970
      %v4157 = vsub.f32 %v4150, %v4156
      %v4158 = vmul.f32 %v4157, %v4157
      %v4159 = vsel %vm2966, %v4158, 0.0
      %4160 = vadd.xlane.f32.xlu0 %v4159
      %v4161 = vpop.xlane.xlu0 %4160
      %v4162 = vmul.f32 %v4161, %v2970
      %v4163 = vadd.f32 %v4162, 1e-06
      %v4164 = vrsqrt.pop %v4163
      %v4165 = vmul.f32 %v4157, %v4164
      %v4167 = vlaneseq
      %v4168 = vshrl.u32 %v4167, 7
      %v4169 = vsub.s32 0, %v4168
      %v4170 = vrot.slane %v4151, %v4169
      %v4172 = vmul.f32 %v4165, %v4170
      %v4174 = vlaneseq
      %v4175 = vshrl.u32 %v4174, 7
      %v4176 = vsub.s32 0, %v4175
      %v4177 = vrot.slane %v4152, %v4176
      %v4179 = vadd.f32 %v4172, %v4177
      %v4180 = vpack.c.bf16 %v4179, %v4179
      %v4181 = vld [vmem:[%s875] sm:$0xff]
      %v4182 = vld [vmem:[%s875 + $0x8] sm:$0xff]
      %v4183 = vld [vmem:[%s875 + $0x10] sm:$0xff]
      %v4184 = vld [vmem:[%s875 + $0x18] sm:$0xff]
      %v4185 = vld [vmem:[%s875 + $0x20] sm:$0xff]
      %v4186 = vld [vmem:[%s875 + $0x28] sm:$0xff]
      %v4187 = vld [vmem:[%s875 + $0x30] sm:$0xff]
      %v4188 = vld [vmem:[%s875 + $0x38] sm:$0xff]
      %v4189 = vld [vmem:[%s875 + $0x40] sm:$0xff]
      %v4190 = vld [vmem:[%s875 + $0x48] sm:$0xff]
      %v4191 = vld [vmem:[%s875 + $0x50] sm:$0xff]
      %v4192 = vld [vmem:[%s875 + $0x58] sm:$0xff]
      %v4193 = vld [vmem:[%s875 + $0x60] sm:$0xff]
      %v4194 = vld [vmem:[%s875 + $0x68] sm:$0xff]
      %v4195 = vld [vmem:[%s875 + $0x70] sm:$0xff]
      %v4196 = vld [vmem:[%s875 + $0x78] sm:$0xff]
      %v4197 = vld [vmem:[%s879] sm:$0x3]
      %v4199 = vlaneseq
      %v4200 = vshrl.u32 %v4199, 7
      %v4201 = vsub.s32 0, %v4200
      %v4202 = vrot.slane %v4197, %v4201
      %v4203 = vlaneseq
      %v4204 = vshrl.u32 %v4203, 7
      %v4205 = vsub.s32 1, %v4204
      %v4206 = vrot.slane %v4197, %v4205
      %v4225 = vunpack.c.l.b16 %v4181
      %v4226 = vunpack.c.h.b16 %v4181
      %v4227 = vunpack.c.l.b16 %v4182
      %v4228 = vunpack.c.h.b16 %v4182
      %v4229 = vunpack.c.l.b16 %v4183
      %v4230 = vunpack.c.h.b16 %v4183
      %v4231 = vunpack.c.l.b16 %v4184
      %v4232 = vunpack.c.h.b16 %v4184
      %v4233 = vunpack.c.l.b16 %v4185
      %v4234 = vunpack.c.h.b16 %v4185
      %v4235 = vunpack.c.l.b16 %v4186
      %v4236 = vunpack.c.h.b16 %v4186
      %v4237 = vunpack.c.l.b16 %v4187
      %v4238 = vunpack.c.h.b16 %v4187
      %v4239 = vunpack.c.l.b16 %v4188
      %v4240 = vunpack.c.h.b16 %v4188
      %v4241 = vunpack.c.l.b16 %v4189
      %v4242 = vunpack.c.h.b16 %v4189
      %v4243 = vunpack.c.l.b16 %v4190
      %v4244 = vunpack.c.h.b16 %v4190
      %v4245 = vunpack.c.l.b16 %v4191
      %v4246 = vunpack.c.h.b16 %v4191
      %v4247 = vunpack.c.l.b16 %v4192
      %v4248 = vunpack.c.h.b16 %v4192
      %v4249 = vunpack.c.l.b16 %v4193
      %v4250 = vunpack.c.h.b16 %v4193
      %v4251 = vunpack.c.l.b16 %v4194
      %v4252 = vunpack.c.h.b16 %v4194
      %v4253 = vunpack.c.l.b16 %v4195
      %v4254 = vunpack.c.h.b16 %v4195
      %v4255 = vunpack.c.l.b16 %v4196
      %v4256 = vunpack.c.h.b16 %v4196
      %v4257 = vpack.c.b16 %v4227, %v4225
      %v4258 = vpack.c.b16 %v4228, %v4226
      %v4259 = vpack.c.b16 %v4231, %v4229
      %v4260 = vpack.c.b16 %v4232, %v4230
      %v4261 = vpack.c.b16 %v4235, %v4233
      %v4262 = vpack.c.b16 %v4236, %v4234
      %v4263 = vpack.c.b16 %v4239, %v4237
      %v4264 = vpack.c.b16 %v4240, %v4238
      %v4265 = vpack.c.b16 %v4243, %v4241
      %v4266 = vpack.c.b16 %v4244, %v4242
      %v4267 = vpack.c.b16 %v4247, %v4245
      %v4268 = vpack.c.b16 %v4248, %v4246
      %v4269 = vpack.c.b16 %v4251, %v4249
      %v4270 = vpack.c.b16 %v4252, %v4250
      %v4271 = vpack.c.b16 %v4255, %v4253
      %v4272 = vpack.c.b16 %v4256, %v4254
      %4289 = vmatprep.subr.bf16.mxu0 %v4258
      %4290 = vmatpush1.bf16.msra.mxu0 %v4257
      %4291 = vmatprep.subr.bf16.mxu0 %v4260
      %4292 = vmatpush1.bf16.msra.mxu0 %v4259
      %4293 = vmatprep.subr.bf16.mxu0 %v4262
      %4294 = vmatpush1.bf16.msra.mxu0 %v4261
      %4295 = vmatprep.subr.bf16.mxu0 %v4264
      %4296 = vmatpush1.bf16.msra.mxu0 %v4263
      %4297 = vmatprep.subr.bf16.mxu0 %v4266
      %4298 = vmatpush1.bf16.msra.mxu0 %v4265
      %4299 = vmatprep.subr.bf16.mxu0 %v4268
      %4300 = vmatpush1.bf16.msra.mxu0 %v4267
      %4301 = vmatprep.subr.bf16.mxu0 %v4270
      %4302 = vmatpush1.bf16.msra.mxu0 %v4269
      %4303 = vmatprep.subr.bf16.mxu0 %v4272
      %4304 = vmatpush1.bf16.msra.mxu0 %v4271
      %4305 = vmatprep.subr.bf16.mxu0 0
      %4306 = vmatpush1.bf16.msra.mxu0 0
      %4307 = vmatprep.subr.bf16.mxu0 0
      %4308 = vmatpush1.bf16.msra.mxu0 0
      %4309 = vmatprep.subr.bf16.mxu0 0
      %4310 = vmatpush1.bf16.msra.mxu0 0
      %4311 = vmatprep.subr.bf16.mxu0 0
      %4312 = vmatpush1.bf16.msra.mxu0 0
      %4313 = vmatprep.subr.bf16.mxu0 0
      %4314 = vmatpush1.bf16.msra.mxu0 0
      %4315 = vmatprep.subr.bf16.mxu0 0
      %4316 = vmatpush1.bf16.msra.mxu0 0
      %4317 = vmatprep.subr.bf16.mxu0 0
      %4318 = vmatpush1.bf16.msra.mxu0 0
      %4319 = vmatprep.subr.bf16.mxu0 0
      %4320 = vmatpush1.bf16.msra.mxu0 0
      %4321 = vmatprep.mubr.bf16.mxu0 0
      %4322 = vmatmul.mubr.bf16.gmra.mrb[0].mxu0 %v4180
      %v4323 = vpop.f32.mrb[0].mxu0
      %v4324 = vadd.f32 %v4202, %v4323
      %v4325 = vpop.f32.mrb[0].mxu0
      %v4326 = vadd.f32 %v4206, %v4325
      %v4327 = vpop.f32.mrb[0].mxu0
      %v4328 = vpop.f32.mrb[0].mxu0
      %4329 = vdwg.mxu0
      %v4330 = vmul.f32 %v4324, 0.5
      %v4331 = vmul.f32 %v4326, 0.5
      %v4332 = vmul.f32 %v4324, 0.70710677
      %v4333 = vmul.f32 %v4326, 0.70710677
      %v4334 = vand.u32 2147483647, %v4332
      %v4335 = vand.u32 2147483647, %v4333
      %v4336 = vmul.f32 %v4334, 0.3275911
      %v4337 = vmul.f32 %v4335, 0.3275911
      %v4338 = vadd.f32 %v4336, 1.0
      %v4339 = vadd.f32 %v4337, 1.0
      %v4340 = vrcp.pop %v4338
      %v4341 = vmul.f32 1.0, %v4340
      %v4342 = vrcp.pop %v4339
      %v4343 = vmul.f32 1.0, %v4342
      %v4344 = vmul.f32 %v4341, 1.0614054
      %v4345 = vmul.f32 %v4343, 1.0614054
      %v4346 = vadd.f32 %v4344, -1.4531521
      %v4347 = vadd.f32 %v4345, -1.4531521
      %v4348 = vmul.f32 %v4341, %v4346
      %v4349 = vmul.f32 %v4343, %v4347
      %v4350 = vadd.f32 %v4348, 1.4214138
      %v4351 = vadd.f32 %v4349, 1.4214138
      %v4352 = vmul.f32 %v4341, %v4350
      %v4353 = vmul.f32 %v4343, %v4351
      %v4354 = vadd.f32 %v4352, -0.28449672
      %v4355 = vadd.f32 %v4353, -0.28449672
      %v4356 = vmul.f32 %v4341, %v4354
      %v4357 = vmul.f32 %v4343, %v4355
      %v4358 = vadd.f32 %v4356, 0.2548296
      %v4359 = vadd.f32 %v4357, 0.2548296
      %v4360 = vmul.f32 %v4341, %v4358
      %v4361 = vmul.f32 %v4343, %v4359
      %v4362 = vsub.f32 0.0, %v4334
      %v4363 = vsub.f32 0.0, %v4335
      %v4364 = vmul.f32 %v4362, %v4334
      %v4365 = vmul.f32 %v4363, %v4335
      %v4366 = vmul.f32 %v4364, 1.442695
      %v4367 = vpow.pop %v4366
      %v4368 = vmul.f32 %v4365, 1.442695
      %v4369 = vpow.pop %v4368
      %v4370 = vmul.f32 %v4360, %v4367
      %v4371 = vmul.f32 %v4361, %v4369
      %v4372 = vsub.f32 1.0, %v4370
      %v4373 = vsub.f32 1.0, %v4371
      %vm4374 = vcmp.ge.f32.partialorder %v4332, 0.0
      %vm4375 = vcmp.ge.f32.partialorder %v4333, 0.0
      %v4376 = vsub.f32 0.0, %v4372
      %v4377 = vsub.f32 0.0, %v4373
      %v4378 = vsel %vm4374, %v4372, %v4376
      %v4379 = vsel %vm4375, %v4373, %v4377
      %v4380 = vadd.f32 %v4378, 1.0
      %v4381 = vadd.f32 %v4379, 1.0
      %v4382 = vmul.f32 %v4330, %v4380
      %v4383 = vmul.f32 %v4331, %v4381
      %v4384 = vpack.c.bf16 %v4382, %v4382
      %v4385 = vpack.c.bf16 %v4383, %v4383
      %v4386 = vld [vmem:[%s884] sm:$0xf]
      %v4387 = vld [vmem:[%s884 + $0x4] sm:$0xf]
      %v4388 = vld [vmem:[%s884 + $0x8] sm:$0xf]
      %v4389 = vld [vmem:[%s884 + $0xc] sm:$0xf]
      %v4390 = vld [vmem:[%s884 + $0x10] sm:$0xf]
      %v4391 = vld [vmem:[%s884 + $0x14] sm:$0xf]
      %v4392 = vld [vmem:[%s884 + $0x18] sm:$0xf]
      %v4393 = vld [vmem:[%s884 + $0x1c] sm:$0xf]
      %v4394 = vld [vmem:[%s884 + $0x20] sm:$0xf]
      %v4395 = vld [vmem:[%s884 + $0x24] sm:$0xf]
      %v4396 = vld [vmem:[%s884 + $0x28] sm:$0xf]
      %v4397 = vld [vmem:[%s884 + $0x2c] sm:$0xf]
      %v4398 = vld [vmem:[%s884 + $0x30] sm:$0xf]
      %v4399 = vld [vmem:[%s884 + $0x34] sm:$0xf]
      %v4400 = vld [vmem:[%s884 + $0x38] sm:$0xf]
      %v4401 = vld [vmem:[%s884 + $0x3c] sm:$0xf]
      %v4402 = vld [vmem:[%s884 + $0x40] sm:$0xf]
      %v4403 = vld [vmem:[%s884 + $0x44] sm:$0xf]
      %v4404 = vld [vmem:[%s884 + $0x48] sm:$0xf]
      %v4405 = vld [vmem:[%s884 + $0x4c] sm:$0xf]
      %v4406 = vld [vmem:[%s884 + $0x50] sm:$0xf]
      %v4407 = vld [vmem:[%s884 + $0x54] sm:$0xf]
      %v4408 = vld [vmem:[%s884 + $0x58] sm:$0xf]
      %v4409 = vld [vmem:[%s884 + $0x5c] sm:$0xf]
      %v4410 = vld [vmem:[%s884 + $0x60] sm:$0xf]
      %v4411 = vld [vmem:[%s884 + $0x64] sm:$0xf]
      %v4412 = vld [vmem:[%s884 + $0x68] sm:$0xf]
      %v4413 = vld [vmem:[%s884 + $0x6c] sm:$0xf]
      %v4414 = vld [vmem:[%s884 + $0x70] sm:$0xf]
      %v4415 = vld [vmem:[%s884 + $0x74] sm:$0xf]
      %v4416 = vld [vmem:[%s884 + $0x78] sm:$0xf]
      %v4417 = vld [vmem:[%s884 + $0x7c] sm:$0xf]
      %v4418 = vld [vmem:[%s887] sm:$0x1]
      %v4420 = vlaneseq
      %v4421 = vshrl.u32 %v4420, 7
      %v4422 = vsub.s32 0, %v4421
      %v4423 = vrot.slane %v4418, %v4422
      %v4457 = vunpack.c.l.b16 %v4386
      %v4458 = vunpack.c.l.b16 %v4387
      %v4459 = vunpack.c.l.b16 %v4388
      %v4460 = vunpack.c.l.b16 %v4389
      %v4461 = vunpack.c.l.b16 %v4390
      %v4462 = vunpack.c.l.b16 %v4391
      %v4463 = vunpack.c.l.b16 %v4392
      %v4464 = vunpack.c.l.b16 %v4393
      %v4465 = vunpack.c.l.b16 %v4394
      %v4466 = vunpack.c.l.b16 %v4395
      %v4467 = vunpack.c.l.b16 %v4396
      %v4468 = vunpack.c.l.b16 %v4397
      %v4469 = vunpack.c.l.b16 %v4398
      %v4470 = vunpack.c.l.b16 %v4399
      %v4471 = vunpack.c.l.b16 %v4400
      %v4472 = vunpack.c.l.b16 %v4401
      %v4473 = vunpack.c.l.b16 %v4402
      %v4474 = vunpack.c.l.b16 %v4403
      %v4475 = vunpack.c.l.b16 %v4404
      %v4476 = vunpack.c.l.b16 %v4405
      %v4477 = vunpack.c.l.b16 %v4406
      %v4478 = vunpack.c.l.b16 %v4407
      %v4479 = vunpack.c.l.b16 %v4408
      %v4480 = vunpack.c.l.b16 %v4409
      %v4481 = vunpack.c.l.b16 %v4410
      %v4482 = vunpack.c.l.b16 %v4411
      %v4483 = vunpack.c.l.b16 %v4412
      %v4484 = vunpack.c.l.b16 %v4413
      %v4485 = vunpack.c.l.b16 %v4414
      %v4486 = vunpack.c.l.b16 %v4415
      %v4487 = vunpack.c.l.b16 %v4416
      %v4488 = vunpack.c.l.b16 %v4417
      %v4489 = vpack.c.b16 %v4458, %v4457
      %v4490 = vpack.c.b16 %v4460, %v4459
      %v4491 = vpack.c.b16 %v4462, %v4461
      %v4492 = vpack.c.b16 %v4464, %v4463
      %v4493 = vpack.c.b16 %v4466, %v4465
      %v4494 = vpack.c.b16 %v4468, %v4467
      %v4495 = vpack.c.b16 %v4470, %v4469
      %v4496 = vpack.c.b16 %v4472, %v4471
      %v4497 = vpack.c.b16 %v4474, %v4473
      %v4498 = vpack.c.b16 %v4476, %v4475
      %v4499 = vpack.c.b16 %v4478, %v4477
      %v4500 = vpack.c.b16 %v4480, %v4479
      %v4501 = vpack.c.b16 %v4482, %v4481
      %v4502 = vpack.c.b16 %v4484, %v4483
      %v4503 = vpack.c.b16 %v4486, %v4485
      %v4504 = vpack.c.b16 %v4488, %v4487
      %4521 = vmatprep.subr.bf16.mxu0 0
      %4522 = vmatpush1.bf16.msra.mxu0 %v4489
      %4523 = vmatprep.subr.bf16.mxu0 0
      %4524 = vmatpush1.bf16.msra.mxu0 %v4490
      %4525 = vmatprep.subr.bf16.mxu0 0
      %4526 = vmatpush1.bf16.msra.mxu0 %v4491
      %4527 = vmatprep.subr.bf16.mxu0 0
      %4528 = vmatpush1.bf16.msra.mxu0 %v4492
      %4529 = vmatprep.subr.bf16.mxu0 0
      %4530 = vmatpush1.bf16.msra.mxu0 %v4493
      %4531 = vmatprep.subr.bf16.mxu0 0
      %4532 = vmatpush1.bf16.msra.mxu0 %v4494
      %4533 = vmatprep.subr.bf16.mxu0 0
      %4534 = vmatpush1.bf16.msra.mxu0 %v4495
      %4535 = vmatprep.subr.bf16.mxu0 0
      %4536 = vmatpush1.bf16.msra.mxu0 %v4496
      %4537 = vmatprep.subr.bf16.mxu0 0
      %4538 = vmatpush1.bf16.msra.mxu0 %v4497
      %4539 = vmatprep.subr.bf16.mxu0 0
      %4540 = vmatpush1.bf16.msra.mxu0 %v4498
      %4541 = vmatprep.subr.bf16.mxu0 0
      %4542 = vmatpush1.bf16.msra.mxu0 %v4499
      %4543 = vmatprep.subr.bf16.mxu0 0
      %4544 = vmatpush1.bf16.msra.mxu0 %v4500
      %4545 = vmatprep.subr.bf16.mxu0 0
      %4546 = vmatpush1.bf16.msra.mxu0 %v4501
      %4547 = vmatprep.subr.bf16.mxu0 0
      %4548 = vmatpush1.bf16.msra.mxu0 %v4502
      %4549 = vmatprep.subr.bf16.mxu0 0
      %4550 = vmatpush1.bf16.msra.mxu0 %v4503
      %4551 = vmatprep.subr.bf16.mxu0 0
      %4552 = vmatpush1.bf16.msra.mxu0 %v4504
      %4553 = vmatprep.mubr.bf16.mxu0 %v4385
      %4554 = vmatmul.mubr.bf16.gmra.mrb[0].mxu0 %v4384
      %v4555 = vpop.f32.mrb[0].mxu0
      %v4556 = vadd.f32 %v4423, %v4555
      %v4557 = vpop.f32.mrb[0].mxu0
      %v4558 = vpop.f32.mrb[0].mxu0
      %v4559 = vpop.f32.mrb[0].mxu0
      %4560 = vdwg.mxu0
      %v4561 = vadd.f32 %v4150, %v4556
      %4562 = vst [vmem:[#allocation2] sm:$0x1f] %v4561
      %p4563 = scmp.eq.s32.totalorder %s38, 1
      // Predicated region
      $region113: #{vit_forward.1} parent=107 // pred_check
        %p4564 = pneg %p4563
      $region114: #{vit_forward.1} parent=107 // pred_check_branch
        %4566 = sbr.rel (%p4564) target = $region116
      $region115: #{vit_forward.1} parent=107 // pred_region
        %v4567 = vld [vmem:[%s15] sm:$0x1]
        %v4568 = vld [vmem:[%s16] sm:$0x1]
        %vm4569 = vcmask 1040384
        %v4570 = vsel %vm4569, %v4561, 0.0
        %4571 = vadd.xlane.f32.xlu0 %v4570
        %v4572 = vpop.xlane.xlu0 %4571
        %v4573 = vmul.f32 %v4572, %v2970
        %v4574 = vsub.f32 %v4561, %v4573
        %v4575 = vmul.f32 %v4574, %v4574
        %v4576 = vsel %vm4569, %v4575, 0.0
        %4577 = vadd.xlane.f32.xlu0 %v4576
        %v4578 = vpop.xlane.xlu0 %4577
        %v4579 = vmul.f32 %v4578, %v2970
        %v4580 = vadd.f32 %v4579, 1e-06
        %v4581 = vrsqrt.pop %v4580
        %v4582 = vmul.f32 %v4574, %v4581
        %v4583 = vmul.f32 %v4582, %v4567
        %v4584 = vadd.f32 %v4583, %v4568
        %v4585 = vpack.c.bf16 %v4584, %v4584
        %v4586 = vld [vmem:[%s17] sm:$0xff]
        %v4587 = vld [vmem:[%s17 + $0x8] sm:$0xff]
        %v4588 = vld [vmem:[%s17 + $0x10] sm:$0xff]
        %v4589 = vld [vmem:[%s17 + $0x18] sm:$0xff]
        %v4590 = vld [vmem:[%s17 + $0x20] sm:$0xff]
        %v4591 = vld [vmem:[%s17 + $0x28] sm:$0xff]
        %v4592 = vld [vmem:[%s17 + $0x30] sm:$0xff]
        %v4593 = vld [vmem:[%s17 + $0x38] sm:$0xff]
        %v4594 = vld [vmem:[%s17 + $0x40] sm:$0xff]
        %v4595 = vld [vmem:[%s17 + $0x48] sm:$0xff]
        %v4596 = vld [vmem:[%s17 + $0x50] sm:$0xff]
        %v4597 = vld [vmem:[%s17 + $0x58] sm:$0xff]
        %v4598 = vld [vmem:[%s17 + $0x60] sm:$0xff]
        %v4599 = vld [vmem:[%s17 + $0x68] sm:$0xff]
        %v4600 = vld [vmem:[%s17 + $0x70] sm:$0xff]
        %v4601 = vld [vmem:[%s17 + $0x78] sm:$0xff]
        %v4602 = vld [vmem:[%s18] sm:$0x3]
        %v4619 = vunpack.c.l.b16 %v4586
        %v4620 = vunpack.c.h.b16 %v4586
        %v4621 = vunpack.c.l.b16 %v4587
        %v4622 = vunpack.c.h.b16 %v4587
        %v4623 = vunpack.c.l.b16 %v4588
        %v4624 = vunpack.c.h.b16 %v4588
        %v4625 = vunpack.c.l.b16 %v4589
        %v4626 = vunpack.c.h.b16 %v4589
        %v4627 = vunpack.c.l.b16 %v4590
        %v4628 = vunpack.c.h.b16 %v4590
        %v4629 = vunpack.c.l.b16 %v4591
        %v4630 = vunpack.c.h.b16 %v4591
        %v4631 = vunpack.c.l.b16 %v4592
        %v4632 = vunpack.c.h.b16 %v4592
        %v4633 = vunpack.c.l.b16 %v4593
        %v4634 = vunpack.c.h.b16 %v4593
        %v4635 = vunpack.c.l.b16 %v4594
        %v4636 = vunpack.c.h.b16 %v4594
        %v4637 = vunpack.c.l.b16 %v4595
        %v4638 = vunpack.c.h.b16 %v4595
        %v4639 = vunpack.c.l.b16 %v4596
        %v4640 = vunpack.c.h.b16 %v4596
        %v4641 = vunpack.c.l.b16 %v4597
        %v4642 = vunpack.c.h.b16 %v4597
        %v4643 = vunpack.c.l.b16 %v4598
        %v4644 = vunpack.c.h.b16 %v4598
        %v4645 = vunpack.c.l.b16 %v4599
        %v4646 = vunpack.c.h.b16 %v4599
        %v4647 = vunpack.c.l.b16 %v4600
        %v4648 = vunpack.c.h.b16 %v4600
        %v4649 = vunpack.c.l.b16 %v4601
        %v4650 = vunpack.c.h.b16 %v4601
        %v4651 = vpack.c.b16 %v4621, %v4619
        %v4652 = vpack.c.b16 %v4622, %v4620
        %v4653 = vpack.c.b16 %v4625, %v4623
        %v4654 = vpack.c.b16 %v4626, %v4624
        %v4655 = vpack.c.b16 %v4629, %v4627
        %v4656 = vpack.c.b16 %v4630, %v4628
        %v4657 = vpack.c.b16 %v4633, %v4631
        %v4658 = vpack.c.b16 %v4634, %v4632
        %v4659 = vpack.c.b16 %v4637, %v4635
        %v4660 = vpack.c.b16 %v4638, %v4636
        %v4661 = vpack.c.b16 %v4641, %v4639
        %v4662 = vpack.c.b16 %v4642, %v4640
        %v4663 = vpack.c.b16 %v4645, %v4643
        %v4664 = vpack.c.b16 %v4646, %v4644
        %v4665 = vpack.c.b16 %v4649, %v4647
        %v4666 = vpack.c.b16 %v4650, %v4648
        %v4684 = vlaneseq
        %v4685 = vshrl.u32 %v4684, 7
        %v4686 = vsub.s32 0, %v4685
        %v4687 = vrot.slane %v4602, %v4686
        %v4688 = vlaneseq
        %v4689 = vshrl.u32 %v4688, 7
        %v4690 = vsub.s32 1, %v4689
        %v4691 = vrot.slane %v4602, %v4690
        %4694 = vmatprep.subr.bf16.mxu0 %v4652
        %4695 = vmatpush1.bf16.msra.mxu0 %v4651
        %4696 = vmatprep.subr.bf16.mxu0 %v4654
        %4697 = vmatpush1.bf16.msra.mxu0 %v4653
        %4698 = vmatprep.subr.bf16.mxu0 %v4656
        %4699 = vmatpush1.bf16.msra.mxu0 %v4655
        %4700 = vmatprep.subr.bf16.mxu0 %v4658
        %4701 = vmatpush1.bf16.msra.mxu0 %v4657
        %4702 = vmatprep.subr.bf16.mxu0 %v4660
        %4703 = vmatpush1.bf16.msra.mxu0 %v4659
        %4704 = vmatprep.subr.bf16.mxu0 %v4662
        %4705 = vmatpush1.bf16.msra.mxu0 %v4661
        %4706 = vmatprep.subr.bf16.mxu0 %v4664
        %4707 = vmatpush1.bf16.msra.mxu0 %v4663
        %4708 = vmatprep.subr.bf16.mxu0 %v4666
        %4709 = vmatpush1.bf16.msra.mxu0 %v4665
        %4710 = vmatprep.subr.bf16.mxu0 0
        %4711 = vmatpush1.bf16.msra.mxu0 0
        %4712 = vmatprep.subr.bf16.mxu0 0
        %4713 = vmatpush1.bf16.msra.mxu0 0
        %4714 = vmatprep.subr.bf16.mxu0 0
        %4715 = vmatpush1.bf16.msra.mxu0 0
        %4716 = vmatprep.subr.bf16.mxu0 0
        %4717 = vmatpush1.bf16.msra.mxu0 0
        %4718 = vmatprep.subr.bf16.mxu0 0
        %4719 = vmatpush1.bf16.msra.mxu0 0
        %4720 = vmatprep.subr.bf16.mxu0 0
        %4721 = vmatpush1.bf16.msra.mxu0 0
        %4722 = vmatprep.subr.bf16.mxu0 0
        %4723 = vmatpush1.bf16.msra.mxu0 0
        %4724 = vmatprep.subr.bf16.mxu0 0
        %4725 = vmatpush1.bf16.msra.mxu0 0
        %4726 = vmatprep.mubr.bf16.mxu0 0
        %4727 = vmatmul.mubr.bf16.gmra.mrb[0].mxu0 %v4585
        %v4728 = vpop.f32.mrb[0].mxu0
        %v4729 = vadd.f32 %v4687, %v4728
        %v4730 = vpop.f32.mrb[0].mxu0
        %v4731 = vadd.f32 %v4691, %v4730
        %v4732 = vpop.f32.mrb[0].mxu0
        %v4733 = vpop.f32.mrb[0].mxu0
        %4734 = vdwg.mxu0
        %vm4735 = vcmp.ge.f32.partialorder %v4729, 0.0
        %vm4736 = vcmp.ge.f32.partialorder %v4731, 0.0
        %v4737 = vmul.f32 %v4729, 0.01
        %v4738 = vmul.f32 %v4731, 0.01
        %v4739 = vsel %vm4735, %v4729, %v4737
        %v4740 = vsel %vm4736, %v4731, %v4738
        %v4741 = vpack.c.bf16 %v4739, %v4739
        %v4742 = vpack.c.bf16 %v4740, %v4740
        %v4743 = vld [vmem:[%s19] sm:$0xf]
        %v4744 = vld [vmem:[%s19 + $0x4] sm:$0xf]
        %v4745 = vld [vmem:[%s19 + $0x8] sm:$0xf]
        %v4746 = vld [vmem:[%s19 + $0xc] sm:$0xf]
        %v4747 = vld [vmem:[%s19 + $0x10] sm:$0xf]
        %v4748 = vld [vmem:[%s19 + $0x14] sm:$0xf]
        %v4749 = vld [vmem:[%s19 + $0x18] sm:$0xf]
        %v4750 = vld [vmem:[%s19 + $0x1c] sm:$0xf]
        %v4751 = vld [vmem:[%s19 + $0x20] sm:$0xf]
        %v4752 = vld [vmem:[%s19 + $0x24] sm:$0xf]
        %v4753 = vld [vmem:[%s19 + $0x28] sm:$0xf]
        %v4754 = vld [vmem:[%s19 + $0x2c] sm:$0xf]
        %v4755 = vld [vmem:[%s19 + $0x30] sm:$0xf]
        %v4756 = vld [vmem:[%s19 + $0x34] sm:$0xf]
        %v4757 = vld [vmem:[%s19 + $0x38] sm:$0xf]
        %v4758 = vld [vmem:[%s19 + $0x3c] sm:$0xf]
        %v4759 = vld [vmem:[%s19 + $0x40] sm:$0xf]
        %v4760 = vld [vmem:[%s19 + $0x44] sm:$0xf]
        %v4761 = vld [vmem:[%s19 + $0x48] sm:$0xf]
        %v4762 = vld [vmem:[%s19 + $0x4c] sm:$0xf]
        %v4763 = vld [vmem:[%s19 + $0x50] sm:$0xf]
        %v4764 = vld [vmem:[%s19 + $0x54] sm:$0xf]
        %v4765 = vld [vmem:[%s19 + $0x58] sm:$0xf]
        %v4766 = vld [vmem:[%s19 + $0x5c] sm:$0xf]
        %v4767 = vld [vmem:[%s19 + $0x60] sm:$0xf]
        %v4768 = vld [vmem:[%s19 + $0x64] sm:$0xf]
        %v4769 = vld [vmem:[%s19 + $0x68] sm:$0xf]
        %v4770 = vld [vmem:[%s19 + $0x6c] sm:$0xf]
        %v4771 = vld [vmem:[%s19 + $0x70] sm:$0xf]
        %v4772 = vld [vmem:[%s19 + $0x74] sm:$0xf]
        %v4773 = vld [vmem:[%s19 + $0x78] sm:$0xf]
        %v4774 = vld [vmem:[%s19 + $0x7c] sm:$0xf]
        %v4775 = vld [vmem:[%s20] sm:$0x1]
        %v4808 = vunpack.c.l.b16 %v4743
        %v4809 = vunpack.c.l.b16 %v4744
        %v4810 = vunpack.c.l.b16 %v4745
        %v4811 = vunpack.c.l.b16 %v4746
        %v4812 = vunpack.c.l.b16 %v4747
        %v4813 = vunpack.c.l.b16 %v4748
        %v4814 = vunpack.c.l.b16 %v4749
        %v4815 = vunpack.c.l.b16 %v4750
        %v4816 = vunpack.c.l.b16 %v4751
        %v4817 = vunpack.c.l.b16 %v4752
        %v4818 = vunpack.c.l.b16 %v4753
        %v4819 = vunpack.c.l.b16 %v4754
        %v4820 = vunpack.c.l.b16 %v4755
        %v4821 = vunpack.c.l.b16 %v4756
        %v4822 = vunpack.c.l.b16 %v4757
        %v4823 = vunpack.c.l.b16 %v4758
        %v4824 = vunpack.c.l.b16 %v4759
        %v4825 = vunpack.c.l.b16 %v4760
        %v4826 = vunpack.c.l.b16 %v4761
        %v4827 = vunpack.c.l.b16 %v4762
        %v4828 = vunpack.c.l.b16 %v4763
        %v4829 = vunpack.c.l.b16 %v4764
        %v4830 = vunpack.c.l.b16 %v4765
        %v4831 = vunpack.c.l.b16 %v4766
        %v4832 = vunpack.c.l.b16 %v4767
        %v4833 = vunpack.c.l.b16 %v4768
        %v4834 = vunpack.c.l.b16 %v4769
        %v4835 = vunpack.c.l.b16 %v4770
        %v4836 = vunpack.c.l.b16 %v4771
        %v4837 = vunpack.c.l.b16 %v4772
        %v4838 = vunpack.c.l.b16 %v4773
        %v4839 = vunpack.c.l.b16 %v4774
        %v4840 = vpack.c.b16 %v4809, %v4808
        %v4841 = vpack.c.b16 %v4811, %v4810
        %v4842 = vpack.c.b16 %v4813, %v4812
        %v4843 = vpack.c.b16 %v4815, %v4814
        %v4844 = vpack.c.b16 %v4817, %v4816
        %v4845 = vpack.c.b16 %v4819, %v4818
        %v4846 = vpack.c.b16 %v4821, %v4820
        %v4847 = vpack.c.b16 %v4823, %v4822
        %v4848 = vpack.c.b16 %v4825, %v4824
        %v4849 = vpack.c.b16 %v4827, %v4826
        %v4850 = vpack.c.b16 %v4829, %v4828
        %v4851 = vpack.c.b16 %v4831, %v4830
        %v4852 = vpack.c.b16 %v4833, %v4832
        %v4853 = vpack.c.b16 %v4835, %v4834
        %v4854 = vpack.c.b16 %v4837, %v4836
        %v4855 = vpack.c.b16 %v4839, %v4838
        %4872 = vmatprep.subr.bf16.mxu0 0
        %4873 = vmatpush1.bf16.msra.mxu0 %v4840
        %4874 = vmatprep.subr.bf16.mxu0 0
        %4875 = vmatpush1.bf16.msra.mxu0 %v4841
        %4876 = vmatprep.subr.bf16.mxu0 0
        %4877 = vmatpush1.bf16.msra.mxu0 %v4842
        %4878 = vmatprep.subr.bf16.mxu0 0
        %4879 = vmatpush1.bf16.msra.mxu0 %v4843
        %4880 = vmatprep.subr.bf16.mxu0 0
        %4881 = vmatpush1.bf16.msra.mxu0 %v4844
        %4882 = vmatprep.subr.bf16.mxu0 0
        %4883 = vmatpush1.bf16.msra.mxu0 %v4845
        %4884 = vmatprep.subr.bf16.mxu0 0
        %4885 = vmatpush1.bf16.msra.mxu0 %v4846
        %4886 = vmatprep.subr.bf16.mxu0 0
        %4887 = vmatpush1.bf16.msra.mxu0 %v4847
        %4888 = vmatprep.subr.bf16.mxu0 0
        %4889 = vmatpush1.bf16.msra.mxu0 %v4848
        %4890 = vmatprep.subr.bf16.mxu0 0
        %4891 = vmatpush1.bf16.msra.mxu0 %v4849
        %4892 = vmatprep.subr.bf16.mxu0 0
        %4893 = vmatpush1.bf16.msra.mxu0 %v4850
        %4894 = vmatprep.subr.bf16.mxu0 0
        %4895 = vmatpush1.bf16.msra.mxu0 %v4851
        %4896 = vmatprep.subr.bf16.mxu0 0
        %4897 = vmatpush1.bf16.msra.mxu0 %v4852
        %4898 = vmatprep.subr.bf16.mxu0 0
        %4899 = vmatpush1.bf16.msra.mxu0 %v4853
        %4900 = vmatprep.subr.bf16.mxu0 0
        %4901 = vmatpush1.bf16.msra.mxu0 %v4854
        %4902 = vmatprep.subr.bf16.mxu0 0
        %4903 = vmatpush1.bf16.msra.mxu0 %v4855
        %4904 = vmatprep.mubr.bf16.mxu0 %v4742
        %4905 = vmatmul.mubr.bf16.gmra.mrb[0].mxu0 %v4741
        %v4906 = vpop.f32.mrb[0].mxu0
        %v4907 = vadd.f32 %v4775, %v4906
        %v4908 = vpop.f32.mrb[0].mxu0
        %v4909 = vpop.f32.mrb[0].mxu0
        %v4910 = vpop.f32.mrb[0].mxu0
        %4911 = vdwg.mxu0
        %vm4912 = vcmp.ge.f32.partialorder %v4907, 0.0
        %v4913 = vmul.f32 %v4907, 0.01
        %v4914 = vsel %vm4912, %v4907, %v4913
        %v4915 = vpack.c.bf16 %v4914, %v4914
        %v4916 = vld [vmem:[%s21] sm:$0xf]
        %v4917 = vld [vmem:[%s21 + $0x4] sm:$0xf]
        %v4918 = vld [vmem:[%s21 + $0x8] sm:$0xf]
        %v4919 = vld [vmem:[%s21 + $0xc] sm:$0xf]
        %v4920 = vld [vmem:[%s21 + $0x10] sm:$0xf]
        %v4921 = vld [vmem:[%s21 + $0x14] sm:$0xf]
        %v4922 = vld [vmem:[%s21 + $0x18] sm:$0xf]
        %v4923 = vld [vmem:[%s21 + $0x1c] sm:$0xf]
        %v4924 = vld [vmem:[%s21 + $0x20] sm:$0xf]
        %v4925 = vld [vmem:[%s21 + $0x24] sm:$0xf]
        %v4926 = vld [vmem:[%s21 + $0x28] sm:$0xf]
        %v4927 = vld [vmem:[%s21 + $0x2c] sm:$0xf]
        %v4928 = vld [vmem:[%s21 + $0x30] sm:$0xf]
        %v4929 = vld [vmem:[%s21 + $0x34] sm:$0xf]
        %v4930 = vld [vmem:[%s21 + $0x38] sm:$0xf]
        %v4931 = vld [vmem:[%s21 + $0x3c] sm:$0xf]
        %v4948 = vunpack.c.l.b16 %v4916
        %v4949 = vunpack.c.l.b16 %v4917
        %v4950 = vunpack.c.l.b16 %v4918
        %v4951 = vunpack.c.l.b16 %v4919
        %v4952 = vunpack.c.l.b16 %v4920
        %v4953 = vunpack.c.l.b16 %v4921
        %v4954 = vunpack.c.l.b16 %v4922
        %v4955 = vunpack.c.l.b16 %v4923
        %v4956 = vunpack.c.l.b16 %v4924
        %v4957 = vunpack.c.l.b16 %v4925
        %v4958 = vunpack.c.l.b16 %v4926
        %v4959 = vunpack.c.l.b16 %v4927
        %v4960 = vunpack.c.l.b16 %v4928
        %v4961 = vunpack.c.l.b16 %v4929
        %v4962 = vunpack.c.l.b16 %v4930
        %v4963 = vunpack.c.l.b16 %v4931
        %v4964 = vpack.c.b16 %v4949, %v4948
        %v4965 = vpack.c.b16 %v4951, %v4950
        %v4966 = vpack.c.b16 %v4953, %v4952
        %v4967 = vpack.c.b16 %v4955, %v4954
        %v4968 = vpack.c.b16 %v4957, %v4956
        %v4969 = vpack.c.b16 %v4959, %v4958
        %v4970 = vpack.c.b16 %v4961, %v4960
        %v4971 = vpack.c.b16 %v4963, %v4962
        %4980 = vmatprep.subr.bf16.mxu0 0
        %4981 = vmatpush1.bf16.msra.mxu0 %v4964
        %4982 = vmatprep.subr.bf16.mxu0 0
        %4983 = vmatpush1.bf16.msra.mxu0 %v4965
        %4984 = vmatprep.subr.bf16.mxu0 0
        %4985 = vmatpush1.bf16.msra.mxu0 %v4966
        %4986 = vmatprep.subr.bf16.mxu0 0
        %4987 = vmatpush1.bf16.msra.mxu0 %v4967
        %4988 = vmatprep.subr.bf16.mxu0 0
        %4989 = vmatpush1.bf16.msra.mxu0 %v4968
        %4990 = vmatprep.subr.bf16.mxu0 0
        %4991 = vmatpush1.bf16.msra.mxu0 %v4969
        %4992 = vmatprep.subr.bf16.mxu0 0
        %4993 = vmatpush1.bf16.msra.mxu0 %v4970
        %4994 = vmatprep.subr.bf16.mxu0 0
        %4995 = vmatpush1.bf16.msra.mxu0 %v4971
        %4996 = vmatprep.subr.bf16.mxu0 0
        %4997 = vmatpush1.bf16.msra.mxu0 0
        %4998 = vmatprep.subr.bf16.mxu0 0
        %4999 = vmatpush1.bf16.msra.mxu0 0
        %5000 = vmatprep.subr.bf16.mxu0 0
        %5001 = vmatpush1.bf16.msra.mxu0 0
        %5002 = vmatprep.subr.bf16.mxu0 0
        %5003 = vmatpush1.bf16.msra.mxu0 0
        %5004 = vmatprep.subr.bf16.mxu0 0
        %5005 = vmatpush1.bf16.msra.mxu0 0
        %5006 = vmatprep.subr.bf16.mxu0 0
        %5007 = vmatpush1.bf16.msra.mxu0 0
        %5008 = vmatprep.subr.bf16.mxu0 0
        %5009 = vmatpush1.bf16.msra.mxu0 0
        %5010 = vmatprep.subr.bf16.mxu0 0
        %5011 = vmatpush1.bf16.msra.mxu0 0
        %5012 = vmatprep.mubr.bf16.mxu0 0
        %5013 = vmatmul.mubr.bf16.gmra.mrb[0].mxu0 %v4915
        %v5014 = vpop.f32.mrb[0].mxu0
        %v5015 = vadd.f32 0.0, %v5014
        %v5016 = vpop.f32.mrb[0].mxu0
        %v5017 = vpop.f32.mrb[0].mxu0
        %v5018 = vpop.f32.mrb[0].mxu0
        %5019 = vdwg.mxu0
        %v5020 = vlaneseq
        %v5021 = vshrl.u32 %v5020, 7
        %v5022 = vsub.s32 0, %v5021
        %v5023 = vrot.slane %v5015, %v5022
        %5024 = vst [vmem:[%s891] sm:$0xff] %v5023
      $region116: #{vit_forward.1} parent=107 // pred_fallthru
        _
      %p5025 = scmp.lt.s32.totalorder %s37, 1
      %s5026 = scalar_select %p5025, %s37, 1
      %s5027 = smul.addr %s5026, 8
      %s5028 = scalar_lea.vmem %s22, %s5027
      // Predicated region
      $region117: #{vit_forward.1} parent=107 // pred_check
        %p5029 = pneg %p590
      $region118: #{vit_forward.1} parent=107 // pred_check_branch
        %5031 = sbr.rel (%p5029) target = $region120
      $region119: #{vit_forward.1} parent=107 // pred_region
        _
      $region120: #{vit_forward.1} parent=107 // pred_fallthru
        _
    $region108: #{vit_forward.1} parent=5 // pred_fallthru
      _
    %p5032 = scmp.le.s32.totalorder 2, %s28
    // Predicated region
    $region121: #{vit_forward.1} parent=5 // pred_check
      %p5033 = pneg %p5032
    $region122: #{vit_forward.1} parent=5 // pred_check_branch
      %5035 = sbr.rel (%p5033) target = $region124
    $region123: #{vit_forward.1} parent=5 // pred_region
      %s5036 = ssub.s32 %s28, 2
      // Predicated region
      $region125: #{vit_forward.1} parent=123 // pred_check
        %p5037 = pneg %p596
      $region126: #{vit_forward.1} parent=123 // pred_check_branch
        %5039 = sbr.rel (%p5037) target = $region128
      $region127: #{vit_forward.1} parent=123 // pred_region
        %p5040 = scmp.lt.s32.totalorder %s39, 1
        %s5041 = scalar_select %p5040, %s39, 1
        %s5042 = smul.addr %s5041, 8
        %s5043 = scalar_lea.vmem %s22, %s5042
      $region128: #{vit_forward.1} parent=123 // pred_fallthru
        _
    $region124: #{vit_forward.1} parent=5 // pred_fallthru
      _
  $region6: #{vit_forward.1} parent=0 // loop_footer
    %s32 = sadd.s32 1, %s28
  $region7: #{vit_forward.1} parent=0 // loop_footer_branch
    %27 = sbr.rel target = $region3
  $region8: #{vit_forward.1} parent=0 // loop_exit
    _

</llo_original>
